<compile_context>
chip_gen: v6e
topology: v6e:2x2x1
jax: 0.10.0
libtpu: 0.0.40
codegen_flags: <defaults>
</compile_context>

<pallas_src>
import jax
import jax.numpy as jnp
from jax import lax
from jax.experimental import pallas as pl
from jax.experimental.pallas import tpu as pltpu

EMBED = 64                  # embed_dim / channel count
HEADS = 8                   # (N,64) -> (N,1,8,8): 8 heads of head-dim 1
GROUP = EMBED // HEADS      # 8 channels attend to each other within a group
NNETS = 4                   # hyper_w_1, hyper_w_final, hyper_b_1, V
CPACK = NNETS * EMBED       # 256: the 4 hyper-nets packed along the lane axis

IDX_W1, IDX_WFINAL, IDX_B1, IDX_V = 0, 1, 2, 3


# ----------------------------- kernel helpers ------------------------------
def _recip(x):
    # EUP approximate reciprocal + one Newton step (keeps ~f32 accuracy, cheaper
    # than a full divide and off the VALU critical path).
    r = pl.reciprocal(x, approx=True)
    return r * (2.0 - x * r)


def _softmax_lanes(x):
    x = x - jnp.max(x, axis=-1, keepdims=True)
    e = jnp.exp(x)
    return e * _recip(jnp.sum(e, axis=-1, keepdims=True))


def _roll_in_group(arr, t, mask):
    # arr: (M, C), C a multiple of GROUP.  Returns r with
    #   r[m, g*GROUP + i] = arr[m, g*GROUP + (i + t) % GROUP]
    # built from two full-lane rotates (XLU) + a lane-constant select (VPU).
    c = arr.shape[-1]
    a = pltpu.roll(arr, c - t, axis=1)       # arr[(lane + t) % C]
    b = pltpu.roll(arr, GROUP - t, axis=1)   # arr[(lane + t - GROUP) % C]
    return jnp.where(mask, a, b)


def _group_attention(q, k, v):
    """Block-diagonal (groups of 8 channels, head-dim 1) softmax attention,
    evaluated lane-dense over the packed (M, 256) arrays."""
    c = q.shape[-1]
    lane = lax.broadcasted_iota(jnp.int32, (1, c), 1)
    lane_ig = jnp.bitwise_and(lane, GROUP - 1)          # lane index within group
    masks = [None] + [lane_ig < (GROUP - t) for t in range(1, GROUP)]

    # pass 1 (exact max, cheap): head-dim is 1, so
    #   max_j q_i*k_j = q_i * (groupmax(k) if q_i >= 0 else groupmin(k)).
    # groupmax/groupmin via a 3-step rotate butterfly -> 12 rolls total and no
    # full-width score muls/maxes (vs 14 rolls + 7 muls + 7 maxes before).
    gmax = k
    gmin = k
    for s in (GROUP // 2, GROUP // 4, GROUP // 8):       # shifts 4, 2, 1
        gmax = jnp.maximum(gmax, _roll_in_group(gmax, s, masks[s]))
        gmin = jnp.minimum(gmin, _roll_in_group(gmin, s, masks[s]))
    m = q * jnp.where(q >= 0.0, gmax, gmin)              # exact per-lane max score

    # pass 2: exp-normalize online against the rolled keys / values.
    p = jnp.exp(q * k - m)
    denom = p
    acc = p * v
    for t in range(1, GROUP):
        kt = _roll_in_group(k, t, masks[t])
        vt = _roll_in_group(v, t, masks[t])
        p = jnp.exp(q * kt - m)
        denom = denom + p
        acc = acc + p * vt
    return acc * _recip(denom)


# --------------------------------- kernel ----------------------------------
def _qmixer_kernel(pe_ref, qv_ref, m01_ref, wqkv_ref, bqkv_ref,
                   wo1_ref, bo1_ref, wom_ref, bom_ref, out_ref):
    tb, n, _ = pe_ref.shape
    mrows = tb * n

    x = pe_ref[...].reshape(mrows, EMBED)                # (M, 64), M = TB*N

    # fused fc_q | fc_k | fc_v for all 4 hyper-nets: ONE MXU push, then
    # 128-aligned (free) lane slices.
    qkv = jnp.dot(x, wqkv_ref[...],
                  preferred_element_type=jnp.float32) + bqkv_ref[...]   # (M, 768)
    q = qkv[:, 0:CPACK]
    k = qkv[:, CPACK:2 * CPACK]
    v = qkv[:, 2 * CPACK:3 * CPACK]

    att = _group_attention(q, k, v)                      # (M, 256)

    # Entity reductions on the (idle) MXU via the constant block-diag 0/1 mask.
    m01 = m01_ref[...]                                   # (TB, M)
    att_sum = jnp.dot(m01, att, preferred_element_type=jnp.float32)     # (TB, 256)

    # Mean-path fc_o for hyper_w_final / hyper_b_1 / V packed into one matmul;
    # the 1/N entity-mean is folded into wom in the wrapper.
    mean_out = jnp.dot(att_sum, wom_ref[...],
                       preferred_element_type=jnp.float32) + bom_ref[...]  # (TB, 192)

    # Per-entity w1 path: zero-padded (256,64) fc_o weight, so att is never
    # sliced at an unaligned lane offset.
    w1 = _softmax_lanes(jnp.dot(att, wo1_ref[...],
                                preferred_element_type=jnp.float32)
                        + bo1_ref[...])                  # (M, 64)

    wf = _softmax_lanes(mean_out[:, 0:EMBED])            # (TB, 64)
    b1 = mean_out[:, EMBED:2 * EMBED]                    # (TB, 64)
    vo = mean_out[:, 2 * EMBED:3 * EMBED]                # (TB, 64)

    # hidden = elu(q_vals @ w1 + b1): the qv-weighted entity reduction also
    # goes through the MXU via the masked qv matrix.
    qvmat = m01 * qv_ref[...]                            # (TB, M)
    hp = jnp.dot(qvmat, w1, preferred_element_type=jnp.float32)         # (TB, 64)
    h = hp + b1
    hidden = jnp.where(h > 0, h, jnp.exp(jnp.minimum(h, 0.0)) - 1.0)

    # q_tot[b] = sum_c hidden*wf + mean_c vo  ==  row-sum of G, produced
    # lane-dense (1, TB) directly via a tiny MXU contraction (no transpose).
    g = hidden * wf + vo * (1.0 / EMBED)
    ones_row = jnp.ones((1, EMBED), jnp.float32)
    q_row = lax.dot_general(ones_row, g, (((1,), (1,)), ((), ())),
                            preferred_element_type=jnp.float32)         # (1, TB)
    out_ref[...] = q_row.reshape(1, 1, tb)


# -------------------------------- wrapper ----------------------------------
def _round_up(x, m):
    return (x + m - 1) // m * m


def _choose_tb(B, N):
    # Target TB*N <= ~1024 rows (fills the MXU M-dim, bounds the (M,256)
    # temporaries so they fit comfortably in v7x's 64 MiB VMEM); TB a multiple
    # of 8, <= 128.  When B is small enough to fit one block, still prefer two
    # blocks so the "parallel" batch axis can shard across v7x's two TCs.
    cap = max(8, min(128, ((1024 // max(N, 1)) // 8) * 8))
    b8 = _round_up(B, 8)
    if b8 > cap:
        return cap
    half = _round_up((b8 + 1) // 2, 8)
    if half < b8:
        return half
    return b8


@jax.jit
def qmixer_pallas(pair_enc, q_vals, params):
    """pair_enc: (B, N, 64) f32, q_vals: (B, N) f32 -> (B, 1, 1) f32."""
    B, N, _ = pair_enc.shape
    wq, bq, wk, bk, wv, bv, wo, bo = params

    # Pack the 4 hyper-nets' fc_q/fc_k/fc_v into one (64, 768) weight + (1, 768)
    # bias; net i occupies lanes [i*64:(i+1)*64] of each 256-wide q/k/v segment.
    def cat_w(w):  # (4, 64, 64) -> (64, 256)
        return jnp.transpose(w, (1, 0, 2)).reshape(EMBED, CPACK)

    w_qkv = jnp.concatenate([cat_w(wq), cat_w(wk), cat_w(wv)], axis=1)   # (64, 768)
    b_qkv = jnp.concatenate([bq.reshape(1, CPACK), bk.reshape(1, CPACK),
                             bv.reshape(1, CPACK)], axis=1)              # (1, 768)

    # fc_o for the per-entity w1 net, zero-padded to (256, 64) so the kernel
    # matmuls the full lane-dense att instead of slicing 64 lanes.
    w_o_w1 = jnp.zeros((CPACK, EMBED), jnp.float32)
    w_o_w1 = w_o_w1.at[IDX_W1 * EMBED:(IDX_W1 + 1) * EMBED].set(wo[IDX_W1])
    b_o_w1 = bo[IDX_W1].reshape(1, EMBED)

    # fc_o for the 3 mean-path nets packed into one (256, 192) block matmul;
    # the 1/N entity-mean (fc_o is linear) is folded into the weights.
    w_o_mean = jnp.zeros((CPACK, 3 * EMBED), jnp.float32)
    for slot, idx in enumerate((IDX_WFINAL, IDX_B1, IDX_V)):
        w_o_mean = w_o_mean.at[idx * EMBED:(idx + 1) * EMBED,
                               slot * EMBED:(slot + 1) * EMBED].set(wo[idx])
    w_o_mean = w_o_mean * (1.0 / N)
    b_o_mean = jnp.concatenate([bo[IDX_WFINAL].reshape(1, EMBED),
                                bo[IDX_B1].reshape(1, EMBED),
                                bo[IDX_V].reshape(1, EMBED)], axis=1)    # (1, 192)

    TB = _choose_tb(B, N)
    B_pad = _round_up(B, TB)
    nblk = B_pad // TB
    M = TB * N
    if B_pad != B:
        pair_enc = jnp.pad(pair_enc, ((0, B_pad - B), (0, 0), (0, 0)))
        q_vals = jnp.pad(q_vals, ((0, B_pad - B), (0, 0)))
    qv_rows = q_vals.reshape(nblk, M)        # lane-dense (1, TB*N) row per block

    # Constant block-diagonal 0/1 mask: m01[b, b*N + n] = 1.  Drives both the
    # entity-mean and the qv-weighted reduction on the MXU.
    m01 = (jnp.arange(M)[None, :] // N == jnp.arange(TB)[:, None]).astype(jnp.float32)

    # TODO(synk): for very large N the (TB*N, 256) temporaries grow linearly;
    # tile the attention over entities if N >> 128.
    out = pl.pallas_call(
        _qmixer_kernel,
        out_shape=jax.ShapeDtypeStruct((nblk, 1, TB), jnp.float32),
        grid_spec=pltpu.PrefetchScalarGridSpec(
            num_scalar_prefetch=0,
            grid=(nblk,),
            in_specs=[
                pl.BlockSpec((TB, N, EMBED), lambda g: (g, 0, 0)),        # pair_enc tile
                pl.BlockSpec((1, M), lambda g: (g, 0)),                   # qv row (lane-dense)
                pl.BlockSpec((TB, M), lambda g: (0, 0)),                  # block-diag mask
                pl.BlockSpec((EMBED, 3 * CPACK), lambda g: (0, 0)),       # packed Wq|Wk|Wv
                pl.BlockSpec((1, 3 * CPACK), lambda g: (0, 0)),           # packed qkv biases
                pl.BlockSpec((CPACK, EMBED), lambda g: (0, 0)),           # padded fc_o (w1 net)
                pl.BlockSpec((1, EMBED), lambda g: (0, 0)),               # fc_o bias (w1 net)
                pl.BlockSpec((CPACK, 3 * EMBED), lambda g: (0, 0)),       # packed mean-path fc_o
                pl.BlockSpec((1, 3 * EMBED), lambda g: (0, 0)),           # packed mean-path bias
            ],
            out_specs=pl.BlockSpec((1, 1, TB), lambda g: (g, 0, 0)),
        ),
        compiler_params=pltpu.CompilerParams(
            dimension_semantics=("parallel",),          # batch tiles independent
            vmem_limit_bytes=32 * 1024 * 1024),
    )(pair_enc, qv_rows, m01, w_qkv, b_qkv, w_o_w1, b_o_w1, w_o_mean, b_o_mean)

    return out.reshape(B_pad)[:B].reshape(B, 1, 1)


# ---------------- pure-JAX reference (for verification) ----------------
def _mha_ref(x, wq, bq, wk, bk, wv, bv, wo, bo):
    N = x.shape[0]
    q = x @ wq + bq
    k = x @ wk + bk
    v = x @ wv + bv
    qh = q.reshape(N, HEADS, GROUP)
    kh = k.reshape(N, HEADS, GROUP)
    vh = v.reshape(N, HEADS, GROUP)
    att = jnp.einsum('nhi,nhj->nhij', qh, kh)
    att = jax.nn.softmax(att, axis=-1)
    out = jnp.einsum('nhij,nhj->nhi', att, vh).reshape(N, EMBED)
    return out @ wo + bo


def qmixer_ref(pair_enc, q_vals, params):
    wq, bq, wk, bk, wv, bv, wo, bo = params

    def mha(x, i):
        return _mha_ref(x, wq[i], bq[i, 0], wk[i], bk[i, 0],
                        wv[i], bv[i, 0], wo[i], bo[i, 0])

    outs = []
    for x, qv in zip(pair_enc, q_vals):
        w1 = jax.nn.softmax(mha(x, IDX_W1), axis=-1)              # (N, 64)
        b1 = mha(x, IDX_B1).mean(axis=0)                          # (64,)
        hidden = jax.nn.elu(qv[None, :] @ w1 + b1)                # (1, 64)
        wf = jax.nn.softmax(mha(x, IDX_WFINAL).mean(axis=0))      # (64,)
        v = mha(x, IDX_V).mean()
        outs.append((hidden @ wf[:, None] + v).reshape(1, 1))
    return jnp.stack(outs)                                        # (B, 1, 1)


if __name__ == "__main__":
    key = jax.random.PRNGKey(0)
    N = 8
    ks = jax.random.split(key, 12)

    # deterministic synthetic parameters: 4 hyper-nets x {fc_q, fc_k, fc_v, fc_o}
    scale = 1.0 / jnp.sqrt(jnp.float32(EMBED))
    wq = jax.random.normal(ks[0], (4, EMBED, EMBED), jnp.float32) * scale
    wk = jax.random.normal(ks[1], (4, EMBED, EMBED), jnp.float32) * scale
    wv = jax.random.normal(ks[2], (4, EMBED, EMBED), jnp.float32) * scale
    wo = jax.random.normal(ks[3], (4, EMBED, EMBED), jnp.float32) * scale
    bq = jax.random.normal(ks[4], (4, 1, EMBED), jnp.float32) * 0.05
    bk = jax.random.normal(ks[5], (4, 1, EMBED), jnp.float32) * 0.05
    bv = jax.random.normal(ks[6], (4, 1, EMBED), jnp.float32) * 0.05
    bo = jax.random.normal(ks[7], (4, 1, EMBED), jnp.float32) * 0.05
    params = (wq, bq, wk, bk, wv, bv, wo, bo)

    # single-block path (B=2) and multi-block path (B=20 -> 2 grid blocks)
    for B, kx, kq in ((2, ks[8], ks[9]), (20, ks[10], ks[11])):
        pair_enc = jax.random.normal(kx, (B, N, EMBED), jnp.float32)
        q_vals = jax.random.normal(kq, (B, N), jnp.float32)

        out = qmixer_pallas(pair_enc, q_vals, params)
        out = jax.block_until_ready(out)

        ref = qmixer_ref(pair_enc, q_vals, params)
        assert out.shape == (B, 1, 1)
        assert jnp.allclose(out, ref, rtol=1e-3, atol=1e-4), (B, out, ref)

    print("KERNEL_OK")
</pallas_src>

<mosaic_0001>
module attributes {stable_mosaic.version = 11 : i64} {
  func.func @_qmixer_kernel(%arg0: i32, %arg1: memref<8x8x64xf32, #tpu.memory_space<vmem>>, %arg2: memref<1x64xf32, #tpu.memory_space<vmem>>, %arg3: memref<8x64xf32, #tpu.memory_space<vmem>>, %arg4: memref<64x768xf32, #tpu.memory_space<vmem>>, %arg5: memref<1x768xf32, #tpu.memory_space<vmem>>, %arg6: memref<256x64xf32, #tpu.memory_space<vmem>>, %arg7: memref<1x64xf32, #tpu.memory_space<vmem>>, %arg8: memref<256x192xf32, #tpu.memory_space<vmem>>, %arg9: memref<1x192xf32, #tpu.memory_space<vmem>>, %arg10: memref<1x1x8xf32, #tpu.memory_space<vmem>>) attributes {dimension_semantics = [#tpu.dimension_semantics<parallel>], iteration_bounds = array<i64: 1>, scalar_prefetch = 0 : i64, scratch_operands = 0 : i64, tpu.core_type = #tpu.core_type<tc>, window_params = [{transform_indices = @transform_0, window_bounds = array<i64: 8, 8, 64>}, {transform_indices = @transform_1, window_bounds = array<i64: 1, 64>}, {pipeline_mode = #tpu.pipeline_mode<synchronous>, transform_indices = @transform_2, window_bounds = array<i64: 8, 64>}, {pipeline_mode = #tpu.pipeline_mode<synchronous>, transform_indices = @transform_3, window_bounds = array<i64: 64, 768>}, {pipeline_mode = #tpu.pipeline_mode<synchronous>, transform_indices = @transform_4, window_bounds = array<i64: 1, 768>}, {pipeline_mode = #tpu.pipeline_mode<synchronous>, transform_indices = @transform_5, window_bounds = array<i64: 256, 64>}, {pipeline_mode = #tpu.pipeline_mode<synchronous>, transform_indices = @transform_6, window_bounds = array<i64: 1, 64>}, {pipeline_mode = #tpu.pipeline_mode<synchronous>, transform_indices = @transform_7, window_bounds = array<i64: 256, 192>}, {pipeline_mode = #tpu.pipeline_mode<synchronous>, transform_indices = @transform_8, window_bounds = array<i64: 1, 192>}, {transform_indices = @transform_9, window_bounds = array<i64: 1, 1, 8>}]} {
    %c0 = arith.constant 0 : index
    %c0_0 = arith.constant 0 : index
    %c0_1 = arith.constant 0 : index
    %0 = vector.load %arg1[%c0, %c0_0, %c0_1] : memref<8x8x64xf32, #tpu.memory_space<vmem>>, vector<8x8x64xf32>
    %1 = vector.shape_cast %0 : vector<8x8x64xf32> to vector<64x64xf32>
    %c0_2 = arith.constant 0 : index
    %c0_3 = arith.constant 0 : index
    %2 = vector.load %arg4[%c0_2, %c0_3] : memref<64x768xf32, #tpu.memory_space<vmem>>, vector<64x768xf32>
    %cst = arith.constant dense<0.000000e+00> : vector<64x768xf32>
    %3 = tpu.matmul %1, %2, %cst {dimension_numbers = #tpu.dot_dimension_numbers<[1], [0], [0], [1], [0, 0, 1, 1], [], []>} : vector<64x64xf32>, vector<64x768xf32>, vector<64x768xf32> -> vector<64x768xf32>
    %c0_4 = arith.constant 0 : index
    %c0_5 = arith.constant 0 : index
    %4 = vector.load %arg5[%c0_4, %c0_5] : memref<1x768xf32, #tpu.memory_space<vmem>>, vector<1x768xf32>
    %5 = vector.broadcast %4 : vector<1x768xf32> to vector<64x768xf32>
    %6 = arith.addf %3, %5 : vector<64x768xf32>
    %7 = vector.extract_strided_slice %6 {offsets = [0, 0], sizes = [64, 256], strides = [1, 1]} : vector<64x768xf32> to vector<64x256xf32>
    %8 = vector.extract_strided_slice %6 {offsets = [0, 256], sizes = [64, 256], strides = [1, 1]} : vector<64x768xf32> to vector<64x256xf32>
    %9 = vector.extract_strided_slice %6 {offsets = [0, 512], sizes = [64, 256], strides = [1, 1]} : vector<64x768xf32> to vector<64x256xf32>
    %10 = tpu.iota {dimensions = array<i32: 1>} : vector<1x256xi32>
    %c7_i32 = arith.constant 7 : i32
    %11 = vector.broadcast %c7_i32 : i32 to vector<1x256xi32>
    %12 = arith.andi %10, %11 : vector<1x256xi32>
    %c7_i32_6 = arith.constant 7 : i32
    %13 = vector.broadcast %c7_i32_6 : i32 to vector<1x256xi32>
    %14 = arith.cmpi slt, %12, %13 : vector<1x256xi32>
    %c6_i32 = arith.constant 6 : i32
    %15 = vector.broadcast %c6_i32 : i32 to vector<1x256xi32>
    %16 = arith.cmpi slt, %12, %15 : vector<1x256xi32>
    %c5_i32 = arith.constant 5 : i32
    %17 = vector.broadcast %c5_i32 : i32 to vector<1x256xi32>
    %18 = arith.cmpi slt, %12, %17 : vector<1x256xi32>
    %c4_i32 = arith.constant 4 : i32
    %19 = vector.broadcast %c4_i32 : i32 to vector<1x256xi32>
    %20 = arith.cmpi slt, %12, %19 : vector<1x256xi32>
    %c3_i32 = arith.constant 3 : i32
    %21 = vector.broadcast %c3_i32 : i32 to vector<1x256xi32>
    %22 = arith.cmpi slt, %12, %21 : vector<1x256xi32>
    %c2_i32 = arith.constant 2 : i32
    %23 = vector.broadcast %c2_i32 : i32 to vector<1x256xi32>
    %24 = arith.cmpi slt, %12, %23 : vector<1x256xi32>
    %c1_i32 = arith.constant 1 : i32
    %25 = vector.broadcast %c1_i32 : i32 to vector<1x256xi32>
    %26 = arith.cmpi slt, %12, %25 : vector<1x256xi32>
    %c252_i32 = arith.constant 252 : i32
    %27 = tpu.dynamic_rotate %8 by %c252_i32 dim 1 : vector<64x256xf32>, i32 -> vector<64x256xf32>
    %c4_i32_7 = arith.constant 4 : i32
    %28 = tpu.dynamic_rotate %8 by %c4_i32_7 dim 1 : vector<64x256xf32>, i32 -> vector<64x256xf32>
    %29 = vector.shape_cast %20 : vector<1x256xi1> to vector<1x256xi1>
    %30 = vector.broadcast %29 : vector<1x256xi1> to vector<64x256xi1>
    %31 = arith.select %30, %27, %28 : vector<64x256xi1>, vector<64x256xf32>
    %32 = arith.maximumf %8, %31 : vector<64x256xf32>
    %c252_i32_8 = arith.constant 252 : i32
    %33 = tpu.dynamic_rotate %8 by %c252_i32_8 dim 1 : vector<64x256xf32>, i32 -> vector<64x256xf32>
    %c4_i32_9 = arith.constant 4 : i32
    %34 = tpu.dynamic_rotate %8 by %c4_i32_9 dim 1 : vector<64x256xf32>, i32 -> vector<64x256xf32>
    %35 = vector.shape_cast %20 : vector<1x256xi1> to vector<1x256xi1>
    %36 = vector.broadcast %35 : vector<1x256xi1> to vector<64x256xi1>
    %37 = arith.select %36, %33, %34 : vector<64x256xi1>, vector<64x256xf32>
    %38 = arith.minimumf %8, %37 : vector<64x256xf32>
    %c254_i32 = arith.constant 254 : i32
    %39 = tpu.dynamic_rotate %32 by %c254_i32 dim 1 : vector<64x256xf32>, i32 -> vector<64x256xf32>
    %c6_i32_10 = arith.constant 6 : i32
    %40 = tpu.dynamic_rotate %32 by %c6_i32_10 dim 1 : vector<64x256xf32>, i32 -> vector<64x256xf32>
    %41 = vector.shape_cast %16 : vector<1x256xi1> to vector<1x256xi1>
    %42 = vector.broadcast %41 : vector<1x256xi1> to vector<64x256xi1>
    %43 = arith.select %42, %39, %40 : vector<64x256xi1>, vector<64x256xf32>
    %44 = arith.maximumf %32, %43 : vector<64x256xf32>
    %c254_i32_11 = arith.constant 254 : i32
    %45 = tpu.dynamic_rotate %38 by %c254_i32_11 dim 1 : vector<64x256xf32>, i32 -> vector<64x256xf32>
    %c6_i32_12 = arith.constant 6 : i32
    %46 = tpu.dynamic_rotate %38 by %c6_i32_12 dim 1 : vector<64x256xf32>, i32 -> vector<64x256xf32>
    %47 = vector.shape_cast %16 : vector<1x256xi1> to vector<1x256xi1>
    %48 = vector.broadcast %47 : vector<1x256xi1> to vector<64x256xi1>
    %49 = arith.select %48, %45, %46 : vector<64x256xi1>, vector<64x256xf32>
    %50 = arith.minimumf %38, %49 : vector<64x256xf32>
    %c255_i32 = arith.constant 255 : i32
    %51 = tpu.dynamic_rotate %44 by %c255_i32 dim 1 : vector<64x256xf32>, i32 -> vector<64x256xf32>
    %c7_i32_13 = arith.constant 7 : i32
    %52 = tpu.dynamic_rotate %44 by %c7_i32_13 dim 1 : vector<64x256xf32>, i32 -> vector<64x256xf32>
    %53 = vector.shape_cast %14 : vector<1x256xi1> to vector<1x256xi1>
    %54 = vector.broadcast %53 : vector<1x256xi1> to vector<64x256xi1>
    %55 = arith.select %54, %51, %52 : vector<64x256xi1>, vector<64x256xf32>
    %56 = arith.maximumf %44, %55 : vector<64x256xf32>
    %c255_i32_14 = arith.constant 255 : i32
    %57 = tpu.dynamic_rotate %50 by %c255_i32_14 dim 1 : vector<64x256xf32>, i32 -> vector<64x256xf32>
    %c7_i32_15 = arith.constant 7 : i32
    %58 = tpu.dynamic_rotate %50 by %c7_i32_15 dim 1 : vector<64x256xf32>, i32 -> vector<64x256xf32>
    %59 = vector.shape_cast %14 : vector<1x256xi1> to vector<1x256xi1>
    %60 = vector.broadcast %59 : vector<1x256xi1> to vector<64x256xi1>
    %61 = arith.select %60, %57, %58 : vector<64x256xi1>, vector<64x256xf32>
    %62 = arith.minimumf %50, %61 : vector<64x256xf32>
    %cst_16 = arith.constant 0.000000e+00 : f32
    %63 = vector.broadcast %cst_16 : f32 to vector<64x256xf32>
    %64 = arith.cmpf oge, %7, %63 : vector<64x256xf32>
    %65 = arith.select %64, %56, %62 : vector<64x256xi1>, vector<64x256xf32>
    %66 = arith.mulf %7, %65 : vector<64x256xf32>
    %67 = arith.mulf %7, %8 : vector<64x256xf32>
    %68 = arith.subf %67, %66 : vector<64x256xf32>
    %69 = math.exp %68 : vector<64x256xf32>
    %70 = arith.mulf %69, %9 : vector<64x256xf32>
    %c255_i32_17 = arith.constant 255 : i32
    %71 = tpu.dynamic_rotate %8 by %c255_i32_17 dim 1 : vector<64x256xf32>, i32 -> vector<64x256xf32>
    %c7_i32_18 = arith.constant 7 : i32
    %72 = tpu.dynamic_rotate %8 by %c7_i32_18 dim 1 : vector<64x256xf32>, i32 -> vector<64x256xf32>
    %73 = vector.shape_cast %14 : vector<1x256xi1> to vector<1x256xi1>
    %74 = vector.broadcast %73 : vector<1x256xi1> to vector<64x256xi1>
    %75 = arith.select %74, %71, %72 : vector<64x256xi1>, vector<64x256xf32>
    %c255_i32_19 = arith.constant 255 : i32
    %76 = tpu.dynamic_rotate %9 by %c255_i32_19 dim 1 : vector<64x256xf32>, i32 -> vector<64x256xf32>
    %c7_i32_20 = arith.constant 7 : i32
    %77 = tpu.dynamic_rotate %9 by %c7_i32_20 dim 1 : vector<64x256xf32>, i32 -> vector<64x256xf32>
    %78 = vector.shape_cast %14 : vector<1x256xi1> to vector<1x256xi1>
    %79 = vector.broadcast %78 : vector<1x256xi1> to vector<64x256xi1>
    %80 = arith.select %79, %76, %77 : vector<64x256xi1>, vector<64x256xf32>
    %81 = arith.mulf %7, %75 : vector<64x256xf32>
    %82 = arith.subf %81, %66 : vector<64x256xf32>
    %83 = math.exp %82 : vector<64x256xf32>
    %84 = arith.addf %69, %83 : vector<64x256xf32>
    %85 = arith.mulf %83, %80 : vector<64x256xf32>
    %86 = arith.addf %70, %85 : vector<64x256xf32>
    %c254_i32_21 = arith.constant 254 : i32
    %87 = tpu.dynamic_rotate %8 by %c254_i32_21 dim 1 : vector<64x256xf32>, i32 -> vector<64x256xf32>
    %c6_i32_22 = arith.constant 6 : i32
    %88 = tpu.dynamic_rotate %8 by %c6_i32_22 dim 1 : vector<64x256xf32>, i32 -> vector<64x256xf32>
    %89 = vector.shape_cast %16 : vector<1x256xi1> to vector<1x256xi1>
    %90 = vector.broadcast %89 : vector<1x256xi1> to vector<64x256xi1>
    %91 = arith.select %90, %87, %88 : vector<64x256xi1>, vector<64x256xf32>
    %c254_i32_23 = arith.constant 254 : i32
    %92 = tpu.dynamic_rotate %9 by %c254_i32_23 dim 1 : vector<64x256xf32>, i32 -> vector<64x256xf32>
    %c6_i32_24 = arith.constant 6 : i32
    %93 = tpu.dynamic_rotate %9 by %c6_i32_24 dim 1 : vector<64x256xf32>, i32 -> vector<64x256xf32>
    %94 = vector.shape_cast %16 : vector<1x256xi1> to vector<1x256xi1>
    %95 = vector.broadcast %94 : vector<1x256xi1> to vector<64x256xi1>
    %96 = arith.select %95, %92, %93 : vector<64x256xi1>, vector<64x256xf32>
    %97 = arith.mulf %7, %91 : vector<64x256xf32>
    %98 = arith.subf %97, %66 : vector<64x256xf32>
    %99 = math.exp %98 : vector<64x256xf32>
    %100 = arith.addf %84, %99 : vector<64x256xf32>
    %101 = arith.mulf %99, %96 : vector<64x256xf32>
    %102 = arith.addf %86, %101 : vector<64x256xf32>
    %c253_i32 = arith.constant 253 : i32
    %103 = tpu.dynamic_rotate %8 by %c253_i32 dim 1 : vector<64x256xf32>, i32 -> vector<64x256xf32>
    %c5_i32_25 = arith.constant 5 : i32
    %104 = tpu.dynamic_rotate %8 by %c5_i32_25 dim 1 : vector<64x256xf32>, i32 -> vector<64x256xf32>
    %105 = vector.shape_cast %18 : vector<1x256xi1> to vector<1x256xi1>
    %106 = vector.broadcast %105 : vector<1x256xi1> to vector<64x256xi1>
    %107 = arith.select %106, %103, %104 : vector<64x256xi1>, vector<64x256xf32>
    %c253_i32_26 = arith.constant 253 : i32
    %108 = tpu.dynamic_rotate %9 by %c253_i32_26 dim 1 : vector<64x256xf32>, i32 -> vector<64x256xf32>
    %c5_i32_27 = arith.constant 5 : i32
    %109 = tpu.dynamic_rotate %9 by %c5_i32_27 dim 1 : vector<64x256xf32>, i32 -> vector<64x256xf32>
    %110 = vector.shape_cast %18 : vector<1x256xi1> to vector<1x256xi1>
    %111 = vector.broadcast %110 : vector<1x256xi1> to vector<64x256xi1>
    %112 = arith.select %111, %108, %109 : vector<64x256xi1>, vector<64x256xf32>
    %113 = arith.mulf %7, %107 : vector<64x256xf32>
    %114 = arith.subf %113, %66 : vector<64x256xf32>
    %115 = math.exp %114 : vector<64x256xf32>
    %116 = arith.addf %100, %115 : vector<64x256xf32>
    %117 = arith.mulf %115, %112 : vector<64x256xf32>
    %118 = arith.addf %102, %117 : vector<64x256xf32>
    %c252_i32_28 = arith.constant 252 : i32
    %119 = tpu.dynamic_rotate %8 by %c252_i32_28 dim 1 : vector<64x256xf32>, i32 -> vector<64x256xf32>
    %c4_i32_29 = arith.constant 4 : i32
    %120 = tpu.dynamic_rotate %8 by %c4_i32_29 dim 1 : vector<64x256xf32>, i32 -> vector<64x256xf32>
    %121 = vector.shape_cast %20 : vector<1x256xi1> to vector<1x256xi1>
    %122 = vector.broadcast %121 : vector<1x256xi1> to vector<64x256xi1>
    %123 = arith.select %122, %119, %120 : vector<64x256xi1>, vector<64x256xf32>
    %c252_i32_30 = arith.constant 252 : i32
    %124 = tpu.dynamic_rotate %9 by %c252_i32_30 dim 1 : vector<64x256xf32>, i32 -> vector<64x256xf32>
    %c4_i32_31 = arith.constant 4 : i32
    %125 = tpu.dynamic_rotate %9 by %c4_i32_31 dim 1 : vector<64x256xf32>, i32 -> vector<64x256xf32>
    %126 = vector.shape_cast %20 : vector<1x256xi1> to vector<1x256xi1>
    %127 = vector.broadcast %126 : vector<1x256xi1> to vector<64x256xi1>
    %128 = arith.select %127, %124, %125 : vector<64x256xi1>, vector<64x256xf32>
    %129 = arith.mulf %7, %123 : vector<64x256xf32>
    %130 = arith.subf %129, %66 : vector<64x256xf32>
    %131 = math.exp %130 : vector<64x256xf32>
    %132 = arith.addf %116, %131 : vector<64x256xf32>
    %133 = arith.mulf %131, %128 : vector<64x256xf32>
    %134 = arith.addf %118, %133 : vector<64x256xf32>
    %c251_i32 = arith.constant 251 : i32
    %135 = tpu.dynamic_rotate %8 by %c251_i32 dim 1 : vector<64x256xf32>, i32 -> vector<64x256xf32>
    %c3_i32_32 = arith.constant 3 : i32
    %136 = tpu.dynamic_rotate %8 by %c3_i32_32 dim 1 : vector<64x256xf32>, i32 -> vector<64x256xf32>
    %137 = vector.shape_cast %22 : vector<1x256xi1> to vector<1x256xi1>
    %138 = vector.broadcast %137 : vector<1x256xi1> to vector<64x256xi1>
    %139 = arith.select %138, %135, %136 : vector<64x256xi1>, vector<64x256xf32>
    %c251_i32_33 = arith.constant 251 : i32
    %140 = tpu.dynamic_rotate %9 by %c251_i32_33 dim 1 : vector<64x256xf32>, i32 -> vector<64x256xf32>
    %c3_i32_34 = arith.constant 3 : i32
    %141 = tpu.dynamic_rotate %9 by %c3_i32_34 dim 1 : vector<64x256xf32>, i32 -> vector<64x256xf32>
    %142 = vector.shape_cast %22 : vector<1x256xi1> to vector<1x256xi1>
    %143 = vector.broadcast %142 : vector<1x256xi1> to vector<64x256xi1>
    %144 = arith.select %143, %140, %141 : vector<64x256xi1>, vector<64x256xf32>
    %145 = arith.mulf %7, %139 : vector<64x256xf32>
    %146 = arith.subf %145, %66 : vector<64x256xf32>
    %147 = math.exp %146 : vector<64x256xf32>
    %148 = arith.addf %132, %147 : vector<64x256xf32>
    %149 = arith.mulf %147, %144 : vector<64x256xf32>
    %150 = arith.addf %134, %149 : vector<64x256xf32>
    %c250_i32 = arith.constant 250 : i32
    %151 = tpu.dynamic_rotate %8 by %c250_i32 dim 1 : vector<64x256xf32>, i32 -> vector<64x256xf32>
    %c2_i32_35 = arith.constant 2 : i32
    %152 = tpu.dynamic_rotate %8 by %c2_i32_35 dim 1 : vector<64x256xf32>, i32 -> vector<64x256xf32>
    %153 = vector.shape_cast %24 : vector<1x256xi1> to vector<1x256xi1>
    %154 = vector.broadcast %153 : vector<1x256xi1> to vector<64x256xi1>
    %155 = arith.select %154, %151, %152 : vector<64x256xi1>, vector<64x256xf32>
    %c250_i32_36 = arith.constant 250 : i32
    %156 = tpu.dynamic_rotate %9 by %c250_i32_36 dim 1 : vector<64x256xf32>, i32 -> vector<64x256xf32>
    %c2_i32_37 = arith.constant 2 : i32
    %157 = tpu.dynamic_rotate %9 by %c2_i32_37 dim 1 : vector<64x256xf32>, i32 -> vector<64x256xf32>
    %158 = vector.shape_cast %24 : vector<1x256xi1> to vector<1x256xi1>
    %159 = vector.broadcast %158 : vector<1x256xi1> to vector<64x256xi1>
    %160 = arith.select %159, %156, %157 : vector<64x256xi1>, vector<64x256xf32>
    %161 = arith.mulf %7, %155 : vector<64x256xf32>
    %162 = arith.subf %161, %66 : vector<64x256xf32>
    %163 = math.exp %162 : vector<64x256xf32>
    %164 = arith.addf %148, %163 : vector<64x256xf32>
    %165 = arith.mulf %163, %160 : vector<64x256xf32>
    %166 = arith.addf %150, %165 : vector<64x256xf32>
    %c249_i32 = arith.constant 249 : i32
    %167 = tpu.dynamic_rotate %8 by %c249_i32 dim 1 : vector<64x256xf32>, i32 -> vector<64x256xf32>
    %c1_i32_38 = arith.constant 1 : i32
    %168 = tpu.dynamic_rotate %8 by %c1_i32_38 dim 1 : vector<64x256xf32>, i32 -> vector<64x256xf32>
    %169 = vector.shape_cast %26 : vector<1x256xi1> to vector<1x256xi1>
    %170 = vector.broadcast %169 : vector<1x256xi1> to vector<64x256xi1>
    %171 = arith.select %170, %167, %168 : vector<64x256xi1>, vector<64x256xf32>
    %c249_i32_39 = arith.constant 249 : i32
    %172 = tpu.dynamic_rotate %9 by %c249_i32_39 dim 1 : vector<64x256xf32>, i32 -> vector<64x256xf32>
    %c1_i32_40 = arith.constant 1 : i32
    %173 = tpu.dynamic_rotate %9 by %c1_i32_40 dim 1 : vector<64x256xf32>, i32 -> vector<64x256xf32>
    %174 = vector.shape_cast %26 : vector<1x256xi1> to vector<1x256xi1>
    %175 = vector.broadcast %174 : vector<1x256xi1> to vector<64x256xi1>
    %176 = arith.select %175, %172, %173 : vector<64x256xi1>, vector<64x256xf32>
    %177 = arith.mulf %7, %171 : vector<64x256xf32>
    %178 = arith.subf %177, %66 : vector<64x256xf32>
    %179 = math.exp %178 : vector<64x256xf32>
    %180 = arith.addf %164, %179 : vector<64x256xf32>
    %181 = arith.mulf %179, %176 : vector<64x256xf32>
    %182 = arith.addf %166, %181 : vector<64x256xf32>
    %183 = tpu.reciprocal %180 {approx = true} : vector<64x256xf32> -> vector<64x256xf32>
    %184 = arith.mulf %180, %183 : vector<64x256xf32>
    %cst_41 = arith.constant 2.000000e+00 : f32
    %185 = vector.broadcast %cst_41 : f32 to vector<64x256xf32>
    %186 = arith.subf %185, %184 : vector<64x256xf32>
    %187 = arith.mulf %183, %186 : vector<64x256xf32>
    %188 = arith.mulf %182, %187 : vector<64x256xf32>
    %c0_42 = arith.constant 0 : index
    %c0_43 = arith.constant 0 : index
    %189 = vector.load %arg3[%c0_42, %c0_43] : memref<8x64xf32, #tpu.memory_space<vmem>>, vector<8x64xf32>
    %cst_44 = arith.constant dense<0.000000e+00> : vector<8x256xf32>
    %190 = tpu.matmul %189, %188, %cst_44 {dimension_numbers = #tpu.dot_dimension_numbers<[1], [0], [0], [1], [0, 0, 1, 1], [], []>} : vector<8x64xf32>, vector<64x256xf32>, vector<8x256xf32> -> vector<8x256xf32>
    %c0_45 = arith.constant 0 : index
    %c0_46 = arith.constant 0 : index
    %191 = vector.load %arg8[%c0_45, %c0_46] : memref<256x192xf32, #tpu.memory_space<vmem>>, vector<256x192xf32>
    %cst_47 = arith.constant dense<0.000000e+00> : vector<8x192xf32>
    %192 = tpu.matmul %190, %191, %cst_47 {dimension_numbers = #tpu.dot_dimension_numbers<[1], [0], [0], [1], [0, 0, 1, 1], [], []>} : vector<8x256xf32>, vector<256x192xf32>, vector<8x192xf32> -> vector<8x192xf32>
    %c0_48 = arith.constant 0 : index
    %c0_49 = arith.constant 0 : index
    %193 = vector.load %arg9[%c0_48, %c0_49] : memref<1x192xf32, #tpu.memory_space<vmem>>, vector<1x192xf32>
    %194 = vector.broadcast %193 : vector<1x192xf32> to vector<8x192xf32>
    %195 = arith.addf %192, %194 : vector<8x192xf32>
    %c0_50 = arith.constant 0 : index
    %c0_51 = arith.constant 0 : index
    %196 = vector.load %arg6[%c0_50, %c0_51] : memref<256x64xf32, #tpu.memory_space<vmem>>, vector<256x64xf32>
    %cst_52 = arith.constant dense<0.000000e+00> : vector<64x64xf32>
    %197 = tpu.matmul %188, %196, %cst_52 {dimension_numbers = #tpu.dot_dimension_numbers<[1], [0], [0], [1], [0, 0, 1, 1], [], []>} : vector<64x256xf32>, vector<256x64xf32>, vector<64x64xf32> -> vector<64x64xf32>
    %c0_53 = arith.constant 0 : index
    %c0_54 = arith.constant 0 : index
    %198 = vector.load %arg7[%c0_53, %c0_54] : memref<1x64xf32, #tpu.memory_space<vmem>>, vector<1x64xf32>
    %199 = vector.broadcast %198 : vector<1x64xf32> to vector<64x64xf32>
    %200 = arith.addf %197, %199 : vector<64x64xf32>
    %cst_55 = arith.constant dense<0xFF800000> : vector<64xf32>
    %201 = vector.multi_reduction <maximumf>, %200, %cst_55 [1] : vector<64x64xf32> to vector<64xf32>
    %202 = vector.shape_cast %201 : vector<64xf32> to vector<64x1xf32>
    %203 = vector.broadcast %202 : vector<64x1xf32> to vector<64x64xf32>
    %204 = arith.subf %200, %203 : vector<64x64xf32>
    %205 = math.exp %204 : vector<64x64xf32>
    %cst_56 = arith.constant dense<0.000000e+00> : vector<64xf32>
    %206 = vector.multi_reduction <add>, %205, %cst_56 [1] : vector<64x64xf32> to vector<64xf32>
    %207 = vector.shape_cast %206 : vector<64xf32> to vector<64x1xf32>
    %208 = tpu.reciprocal %207 {approx = true} : vector<64x1xf32> -> vector<64x1xf32>
    %209 = arith.mulf %207, %208 : vector<64x1xf32>
    %cst_57 = arith.constant 2.000000e+00 : f32
    %210 = vector.broadcast %cst_57 : f32 to vector<64x1xf32>
    %211 = arith.subf %210, %209 : vector<64x1xf32>
    %212 = arith.mulf %208, %211 : vector<64x1xf32>
    %213 = vector.broadcast %212 : vector<64x1xf32> to vector<64x64xf32>
    %214 = arith.mulf %205, %213 : vector<64x64xf32>
    %215 = vector.extract_strided_slice %195 {offsets = [0, 0], sizes = [8, 64], strides = [1, 1]} : vector<8x192xf32> to vector<8x64xf32>
    %cst_58 = arith.constant dense<0xFF800000> : vector<8xf32>
    %216 = vector.multi_reduction <maximumf>, %215, %cst_58 [1] : vector<8x64xf32> to vector<8xf32>
    %217 = vector.shape_cast %216 : vector<8xf32> to vector<8x1xf32>
    %218 = vector.broadcast %217 : vector<8x1xf32> to vector<8x64xf32>
    %219 = arith.subf %215, %218 : vector<8x64xf32>
    %220 = math.exp %219 : vector<8x64xf32>
    %cst_59 = arith.constant dense<0.000000e+00> : vector<8xf32>
    %221 = vector.multi_reduction <add>, %220, %cst_59 [1] : vector<8x64xf32> to vector<8xf32>
    %222 = vector.shape_cast %221 : vector<8xf32> to vector<8x1xf32>
    %223 = tpu.reciprocal %222 {approx = true} : vector<8x1xf32> -> vector<8x1xf32>
    %224 = arith.mulf %222, %223 : vector<8x1xf32>
    %cst_60 = arith.constant 2.000000e+00 : f32
    %225 = vector.broadcast %cst_60 : f32 to vector<8x1xf32>
    %226 = arith.subf %225, %224 : vector<8x1xf32>
    %227 = arith.mulf %223, %226 : vector<8x1xf32>
    %228 = vector.broadcast %227 : vector<8x1xf32> to vector<8x64xf32>
    %229 = arith.mulf %220, %228 : vector<8x64xf32>
    %230 = vector.extract_strided_slice %195 {offsets = [0, 64], sizes = [8, 64], strides = [1, 1]} : vector<8x192xf32> to vector<8x64xf32>
    %231 = vector.extract_strided_slice %195 {offsets = [0, 128], sizes = [8, 64], strides = [1, 1]} : vector<8x192xf32> to vector<8x64xf32>
    %c0_61 = arith.constant 0 : index
    %c0_62 = arith.constant 0 : index
    %232 = vector.load %arg2[%c0_61, %c0_62] : memref<1x64xf32, #tpu.memory_space<vmem>>, vector<1x64xf32>
    %233 = vector.broadcast %232 : vector<1x64xf32> to vector<8x64xf32>
    %234 = arith.mulf %189, %233 : vector<8x64xf32>
    %cst_63 = arith.constant dense<0.000000e+00> : vector<8x64xf32>
    %235 = tpu.matmul %234, %214, %cst_63 {dimension_numbers = #tpu.dot_dimension_numbers<[1], [0], [0], [1], [0, 0, 1, 1], [], []>} : vector<8x64xf32>, vector<64x64xf32>, vector<8x64xf32> -> vector<8x64xf32>
    %236 = arith.addf %235, %230 : vector<8x64xf32>
    %cst_64 = arith.constant 0.000000e+00 : f32
    %237 = vector.broadcast %cst_64 : f32 to vector<8x64xf32>
    %238 = arith.cmpf ogt, %236, %237 : vector<8x64xf32>
    %cst_65 = arith.constant 0.000000e+00 : f32
    %239 = vector.broadcast %cst_65 : f32 to vector<8x64xf32>
    %240 = arith.minimumf %236, %239 : vector<8x64xf32>
    %241 = math.exp %240 : vector<8x64xf32>
    %cst_66 = arith.constant 1.000000e+00 : f32
    %242 = vector.broadcast %cst_66 : f32 to vector<8x64xf32>
    %243 = arith.subf %241, %242 : vector<8x64xf32>
    %244 = arith.select %238, %236, %243 : vector<8x64xi1>, vector<8x64xf32>
    %245 = arith.mulf %244, %229 : vector<8x64xf32>
    %cst_67 = arith.constant 1.562500e-02 : f32
    %246 = vector.broadcast %cst_67 : f32 to vector<8x64xf32>
    %247 = arith.mulf %231, %246 : vector<8x64xf32>
    %248 = arith.addf %245, %247 : vector<8x64xf32>
    %cst_68 = arith.constant 1.000000e+00 : f32
    %249 = vector.broadcast %cst_68 : f32 to vector<1x64xf32>
    %cst_69 = arith.constant dense<0.000000e+00> : vector<1x8xf32>
    %250 = tpu.matmul %249, %248, %cst_69 {dimension_numbers = #tpu.dot_dimension_numbers<[1], [1], [0], [0], [0, 0, 1, 0], [], []>} : vector<1x64xf32>, vector<8x64xf32>, vector<1x8xf32> -> vector<1x8xf32>
    %251 = vector.shape_cast %250 : vector<1x8xf32> to vector<1x1x8xf32>
    %c0_70 = arith.constant 0 : index
    %c0_71 = arith.constant 0 : index
    %c0_72 = arith.constant 0 : index
    %252 = vector.load %arg10[%c0_70, %c0_71, %c0_72] : memref<1x1x8xf32, #tpu.memory_space<vmem>>, vector<1x1x8xf32>
    tpu.vector_store %arg10[%c0_70, %c0_71, %c0_72], %251 {strides = array<i32>} : memref<1x1x8xf32, #tpu.memory_space<vmem>>, vector<1x1x8xf32>,
    return
  }
  func.func @transform_0(%arg0: i32) -> (i32, i32, i32) {
    %c0_i32 = arith.constant 0 : i32
    %c0_i32_0 = arith.constant 0 : i32
    %c0_i32_1 = arith.constant 0 : i32
    return %arg0, %c0_i32, %c0_i32_0 : i32, i32, i32
  }
  func.func @transform_1(%arg0: i32) -> (i32, i32) {
    %c0_i32 = arith.constant 0 : i32
    %c0_i32_0 = arith.constant 0 : i32
    return %arg0, %c0_i32 : i32, i32
  }
  func.func @transform_2(%arg0: i32) -> (i32, i32) {
    %c0_i32 = arith.constant 0 : i32
    %c0_i32_0 = arith.constant 0 : i32
    %c0_i32_1 = arith.constant 0 : i32
    return %c0_i32, %c0_i32_0 : i32, i32
  }
  func.func @transform_3(%arg0: i32) -> (i32, i32) {
    %c0_i32 = arith.constant 0 : i32
    %c0_i32_0 = arith.constant 0 : i32
    %c0_i32_1 = arith.constant 0 : i32
    return %c0_i32, %c0_i32_0 : i32, i32
  }
  func.func @transform_4(%arg0: i32) -> (i32, i32) {
    %c0_i32 = arith.constant 0 : i32
    %c0_i32_0 = arith.constant 0 : i32
    %c0_i32_1 = arith.constant 0 : i32
    return %c0_i32, %c0_i32_0 : i32, i32
  }
  func.func @transform_5(%arg0: i32) -> (i32, i32) {
    %c0_i32 = arith.constant 0 : i32
    %c0_i32_0 = arith.constant 0 : i32
    %c0_i32_1 = arith.constant 0 : i32
    return %c0_i32, %c0_i32_0 : i32, i32
  }
  func.func @transform_6(%arg0: i32) -> (i32, i32) {
    %c0_i32 = arith.constant 0 : i32
    %c0_i32_0 = arith.constant 0 : i32
    %c0_i32_1 = arith.constant 0 : i32
    return %c0_i32, %c0_i32_0 : i32, i32
  }
  func.func @transform_7(%arg0: i32) -> (i32, i32) {
    %c0_i32 = arith.constant 0 : i32
    %c0_i32_0 = arith.constant 0 : i32
    %c0_i32_1 = arith.constant 0 : i32
    return %c0_i32, %c0_i32_0 : i32, i32
  }
  func.func @transform_8(%arg0: i32) -> (i32, i32) {
    %c0_i32 = arith.constant 0 : i32
    %c0_i32_0 = arith.constant 0 : i32
    %c0_i32_1 = arith.constant 0 : i32
    return %c0_i32, %c0_i32_0 : i32, i32
  }
  func.func @transform_9(%arg0: i32) -> (i32, i32, i32) {
    %c0_i32 = arith.constant 0 : i32
    %c0_i32_0 = arith.constant 0 : i32
    %c0_i32_1 = arith.constant 0 : i32
    return %arg0, %c0_i32, %c0_i32_0 : i32, i32, i32
  }
}

</mosaic_0001>

<llo_original>
// kernel: qmixer_pallas.1
$region0: #{qmixer_pallas.1}
  #allocation0 [shape = 'u32[]', space=smem, size = 0x4, offset = 0x4, fixed_abs, tag = 'smem constant byte address 0x4 - core index']
  #allocation1 [shape = 'u32[144,128]{1,0:T(1,128)}', space=vmem, size = 0x12000, scoped, tag = 'internal scratch']
  %s0 = inlined_call_operand.vmem [shape: f32[8,8,64], index: 0, kind: input, shape index: {}]
  %s1 = inlined_call_operand.vmem [shape: f32[1,64], index: 1, kind: input, shape index: {}]
  %s2 = inlined_call_operand.vmem [shape: f32[8,64], index: 2, kind: input, shape index: {}]
  %s3 = inlined_call_operand.vmem [shape: f32[64,768], index: 3, kind: input, shape index: {}]
  %s4 = inlined_call_operand.vmem [shape: f32[1,768], index: 4, kind: input, shape index: {}]
  %s5 = inlined_call_operand.vmem [shape: f32[256,64], index: 5, kind: input, shape index: {}]
  %s6 = inlined_call_operand.vmem [shape: f32[1,64], index: 6, kind: input, shape index: {}]
  %s7 = inlined_call_operand.vmem [shape: f32[256,192], index: 7, kind: input, shape index: {}]
  %s8 = inlined_call_operand.vmem [shape: f32[1,192], index: 8, kind: input, shape index: {}]
  %s9 = inlined_call_operand.vmem [shape: f32[1,1,8], index: 9, kind: output, shape index: {}]
  %s10 = sld [smem:[#allocation0]]
  $region46: #{qmixer_pallas.1} parent=0
    _
  %s12 = ssub.s32 1, %s10
  %s13 = scalar_select 0, %s12, %s10
  // Predicated region
  $region2: #{qmixer_pallas.1} parent=0 // pred_check
    _
  $region3: #{qmixer_pallas.1} parent=0 // pred_check_branch
    %15 = sbr.rel (0) target = $region5
  $region4: #{qmixer_pallas.1} parent=0 // pred_region
    _
  $region5: #{qmixer_pallas.1} parent=0 // pred_fallthru
    _
  // Predicated region
  $region6: #{qmixer_pallas.1} parent=0 // pred_check
    _
  $region7: #{qmixer_pallas.1} parent=0 // pred_check_branch
    %17 = sbr.rel (0) target = $region9
  $region8: #{qmixer_pallas.1} parent=0 // pred_region
    _
  $region9: #{qmixer_pallas.1} parent=0 // pred_fallthru
    _
  // Predicated region
  $region10: #{qmixer_pallas.1} parent=0 // pred_check
    _
  $region11: #{qmixer_pallas.1} parent=0 // pred_check_branch
    %19 = sbr.rel (0) target = $region13
  $region12: #{qmixer_pallas.1} parent=0 // pred_region
    _
  $region13: #{qmixer_pallas.1} parent=0 // pred_fallthru
    _
  // Predicated region
  $region14: #{qmixer_pallas.1} parent=0 // pred_check
    _
  $region15: #{qmixer_pallas.1} parent=0 // pred_check_branch
    %21 = sbr.rel (0) target = $region17
  $region16: #{qmixer_pallas.1} parent=0 // pred_region
    _
  $region17: #{qmixer_pallas.1} parent=0 // pred_fallthru
    _
  // Predicated region
  $region18: #{qmixer_pallas.1} parent=0 // pred_check
    _
  $region19: #{qmixer_pallas.1} parent=0 // pred_check_branch
    %23 = sbr.rel (0) target = $region21
  $region20: #{qmixer_pallas.1} parent=0 // pred_region
    _
  $region21: #{qmixer_pallas.1} parent=0 // pred_fallthru
    _
  // Predicated region
  $region22: #{qmixer_pallas.1} parent=0 // pred_check
    _
  $region23: #{qmixer_pallas.1} parent=0 // pred_check_branch
    %25 = sbr.rel (0) target = $region25
  $region24: #{qmixer_pallas.1} parent=0 // pred_region
    _
  $region25: #{qmixer_pallas.1} parent=0 // pred_fallthru
    _
  // Predicated region
  $region26: #{qmixer_pallas.1} parent=0 // pred_check
    _
  $region27: #{qmixer_pallas.1} parent=0 // pred_check_branch
    %27 = sbr.rel (0) target = $region29
  $region28: #{qmixer_pallas.1} parent=0 // pred_region
    _
  $region29: #{qmixer_pallas.1} parent=0 // pred_fallthru
    _
  // Predicated region
  $region30: #{qmixer_pallas.1} parent=0 // pred_check
    _
  $region31: #{qmixer_pallas.1} parent=0 // pred_check_branch
    %29 = sbr.rel (0) target = $region33
  $region32: #{qmixer_pallas.1} parent=0 // pred_region
    _
  $region33: #{qmixer_pallas.1} parent=0 // pred_fallthru
    _
  // Predicated region
  $region34: #{qmixer_pallas.1} parent=0 // pred_check
    _
  $region35: #{qmixer_pallas.1} parent=0 // pred_check_branch
    %31 = sbr.rel (0) target = $region37
  $region36: #{qmixer_pallas.1} parent=0 // pred_region
    _
  $region37: #{qmixer_pallas.1} parent=0 // pred_fallthru
    _
  %v32 = vld [vmem:[%s0] sm:$0xff]
  %v33 = vld [vmem:[%s0 + $0x8] sm:$0xff]
  %v34 = vld [vmem:[%s0 + $0x10] sm:$0xff]
  %v35 = vld [vmem:[%s0 + $0x18] sm:$0xff]
  %v36 = vld [vmem:[%s0 + $0x20] sm:$0xff]
  %v37 = vld [vmem:[%s0 + $0x28] sm:$0xff]
  %v38 = vld [vmem:[%s0 + $0x30] sm:$0xff]
  %v39 = vld [vmem:[%s0 + $0x38] sm:$0xff]
  %v40 = vld [vmem:[%s3] sm:$0xff]
  %v41 = vld [vmem:[%s3 + $0x8] sm:$0xff]
  %v42 = vld [vmem:[%s3 + $0x10] sm:$0xff]
  %v43 = vld [vmem:[%s3 + $0x18] sm:$0xff]
  %v44 = vld [vmem:[%s3 + $0x20] sm:$0xff]
  %v45 = vld [vmem:[%s3 + $0x28] sm:$0xff]
  %v46 = vld [vmem:[%s3 + $0x30] sm:$0xff]
  %v47 = vld [vmem:[%s3 + $0x38] sm:$0xff]
  %v48 = vld [vmem:[%s3 + $0x40] sm:$0xff]
  %v49 = vld [vmem:[%s3 + $0x48] sm:$0xff]
  %v50 = vld [vmem:[%s3 + $0x50] sm:$0xff]
  %v51 = vld [vmem:[%s3 + $0x58] sm:$0xff]
  %v52 = vld [vmem:[%s3 + $0x60] sm:$0xff]
  %v53 = vld [vmem:[%s3 + $0x68] sm:$0xff]
  %v54 = vld [vmem:[%s3 + $0x70] sm:$0xff]
  %v55 = vld [vmem:[%s3 + $0x78] sm:$0xff]
  %v56 = vld [vmem:[%s3 + $0x80] sm:$0xff]
  %v57 = vld [vmem:[%s3 + $0x88] sm:$0xff]
  %v58 = vld [vmem:[%s3 + $0x90] sm:$0xff]
  %v59 = vld [vmem:[%s3 + $0x98] sm:$0xff]
  %v60 = vld [vmem:[%s3 + $0xa0] sm:$0xff]
  %v61 = vld [vmem:[%s3 + $0xa8] sm:$0xff]
  %v62 = vld [vmem:[%s3 + $0xb0] sm:$0xff]
  %v63 = vld [vmem:[%s3 + $0xb8] sm:$0xff]
  %v64 = vld [vmem:[%s3 + $0xc0] sm:$0xff]
  %v65 = vld [vmem:[%s3 + $0xc8] sm:$0xff]
  %v66 = vld [vmem:[%s3 + $0xd0] sm:$0xff]
  %v67 = vld [vmem:[%s3 + $0xd8] sm:$0xff]
  %v68 = vld [vmem:[%s3 + $0xe0] sm:$0xff]
  %v69 = vld [vmem:[%s3 + $0xe8] sm:$0xff]
  %v70 = vld [vmem:[%s3 + $0xf0] sm:$0xff]
  %v71 = vld [vmem:[%s3 + $0xf8] sm:$0xff]
  %v72 = vld [vmem:[%s3 + $0x100] sm:$0xff]
  %v73 = vld [vmem:[%s3 + $0x108] sm:$0xff]
  %v74 = vld [vmem:[%s3 + $0x110] sm:$0xff]
  %v75 = vld [vmem:[%s3 + $0x118] sm:$0xff]
  %v76 = vld [vmem:[%s3 + $0x120] sm:$0xff]
  %v77 = vld [vmem:[%s3 + $0x128] sm:$0xff]
  %v78 = vld [vmem:[%s3 + $0x130] sm:$0xff]
  %v79 = vld [vmem:[%s3 + $0x138] sm:$0xff]
  %v80 = vld [vmem:[%s3 + $0x140] sm:$0xff]
  %v81 = vld [vmem:[%s3 + $0x148] sm:$0xff]
  %v82 = vld [vmem:[%s3 + $0x150] sm:$0xff]
  %v83 = vld [vmem:[%s3 + $0x158] sm:$0xff]
  %v84 = vld [vmem:[%s3 + $0x160] sm:$0xff]
  %v85 = vld [vmem:[%s3 + $0x168] sm:$0xff]
  %v86 = vld [vmem:[%s3 + $0x170] sm:$0xff]
  %v87 = vld [vmem:[%s3 + $0x178] sm:$0xff]
  %v88 = vld [vmem:[%s4] sm:$0x3f]
  %v90 = vlaneseq
  %v91 = vshrl.u32 %v90, 7
  %v92 = vsub.s32 0, %v91
  %v93 = vrot.slane %v88, %v92
  %v94 = vlaneseq
  %v95 = vshrl.u32 %v94, 7
  %v96 = vsub.s32 1, %v95
  %v97 = vrot.slane %v88, %v96
  %v98 = vlaneseq
  %v99 = vshrl.u32 %v98, 7
  %v100 = vsub.s32 2, %v99
  %v101 = vrot.slane %v88, %v100
  %v102 = vlaneseq
  %v103 = vshrl.u32 %v102, 7
  %v104 = vsub.s32 3, %v103
  %v105 = vrot.slane %v88, %v104
  %v106 = vlaneseq
  %v107 = vshrl.u32 %v106, 7
  %v108 = vsub.s32 4, %v107
  %v109 = vrot.slane %v88, %v108
  %v110 = vlaneseq
  %v111 = vshrl.u32 %v110, 7
  %v112 = vsub.s32 5, %v111
  %v113 = vrot.slane %v88, %v112
  %vm120 = vcmask 523264
  %v122 = vsel %vm120, %v32, 0
  %v125 = vsel %vm120, %v33, 0
  %v128 = vsel %vm120, %v34, 0
  %v131 = vsel %vm120, %v35, 0
  %v134 = vsel %vm120, %v36, 0
  %v137 = vsel %vm120, %v37, 0
  %v140 = vsel %vm120, %v38, 0
  %v143 = vsel %vm120, %v39, 0
  %145 = vmatprep.subr.mxu0 0.0
  %146 = vmatpush1.msra.mxu0 0.0
  %147 = vmatprep.subr.mxu0 0.0
  %148 = vmatpush1.msra.mxu0 0.0
  %149 = vmatprep.subr.mxu0 0.0
  %150 = vmatpush1.msra.mxu0 0.0
  %151 = vmatprep.subr.mxu0 0.0
  %152 = vmatpush1.msra.mxu0 0.0
  %153 = vmatprep.subr.mxu0 0.0
  %154 = vmatpush1.msra.mxu0 0.0
  %155 = vmatprep.subr.mxu0 0.0
  %156 = vmatpush1.msra.mxu0 0.0
  %157 = vmatprep.subr.mxu0 0.0
  %158 = vmatpush1.msra.mxu0 0.0
  %159 = vmatprep.subr.mxu0 0.0
  %160 = vmatpush1.msra.mxu0 0.0
  %161 = vmatprep.subr.mxu0 %v83
  %162 = vmatpush1.msra.mxu0 %v82
  %163 = vmatprep.subr.mxu0 %v77
  %164 = vmatpush1.msra.mxu0 %v76
  %165 = vmatprep.subr.mxu0 %v71
  %166 = vmatpush1.msra.mxu0 %v70
  %167 = vmatprep.subr.mxu0 %v65
  %168 = vmatpush1.msra.mxu0 %v64
  %169 = vmatprep.subr.mxu0 %v59
  %170 = vmatpush1.msra.mxu0 %v58
  %171 = vmatprep.subr.mxu0 %v53
  %172 = vmatpush1.msra.mxu0 %v52
  %173 = vmatprep.subr.mxu0 %v47
  %174 = vmatpush1.msra.mxu0 %v46
  %175 = vmatprep.subr.mxu0 %v41
  %176 = vmatpush1.msra.mxu0 %v40
  %177 = vmatprep.subr.mxu0 0.0
  %178 = vmatpush2.msra.mxu0 0.0
  %179 = vmatprep.subr.mxu0 0.0
  %180 = vmatpush2.msra.mxu0 0.0
  %181 = vmatprep.subr.mxu0 0.0
  %182 = vmatpush2.msra.mxu0 0.0
  %183 = vmatprep.subr.mxu0 0.0
  %184 = vmatpush2.msra.mxu0 0.0
  %185 = vmatprep.subr.mxu0 0.0
  %186 = vmatpush2.msra.mxu0 0.0
  %187 = vmatprep.subr.mxu0 0.0
  %188 = vmatpush2.msra.mxu0 0.0
  %189 = vmatprep.subr.mxu0 0.0
  %190 = vmatpush2.msra.mxu0 0.0
  %191 = vmatprep.subr.mxu0 0.0
  %192 = vmatpush2.msra.mxu0 0.0
  %193 = vmatprep.subr.mxu0 0.0
  %194 = vmatpush2.msra.mxu0 0.0
  %195 = vmatprep.subr.mxu0 0.0
  %196 = vmatpush2.msra.mxu0 0.0
  %197 = vmatprep.subr.mxu0 0.0
  %198 = vmatpush2.msra.mxu0 0.0
  %199 = vmatprep.subr.mxu0 0.0
  %200 = vmatpush2.msra.mxu0 0.0
  %201 = vmatprep.subr.mxu0 0.0
  %202 = vmatpush2.msra.mxu0 0.0
  %203 = vmatprep.subr.mxu0 0.0
  %204 = vmatpush2.msra.mxu0 0.0
  %205 = vmatprep.subr.mxu0 0.0
  %206 = vmatpush2.msra.mxu0 0.0
  %207 = vmatprep.subr.mxu0 0.0
  %208 = vmatpush2.msra.mxu0 0.0
  %209 = vmatprep.mubr.f32.mxu0 0.0
  %210 = vmatmul.mubr.f32.gmra.mxu0 %v122
  %v211 = vpop.f32.mrf.mxu0
  %v212 = vadd.f32 %v93, %v211
  %v213 = vpop.f32.mrf.mxu0
  %v214 = vadd.f32 %v97, %v213
  %215 = vmatprep.mubr.f32.mxu0 0.0
  %216 = vmatmul.mubr.f32.gmra.mxu0 %v125
  %v217 = vpop.f32.mrf.mxu0
  %v218 = vadd.f32 %v93, %v217
  %v219 = vpop.f32.mrf.mxu0
  %v220 = vadd.f32 %v97, %v219
  %221 = vmatprep.mubr.f32.mxu0 0.0
  %222 = vmatmul.mubr.f32.gmra.mxu0 %v128
  %v223 = vpop.f32.mrf.mxu0
  %v224 = vadd.f32 %v93, %v223
  %v225 = vpop.f32.mrf.mxu0
  %v226 = vadd.f32 %v97, %v225
  %227 = vmatprep.mubr.f32.mxu0 0.0
  %228 = vmatmul.mubr.f32.gmra.mxu0 %v131
  %v229 = vpop.f32.mrf.mxu0
  %v230 = vadd.f32 %v93, %v229
  %v231 = vpop.f32.mrf.mxu0
  %v232 = vadd.f32 %v97, %v231
  %233 = vmatprep.mubr.f32.mxu0 0.0
  %234 = vmatmul.mubr.f32.gmra.mxu0 %v134
  %v235 = vpop.f32.mrf.mxu0
  %v236 = vadd.f32 %v93, %v235
  %v237 = vpop.f32.mrf.mxu0
  %v238 = vadd.f32 %v97, %v237
  %239 = vmatprep.mubr.f32.mxu0 0.0
  %240 = vmatmul.mubr.f32.gmra.mxu0 %v137
  %v241 = vpop.f32.mrf.mxu0
  %v242 = vadd.f32 %v93, %v241
  %v243 = vpop.f32.mrf.mxu0
  %v244 = vadd.f32 %v97, %v243
  %245 = vmatprep.mubr.f32.mxu0 0.0
  %246 = vmatmul.mubr.f32.gmra.mxu0 %v140
  %v247 = vpop.f32.mrf.mxu0
  %v248 = vadd.f32 %v93, %v247
  %v249 = vpop.f32.mrf.mxu0
  %v250 = vadd.f32 %v97, %v249
  %251 = vmatprep.mubr.f32.mxu0 0.0
  %252 = vmatmul.mubr.f32.gmra.mxu0 %v143
  %v253 = vpop.f32.mrf.mxu0
  %v254 = vadd.f32 %v93, %v253
  %v255 = vpop.f32.mrf.mxu0
  %v256 = vadd.f32 %v97, %v255
  %257 = vdwg.mxu0
  %258 = vmatprep.subr.mxu0 0.0
  %259 = vmatpush1.msra.mxu0 0.0
  %260 = vmatprep.subr.mxu0 0.0
  %261 = vmatpush1.msra.mxu0 0.0
  %262 = vmatprep.subr.mxu0 0.0
  %263 = vmatpush1.msra.mxu0 0.0
  %264 = vmatprep.subr.mxu0 0.0
  %265 = vmatpush1.msra.mxu0 0.0
  %266 = vmatprep.subr.mxu0 0.0
  %267 = vmatpush1.msra.mxu0 0.0
  %268 = vmatprep.subr.mxu0 0.0
  %269 = vmatpush1.msra.mxu0 0.0
  %270 = vmatprep.subr.mxu0 0.0
  %271 = vmatpush1.msra.mxu0 0.0
  %272 = vmatprep.subr.mxu0 0.0
  %273 = vmatpush1.msra.mxu0 0.0
  %274 = vmatprep.subr.mxu0 %v85
  %275 = vmatpush1.msra.mxu0 %v84
  %276 = vmatprep.subr.mxu0 %v79
  %277 = vmatpush1.msra.mxu0 %v78
  %278 = vmatprep.subr.mxu0 %v73
  %279 = vmatpush1.msra.mxu0 %v72
  %280 = vmatprep.subr.mxu0 %v67
  %281 = vmatpush1.msra.mxu0 %v66
  %282 = vmatprep.subr.mxu0 %v61
  %283 = vmatpush1.msra.mxu0 %v60
  %284 = vmatprep.subr.mxu0 %v55
  %285 = vmatpush1.msra.mxu0 %v54
  %286 = vmatprep.subr.mxu0 %v49
  %287 = vmatpush1.msra.mxu0 %v48
  %288 = vmatprep.subr.mxu0 %v43
  %289 = vmatpush1.msra.mxu0 %v42
  %290 = vmatprep.subr.mxu0 0.0
  %291 = vmatpush2.msra.mxu0 0.0
  %292 = vmatprep.subr.mxu0 0.0
  %293 = vmatpush2.msra.mxu0 0.0
  %294 = vmatprep.subr.mxu0 0.0
  %295 = vmatpush2.msra.mxu0 0.0
  %296 = vmatprep.subr.mxu0 0.0
  %297 = vmatpush2.msra.mxu0 0.0
  %298 = vmatprep.subr.mxu0 0.0
  %299 = vmatpush2.msra.mxu0 0.0
  %300 = vmatprep.subr.mxu0 0.0
  %301 = vmatpush2.msra.mxu0 0.0
  %302 = vmatprep.subr.mxu0 0.0
  %303 = vmatpush2.msra.mxu0 0.0
  %304 = vmatprep.subr.mxu0 0.0
  %305 = vmatpush2.msra.mxu0 0.0
  %306 = vmatprep.subr.mxu0 0.0
  %307 = vmatpush2.msra.mxu0 0.0
  %308 = vmatprep.subr.mxu0 0.0
  %309 = vmatpush2.msra.mxu0 0.0
  %310 = vmatprep.subr.mxu0 0.0
  %311 = vmatpush2.msra.mxu0 0.0
  %312 = vmatprep.subr.mxu0 0.0
  %313 = vmatpush2.msra.mxu0 0.0
  %314 = vmatprep.subr.mxu0 0.0
  %315 = vmatpush2.msra.mxu0 0.0
  %316 = vmatprep.subr.mxu0 0.0
  %317 = vmatpush2.msra.mxu0 0.0
  %318 = vmatprep.subr.mxu0 0.0
  %319 = vmatpush2.msra.mxu0 0.0
  %320 = vmatprep.subr.mxu0 0.0
  %321 = vmatpush2.msra.mxu0 0.0
  %322 = vmatprep.mubr.f32.mxu0 0.0
  %323 = vmatmul.mubr.f32.gmra.mxu0 %v122
  %v324 = vpop.f32.mrf.mxu0
  %v325 = vadd.f32 %v101, %v324
  %v326 = vpop.f32.mrf.mxu0
  %v327 = vadd.f32 %v105, %v326
  %328 = vmatprep.mubr.f32.mxu0 0.0
  %329 = vmatmul.mubr.f32.gmra.mxu0 %v125
  %v330 = vpop.f32.mrf.mxu0
  %v331 = vadd.f32 %v101, %v330
  %v332 = vpop.f32.mrf.mxu0
  %v333 = vadd.f32 %v105, %v332
  %334 = vmatprep.mubr.f32.mxu0 0.0
  %335 = vmatmul.mubr.f32.gmra.mxu0 %v128
  %v336 = vpop.f32.mrf.mxu0
  %v337 = vadd.f32 %v101, %v336
  %v338 = vpop.f32.mrf.mxu0
  %v339 = vadd.f32 %v105, %v338
  %340 = vmatprep.mubr.f32.mxu0 0.0
  %341 = vmatmul.mubr.f32.gmra.mxu0 %v131
  %v342 = vpop.f32.mrf.mxu0
  %v343 = vadd.f32 %v101, %v342
  %v344 = vpop.f32.mrf.mxu0
  %v345 = vadd.f32 %v105, %v344
  %346 = vmatprep.mubr.f32.mxu0 0.0
  %347 = vmatmul.mubr.f32.gmra.mxu0 %v134
  %v348 = vpop.f32.mrf.mxu0
  %v349 = vadd.f32 %v101, %v348
  %v350 = vpop.f32.mrf.mxu0
  %v351 = vadd.f32 %v105, %v350
  %352 = vmatprep.mubr.f32.mxu0 0.0
  %353 = vmatmul.mubr.f32.gmra.mxu0 %v137
  %v354 = vpop.f32.mrf.mxu0
  %v355 = vadd.f32 %v101, %v354
  %v356 = vpop.f32.mrf.mxu0
  %v357 = vadd.f32 %v105, %v356
  %358 = vmatprep.mubr.f32.mxu0 0.0
  %359 = vmatmul.mubr.f32.gmra.mxu0 %v140
  %v360 = vpop.f32.mrf.mxu0
  %v361 = vadd.f32 %v101, %v360
  %v362 = vpop.f32.mrf.mxu0
  %v363 = vadd.f32 %v105, %v362
  %364 = vmatprep.mubr.f32.mxu0 0.0
  %365 = vmatmul.mubr.f32.gmra.mxu0 %v143
  %v366 = vpop.f32.mrf.mxu0
  %v367 = vadd.f32 %v101, %v366
  %v368 = vpop.f32.mrf.mxu0
  %v369 = vadd.f32 %v105, %v368
  %370 = vdwg.mxu0
  %371 = vmatprep.subr.mxu0 0.0
  %372 = vmatpush1.msra.mxu0 0.0
  %373 = vmatprep.subr.mxu0 0.0
  %374 = vmatpush1.msra.mxu0 0.0
  %375 = vmatprep.subr.mxu0 0.0
  %376 = vmatpush1.msra.mxu0 0.0
  %377 = vmatprep.subr.mxu0 0.0
  %378 = vmatpush1.msra.mxu0 0.0
  %379 = vmatprep.subr.mxu0 0.0
  %380 = vmatpush1.msra.mxu0 0.0
  %381 = vmatprep.subr.mxu0 0.0
  %382 = vmatpush1.msra.mxu0 0.0
  %383 = vmatprep.subr.mxu0 0.0
  %384 = vmatpush1.msra.mxu0 0.0
  %385 = vmatprep.subr.mxu0 0.0
  %386 = vmatpush1.msra.mxu0 0.0
  %387 = vmatprep.subr.mxu0 %v87
  %388 = vmatpush1.msra.mxu0 %v86
  %389 = vmatprep.subr.mxu0 %v81
  %390 = vmatpush1.msra.mxu0 %v80
  %391 = vmatprep.subr.mxu0 %v75
  %392 = vmatpush1.msra.mxu0 %v74
  %393 = vmatprep.subr.mxu0 %v69
  %394 = vmatpush1.msra.mxu0 %v68
  %395 = vmatprep.subr.mxu0 %v63
  %396 = vmatpush1.msra.mxu0 %v62
  %397 = vmatprep.subr.mxu0 %v57
  %398 = vmatpush1.msra.mxu0 %v56
  %399 = vmatprep.subr.mxu0 %v51
  %400 = vmatpush1.msra.mxu0 %v50
  %401 = vmatprep.subr.mxu0 %v45
  %402 = vmatpush1.msra.mxu0 %v44
  %403 = vmatprep.subr.mxu0 0.0
  %404 = vmatpush2.msra.mxu0 0.0
  %405 = vmatprep.subr.mxu0 0.0
  %406 = vmatpush2.msra.mxu0 0.0
  %407 = vmatprep.subr.mxu0 0.0
  %408 = vmatpush2.msra.mxu0 0.0
  %409 = vmatprep.subr.mxu0 0.0
  %410 = vmatpush2.msra.mxu0 0.0
  %411 = vmatprep.subr.mxu0 0.0
  %412 = vmatpush2.msra.mxu0 0.0
  %413 = vmatprep.subr.mxu0 0.0
  %414 = vmatpush2.msra.mxu0 0.0
  %415 = vmatprep.subr.mxu0 0.0
  %416 = vmatpush2.msra.mxu0 0.0
  %417 = vmatprep.subr.mxu0 0.0
  %418 = vmatpush2.msra.mxu0 0.0
  %419 = vmatprep.subr.mxu0 0.0
  %420 = vmatpush2.msra.mxu0 0.0
  %421 = vmatprep.subr.mxu0 0.0
  %422 = vmatpush2.msra.mxu0 0.0
  %423 = vmatprep.subr.mxu0 0.0
  %424 = vmatpush2.msra.mxu0 0.0
  %425 = vmatprep.subr.mxu0 0.0
  %426 = vmatpush2.msra.mxu0 0.0
  %427 = vmatprep.subr.mxu0 0.0
  %428 = vmatpush2.msra.mxu0 0.0
  %429 = vmatprep.subr.mxu0 0.0
  %430 = vmatpush2.msra.mxu0 0.0
  %431 = vmatprep.subr.mxu0 0.0
  %432 = vmatpush2.msra.mxu0 0.0
  %433 = vmatprep.subr.mxu0 0.0
  %434 = vmatpush2.msra.mxu0 0.0
  %435 = vmatprep.mubr.f32.mxu0 0.0
  %436 = vmatmul.mubr.f32.gmra.mxu0 %v122
  %v437 = vpop.f32.mrf.mxu0
  %v438 = vadd.f32 %v109, %v437
  %v439 = vpop.f32.mrf.mxu0
  %v440 = vadd.f32 %v113, %v439
  %441 = vmatprep.mubr.f32.mxu0 0.0
  %442 = vmatmul.mubr.f32.gmra.mxu0 %v125
  %v443 = vpop.f32.mrf.mxu0
  %v444 = vadd.f32 %v109, %v443
  %v445 = vpop.f32.mrf.mxu0
  %v446 = vadd.f32 %v113, %v445
  %447 = vmatprep.mubr.f32.mxu0 0.0
  %448 = vmatmul.mubr.f32.gmra.mxu0 %v128
  %v449 = vpop.f32.mrf.mxu0
  %v450 = vadd.f32 %v109, %v449
  %v451 = vpop.f32.mrf.mxu0
  %v452 = vadd.f32 %v113, %v451
  %453 = vmatprep.mubr.f32.mxu0 0.0
  %454 = vmatmul.mubr.f32.gmra.mxu0 %v131
  %v455 = vpop.f32.mrf.mxu0
  %v456 = vadd.f32 %v109, %v455
  %v457 = vpop.f32.mrf.mxu0
  %v458 = vadd.f32 %v113, %v457
  %459 = vmatprep.mubr.f32.mxu0 0.0
  %460 = vmatmul.mubr.f32.gmra.mxu0 %v134
  %v461 = vpop.f32.mrf.mxu0
  %v462 = vadd.f32 %v109, %v461
  %v463 = vpop.f32.mrf.mxu0
  %v464 = vadd.f32 %v113, %v463
  %465 = vmatprep.mubr.f32.mxu0 0.0
  %466 = vmatmul.mubr.f32.gmra.mxu0 %v137
  %v467 = vpop.f32.mrf.mxu0
  %v468 = vadd.f32 %v109, %v467
  %v469 = vpop.f32.mrf.mxu0
  %v470 = vadd.f32 %v113, %v469
  %471 = vmatprep.mubr.f32.mxu0 0.0
  %472 = vmatmul.mubr.f32.gmra.mxu0 %v140
  %v473 = vpop.f32.mrf.mxu0
  %v474 = vadd.f32 %v109, %v473
  %v475 = vpop.f32.mrf.mxu0
  %v476 = vadd.f32 %v113, %v475
  %477 = vmatprep.mubr.f32.mxu0 0.0
  %478 = vmatmul.mubr.f32.gmra.mxu0 %v143
  %v479 = vpop.f32.mrf.mxu0
  %v480 = vadd.f32 %v109, %v479
  %v481 = vpop.f32.mrf.mxu0
  %v482 = vadd.f32 %v113, %v481
  %483 = vdwg.mxu0
  %v484 = vlaneseq
  %v485 = vand.u32 %v484, 127
  %v486 = vadd.s32 %v485, 128
  %v487 = vand.u32 %v485, 7
  %v488 = vand.u32 %v486, 7
  %vm489 = vcmp.lt.s32.totalorder %v487, 7
  %vm490 = vcmp.lt.s32.totalorder %v488, 7
  %vm491 = vcmp.lt.s32.totalorder %v487, 6
  %vm492 = vcmp.lt.s32.totalorder %v488, 6
  %vm493 = vcmp.lt.s32.totalorder %v487, 5
  %vm494 = vcmp.lt.s32.totalorder %v488, 5
  %vm495 = vcmp.lt.s32.totalorder %v487, 4
  %vm496 = vcmp.lt.s32.totalorder %v488, 4
  %vm497 = vcmp.lt.s32.totalorder %v487, 3
  %vm498 = vcmp.lt.s32.totalorder %v488, 3
  %vm499 = vcmp.lt.s32.totalorder %v487, 2
  %vm500 = vcmp.lt.s32.totalorder %v488, 2
  %vm501 = vcmp.lt.s32.totalorder %v487, 1
  %vm502 = vcmp.lt.s32.totalorder %v488, 1
  %503 = vrot.lane.b32.xlu0 %v325, 124
  %v504 = vpop.permute.xlu0 %503
  %505 = vrot.lane.b32.xlu0 %v331, 124
  %v506 = vpop.permute.xlu0 %505
  %507 = vrot.lane.b32.xlu0 %v337, 124
  %v508 = vpop.permute.xlu0 %507
  %509 = vrot.lane.b32.xlu0 %v343, 124
  %v510 = vpop.permute.xlu0 %509
  %511 = vrot.lane.b32.xlu0 %v349, 124
  %v512 = vpop.permute.xlu0 %511
  %513 = vrot.lane.b32.xlu0 %v355, 124
  %v514 = vpop.permute.xlu0 %513
  %515 = vrot.lane.b32.xlu0 %v361, 124
  %v516 = vpop.permute.xlu0 %515
  %517 = vrot.lane.b32.xlu0 %v367, 124
  %v518 = vpop.permute.xlu0 %517
  %519 = vrot.lane.b32.xlu0 %v327, 124
  %v520 = vpop.permute.xlu0 %519
  %521 = vrot.lane.b32.xlu0 %v333, 124
  %v522 = vpop.permute.xlu0 %521
  %523 = vrot.lane.b32.xlu0 %v339, 124
  %v524 = vpop.permute.xlu0 %523
  %525 = vrot.lane.b32.xlu0 %v345, 124
  %v526 = vpop.permute.xlu0 %525
  %527 = vrot.lane.b32.xlu0 %v351, 124
  %v528 = vpop.permute.xlu0 %527
  %529 = vrot.lane.b32.xlu0 %v357, 124
  %v530 = vpop.permute.xlu0 %529
  %531 = vrot.lane.b32.xlu0 %v363, 124
  %v532 = vpop.permute.xlu0 %531
  %533 = vrot.lane.b32.xlu0 %v369, 124
  %v534 = vpop.permute.xlu0 %533
  %vm535 = vcmp.lt.s32.totalorder %v485, 124
  %v536 = vsel %vm535, %v504, %v520
  %v537 = vsel %vm535, %v506, %v522
  %v538 = vsel %vm535, %v508, %v524
  %v539 = vsel %vm535, %v510, %v526
  %v540 = vsel %vm535, %v512, %v528
  %v541 = vsel %vm535, %v514, %v530
  %v542 = vsel %vm535, %v516, %v532
  %v543 = vsel %vm535, %v518, %v534
  %v544 = vsel %vm535, %v520, %v504
  %v545 = vsel %vm535, %v522, %v506
  %v546 = vsel %vm535, %v524, %v508
  %v547 = vsel %vm535, %v526, %v510
  %v548 = vsel %vm535, %v528, %v512
  %v549 = vsel %vm535, %v530, %v514
  %v550 = vsel %vm535, %v532, %v516
  %v551 = vsel %vm535, %v534, %v518
  %552 = vrot.lane.b32.xlu0 %v325, 4
  %v553 = vpop.permute.xlu0 %552
  %554 = vrot.lane.b32.xlu0 %v331, 4
  %v555 = vpop.permute.xlu0 %554
  %556 = vrot.lane.b32.xlu0 %v337, 4
  %v557 = vpop.permute.xlu0 %556
  %558 = vrot.lane.b32.xlu0 %v343, 4
  %v559 = vpop.permute.xlu0 %558
  %560 = vrot.lane.b32.xlu0 %v349, 4
  %v561 = vpop.permute.xlu0 %560
  %562 = vrot.lane.b32.xlu0 %v355, 4
  %v563 = vpop.permute.xlu0 %562
  %564 = vrot.lane.b32.xlu0 %v361, 4
  %v565 = vpop.permute.xlu0 %564
  %566 = vrot.lane.b32.xlu0 %v367, 4
  %v567 = vpop.permute.xlu0 %566
  %568 = vrot.lane.b32.xlu0 %v327, 4
  %v569 = vpop.permute.xlu0 %568
  %570 = vrot.lane.b32.xlu0 %v333, 4
  %v571 = vpop.permute.xlu0 %570
  %572 = vrot.lane.b32.xlu0 %v339, 4
  %v573 = vpop.permute.xlu0 %572
  %574 = vrot.lane.b32.xlu0 %v345, 4
  %v575 = vpop.permute.xlu0 %574
  %576 = vrot.lane.b32.xlu0 %v351, 4
  %v577 = vpop.permute.xlu0 %576
  %578 = vrot.lane.b32.xlu0 %v357, 4
  %v579 = vpop.permute.xlu0 %578
  %580 = vrot.lane.b32.xlu0 %v363, 4
  %v581 = vpop.permute.xlu0 %580
  %582 = vrot.lane.b32.xlu0 %v369, 4
  %v583 = vpop.permute.xlu0 %582
  %vm584 = vcmp.lt.s32.totalorder %v485, 4
  %v585 = vsel %vm584, %v553, %v569
  %v586 = vsel %vm584, %v555, %v571
  %v587 = vsel %vm584, %v557, %v573
  %v588 = vsel %vm584, %v559, %v575
  %v589 = vsel %vm584, %v561, %v577
  %v590 = vsel %vm584, %v563, %v579
  %v591 = vsel %vm584, %v565, %v581
  %v592 = vsel %vm584, %v567, %v583
  %v593 = vsel %vm584, %v569, %v553
  %v594 = vsel %vm584, %v571, %v555
  %v595 = vsel %vm584, %v573, %v557
  %v596 = vsel %vm584, %v575, %v559
  %v597 = vsel %vm584, %v577, %v561
  %v598 = vsel %vm584, %v579, %v563
  %v599 = vsel %vm584, %v581, %v565
  %v600 = vsel %vm584, %v583, %v567
  %v601 = vsel %vm495, 1, 0
  %v602 = vsel %vm496, 1, 0
  %vm603 = vcmp.eq.s32.totalorder %v601, 1
  %vm604 = vcmp.eq.s32.totalorder %v602, 1
  %v605 = vsel %vm603, %v536, %v593
  %v606 = vsel %vm604, %v544, %v585
  %v607 = vsel %vm603, %v537, %v594
  %v608 = vsel %vm604, %v545, %v586
  %v609 = vsel %vm603, %v538, %v595
  %v610 = vsel %vm604, %v546, %v587
  %v611 = vsel %vm603, %v539, %v596
  %v612 = vsel %vm604, %v547, %v588
  %v613 = vsel %vm603, %v540, %v597
  %v614 = vsel %vm604, %v548, %v589
  %v615 = vsel %vm603, %v541, %v598
  %v616 = vsel %vm604, %v549, %v590
  %v617 = vsel %vm603, %v542, %v599
  %v618 = vsel %vm604, %v550, %v591
  %v619 = vsel %vm603, %v543, %v600
  %v620 = vsel %vm604, %v551, %v592
  %v621 = vmax.f32 %v325, %v605
  %v622 = vmax.f32 %v327, %v606
  %v623 = vmax.f32 %v331, %v607
  %v624 = vmax.f32 %v333, %v608
  %v625 = vmax.f32 %v337, %v609
  %v626 = vmax.f32 %v339, %v610
  %v627 = vmax.f32 %v343, %v611
  %v628 = vmax.f32 %v345, %v612
  %v629 = vmax.f32 %v349, %v613
  %v630 = vmax.f32 %v351, %v614
  %v631 = vmax.f32 %v355, %v615
  %v632 = vmax.f32 %v357, %v616
  %v633 = vmax.f32 %v361, %v617
  %v634 = vmax.f32 %v363, %v618
  %v635 = vmax.f32 %v367, %v619
  %v636 = vmax.f32 %v369, %v620
  %v637 = vmin.f32 %v325, %v605
  %v638 = vmin.f32 %v327, %v606
  %v639 = vmin.f32 %v331, %v607
  %v640 = vmin.f32 %v333, %v608
  %v641 = vmin.f32 %v337, %v609
  %v642 = vmin.f32 %v339, %v610
  %v643 = vmin.f32 %v343, %v611
  %v644 = vmin.f32 %v345, %v612
  %v645 = vmin.f32 %v349, %v613
  %v646 = vmin.f32 %v351, %v614
  %v647 = vmin.f32 %v355, %v615
  %v648 = vmin.f32 %v357, %v616
  %v649 = vmin.f32 %v361, %v617
  %v650 = vmin.f32 %v363, %v618
  %v651 = vmin.f32 %v367, %v619
  %v652 = vmin.f32 %v369, %v620
  %653 = vrot.lane.b32.xlu0 %v621, 126
  %v654 = vpop.permute.xlu0 %653
  %655 = vrot.lane.b32.xlu0 %v623, 126
  %v656 = vpop.permute.xlu0 %655
  %657 = vrot.lane.b32.xlu0 %v625, 126
  %v658 = vpop.permute.xlu0 %657
  %659 = vrot.lane.b32.xlu0 %v627, 126
  %v660 = vpop.permute.xlu0 %659
  %661 = vrot.lane.b32.xlu0 %v629, 126
  %v662 = vpop.permute.xlu0 %661
  %663 = vrot.lane.b32.xlu0 %v631, 126
  %v664 = vpop.permute.xlu0 %663
  %665 = vrot.lane.b32.xlu0 %v633, 126
  %v666 = vpop.permute.xlu0 %665
  %667 = vrot.lane.b32.xlu0 %v635, 126
  %v668 = vpop.permute.xlu0 %667
  %669 = vrot.lane.b32.xlu0 %v622, 126
  %v670 = vpop.permute.xlu0 %669
  %671 = vrot.lane.b32.xlu0 %v624, 126
  %v672 = vpop.permute.xlu0 %671
  %673 = vrot.lane.b32.xlu0 %v626, 126
  %v674 = vpop.permute.xlu0 %673
  %675 = vrot.lane.b32.xlu0 %v628, 126
  %v676 = vpop.permute.xlu0 %675
  %677 = vrot.lane.b32.xlu0 %v630, 126
  %v678 = vpop.permute.xlu0 %677
  %679 = vrot.lane.b32.xlu0 %v632, 126
  %v680 = vpop.permute.xlu0 %679
  %681 = vrot.lane.b32.xlu0 %v634, 126
  %v682 = vpop.permute.xlu0 %681
  %683 = vrot.lane.b32.xlu0 %v636, 126
  %v684 = vpop.permute.xlu0 %683
  %vm685 = vcmp.lt.s32.totalorder %v485, 126
  %v686 = vsel %vm685, %v654, %v670
  %v687 = vsel %vm685, %v656, %v672
  %v688 = vsel %vm685, %v658, %v674
  %v689 = vsel %vm685, %v660, %v676
  %v690 = vsel %vm685, %v662, %v678
  %v691 = vsel %vm685, %v664, %v680
  %v692 = vsel %vm685, %v666, %v682
  %v693 = vsel %vm685, %v668, %v684
  %v694 = vsel %vm685, %v670, %v654
  %v695 = vsel %vm685, %v672, %v656
  %v696 = vsel %vm685, %v674, %v658
  %v697 = vsel %vm685, %v676, %v660
  %v698 = vsel %vm685, %v678, %v662
  %v699 = vsel %vm685, %v680, %v664
  %v700 = vsel %vm685, %v682, %v666
  %v701 = vsel %vm685, %v684, %v668
  %702 = vrot.lane.b32.xlu0 %v621, 6
  %v703 = vpop.permute.xlu0 %702
  %704 = vrot.lane.b32.xlu0 %v623, 6
  %v705 = vpop.permute.xlu0 %704
  %706 = vrot.lane.b32.xlu0 %v625, 6
  %v707 = vpop.permute.xlu0 %706
  %708 = vrot.lane.b32.xlu0 %v627, 6
  %v709 = vpop.permute.xlu0 %708
  %710 = vrot.lane.b32.xlu0 %v629, 6
  %v711 = vpop.permute.xlu0 %710
  %712 = vrot.lane.b32.xlu0 %v631, 6
  %v713 = vpop.permute.xlu0 %712
  %714 = vrot.lane.b32.xlu0 %v633, 6
  %v715 = vpop.permute.xlu0 %714
  %716 = vrot.lane.b32.xlu0 %v635, 6
  %v717 = vpop.permute.xlu0 %716
  %718 = vrot.lane.b32.xlu0 %v622, 6
  %v719 = vpop.permute.xlu0 %718
  %720 = vrot.lane.b32.xlu0 %v624, 6
  %v721 = vpop.permute.xlu0 %720
  %722 = vrot.lane.b32.xlu0 %v626, 6
  %v723 = vpop.permute.xlu0 %722
  %724 = vrot.lane.b32.xlu0 %v628, 6
  %v725 = vpop.permute.xlu0 %724
  %726 = vrot.lane.b32.xlu0 %v630, 6
  %v727 = vpop.permute.xlu0 %726
  %728 = vrot.lane.b32.xlu0 %v632, 6
  %v729 = vpop.permute.xlu0 %728
  %730 = vrot.lane.b32.xlu0 %v634, 6
  %v731 = vpop.permute.xlu0 %730
  %732 = vrot.lane.b32.xlu0 %v636, 6
  %v733 = vpop.permute.xlu0 %732
  %vm734 = vcmp.lt.s32.totalorder %v485, 6
  %v735 = vsel %vm734, %v703, %v719
  %v736 = vsel %vm734, %v705, %v721
  %v737 = vsel %vm734, %v707, %v723
  %v738 = vsel %vm734, %v709, %v725
  %v739 = vsel %vm734, %v711, %v727
  %v740 = vsel %vm734, %v713, %v729
  %v741 = vsel %vm734, %v715, %v731
  %v742 = vsel %vm734, %v717, %v733
  %v743 = vsel %vm734, %v719, %v703
  %v744 = vsel %vm734, %v721, %v705
  %v745 = vsel %vm734, %v723, %v707
  %v746 = vsel %vm734, %v725, %v709
  %v747 = vsel %vm734, %v727, %v711
  %v748 = vsel %vm734, %v729, %v713
  %v749 = vsel %vm734, %v731, %v715
  %v750 = vsel %vm734, %v733, %v717
  %v751 = vsel %vm491, 1, 0
  %v752 = vsel %vm492, 1, 0
  %vm753 = vcmp.eq.s32.totalorder %v751, 1
  %vm754 = vcmp.eq.s32.totalorder %v752, 1
  %v755 = vsel %vm753, %v686, %v743
  %v756 = vsel %vm754, %v694, %v735
  %v757 = vsel %vm753, %v687, %v744
  %v758 = vsel %vm754, %v695, %v736
  %v759 = vsel %vm753, %v688, %v745
  %v760 = vsel %vm754, %v696, %v737
  %v761 = vsel %vm753, %v689, %v746
  %v762 = vsel %vm754, %v697, %v738
  %v763 = vsel %vm753, %v690, %v747
  %v764 = vsel %vm754, %v698, %v739
  %v765 = vsel %vm753, %v691, %v748
  %v766 = vsel %vm754, %v699, %v740
  %v767 = vsel %vm753, %v692, %v749
  %v768 = vsel %vm754, %v700, %v741
  %v769 = vsel %vm753, %v693, %v750
  %v770 = vsel %vm754, %v701, %v742
  %v771 = vmax.f32 %v621, %v755
  %v772 = vmax.f32 %v622, %v756
  %v773 = vmax.f32 %v623, %v757
  %v774 = vmax.f32 %v624, %v758
  %v775 = vmax.f32 %v625, %v759
  %v776 = vmax.f32 %v626, %v760
  %v777 = vmax.f32 %v627, %v761
  %v778 = vmax.f32 %v628, %v762
  %v779 = vmax.f32 %v629, %v763
  %v780 = vmax.f32 %v630, %v764
  %v781 = vmax.f32 %v631, %v765
  %v782 = vmax.f32 %v632, %v766
  %v783 = vmax.f32 %v633, %v767
  %v784 = vmax.f32 %v634, %v768
  %v785 = vmax.f32 %v635, %v769
  %v786 = vmax.f32 %v636, %v770
  %787 = vrot.lane.b32.xlu0 %v637, 126
  %v788 = vpop.permute.xlu0 %787
  %789 = vrot.lane.b32.xlu0 %v639, 126
  %v790 = vpop.permute.xlu0 %789
  %791 = vrot.lane.b32.xlu0 %v641, 126
  %v792 = vpop.permute.xlu0 %791
  %793 = vrot.lane.b32.xlu0 %v643, 126
  %v794 = vpop.permute.xlu0 %793
  %795 = vrot.lane.b32.xlu0 %v645, 126
  %v796 = vpop.permute.xlu0 %795
  %797 = vrot.lane.b32.xlu0 %v647, 126
  %v798 = vpop.permute.xlu0 %797
  %799 = vrot.lane.b32.xlu0 %v649, 126
  %v800 = vpop.permute.xlu0 %799
  %801 = vrot.lane.b32.xlu0 %v651, 126
  %v802 = vpop.permute.xlu0 %801
  %803 = vrot.lane.b32.xlu0 %v638, 126
  %v804 = vpop.permute.xlu0 %803
  %805 = vrot.lane.b32.xlu0 %v640, 126
  %v806 = vpop.permute.xlu0 %805
  %807 = vrot.lane.b32.xlu0 %v642, 126
  %v808 = vpop.permute.xlu0 %807
  %809 = vrot.lane.b32.xlu0 %v644, 126
  %v810 = vpop.permute.xlu0 %809
  %811 = vrot.lane.b32.xlu0 %v646, 126
  %v812 = vpop.permute.xlu0 %811
  %813 = vrot.lane.b32.xlu0 %v648, 126
  %v814 = vpop.permute.xlu0 %813
  %815 = vrot.lane.b32.xlu0 %v650, 126
  %v816 = vpop.permute.xlu0 %815
  %817 = vrot.lane.b32.xlu0 %v652, 126
  %v818 = vpop.permute.xlu0 %817
  %v819 = vsel %vm685, %v788, %v804
  %v820 = vsel %vm685, %v790, %v806
  %v821 = vsel %vm685, %v792, %v808
  %v822 = vsel %vm685, %v794, %v810
  %v823 = vsel %vm685, %v796, %v812
  %v824 = vsel %vm685, %v798, %v814
  %v825 = vsel %vm685, %v800, %v816
  %v826 = vsel %vm685, %v802, %v818
  %v827 = vsel %vm685, %v804, %v788
  %v828 = vsel %vm685, %v806, %v790
  %v829 = vsel %vm685, %v808, %v792
  %v830 = vsel %vm685, %v810, %v794
  %v831 = vsel %vm685, %v812, %v796
  %v832 = vsel %vm685, %v814, %v798
  %v833 = vsel %vm685, %v816, %v800
  %v834 = vsel %vm685, %v818, %v802
  %835 = vrot.lane.b32.xlu0 %v637, 6
  %v836 = vpop.permute.xlu0 %835
  %837 = vrot.lane.b32.xlu0 %v639, 6
  %v838 = vpop.permute.xlu0 %837
  %839 = vrot.lane.b32.xlu0 %v641, 6
  %v840 = vpop.permute.xlu0 %839
  %841 = vrot.lane.b32.xlu0 %v643, 6
  %v842 = vpop.permute.xlu0 %841
  %843 = vrot.lane.b32.xlu0 %v645, 6
  %v844 = vpop.permute.xlu0 %843
  %845 = vrot.lane.b32.xlu0 %v647, 6
  %v846 = vpop.permute.xlu0 %845
  %847 = vrot.lane.b32.xlu0 %v649, 6
  %v848 = vpop.permute.xlu0 %847
  %849 = vrot.lane.b32.xlu0 %v651, 6
  %v850 = vpop.permute.xlu0 %849
  %851 = vrot.lane.b32.xlu0 %v638, 6
  %v852 = vpop.permute.xlu0 %851
  %853 = vrot.lane.b32.xlu0 %v640, 6
  %v854 = vpop.permute.xlu0 %853
  %855 = vrot.lane.b32.xlu0 %v642, 6
  %v856 = vpop.permute.xlu0 %855
  %857 = vrot.lane.b32.xlu0 %v644, 6
  %v858 = vpop.permute.xlu0 %857
  %859 = vrot.lane.b32.xlu0 %v646, 6
  %v860 = vpop.permute.xlu0 %859
  %861 = vrot.lane.b32.xlu0 %v648, 6
  %v862 = vpop.permute.xlu0 %861
  %863 = vrot.lane.b32.xlu0 %v650, 6
  %v864 = vpop.permute.xlu0 %863
  %865 = vrot.lane.b32.xlu0 %v652, 6
  %v866 = vpop.permute.xlu0 %865
  %v867 = vsel %vm734, %v836, %v852
  %v868 = vsel %vm734, %v838, %v854
  %v869 = vsel %vm734, %v840, %v856
  %v870 = vsel %vm734, %v842, %v858
  %v871 = vsel %vm734, %v844, %v860
  %v872 = vsel %vm734, %v846, %v862
  %v873 = vsel %vm734, %v848, %v864
  %v874 = vsel %vm734, %v850, %v866
  %v875 = vsel %vm734, %v852, %v836
  %v876 = vsel %vm734, %v854, %v838
  %v877 = vsel %vm734, %v856, %v840
  %v878 = vsel %vm734, %v858, %v842
  %v879 = vsel %vm734, %v860, %v844
  %v880 = vsel %vm734, %v862, %v846
  %v881 = vsel %vm734, %v864, %v848
  %v882 = vsel %vm734, %v866, %v850
  %v883 = vsel %vm753, %v819, %v875
  %v884 = vsel %vm754, %v827, %v867
  %v885 = vsel %vm753, %v820, %v876
  %v886 = vsel %vm754, %v828, %v868
  %v887 = vsel %vm753, %v821, %v877
  %v888 = vsel %vm754, %v829, %v869
  %v889 = vsel %vm753, %v822, %v878
  %v890 = vsel %vm754, %v830, %v870
  %v891 = vsel %vm753, %v823, %v879
  %v892 = vsel %vm754, %v831, %v871
  %v893 = vsel %vm753, %v824, %v880
  %v894 = vsel %vm754, %v832, %v872
  %v895 = vsel %vm753, %v825, %v881
  %v896 = vsel %vm754, %v833, %v873
  %v897 = vsel %vm753, %v826, %v882
  %v898 = vsel %vm754, %v834, %v874
  %v899 = vmin.f32 %v637, %v883
  %v900 = vmin.f32 %v638, %v884
  %v901 = vmin.f32 %v639, %v885
  %v902 = vmin.f32 %v640, %v886
  %v903 = vmin.f32 %v641, %v887
  %v904 = vmin.f32 %v642, %v888
  %v905 = vmin.f32 %v643, %v889
  %v906 = vmin.f32 %v644, %v890
  %v907 = vmin.f32 %v645, %v891
  %v908 = vmin.f32 %v646, %v892
  %v909 = vmin.f32 %v647, %v893
  %v910 = vmin.f32 %v648, %v894
  %v911 = vmin.f32 %v649, %v895
  %v912 = vmin.f32 %v650, %v896
  %v913 = vmin.f32 %v651, %v897
  %v914 = vmin.f32 %v652, %v898
  %915 = vrot.lane.b32.xlu0 %v771, 127
  %v916 = vpop.permute.xlu0 %915
  %917 = vrot.lane.b32.xlu0 %v773, 127
  %v918 = vpop.permute.xlu0 %917
  %919 = vrot.lane.b32.xlu0 %v775, 127
  %v920 = vpop.permute.xlu0 %919
  %921 = vrot.lane.b32.xlu0 %v777, 127
  %v922 = vpop.permute.xlu0 %921
  %923 = vrot.lane.b32.xlu0 %v779, 127
  %v924 = vpop.permute.xlu0 %923
  %925 = vrot.lane.b32.xlu0 %v781, 127
  %v926 = vpop.permute.xlu0 %925
  %927 = vrot.lane.b32.xlu0 %v783, 127
  %v928 = vpop.permute.xlu0 %927
  %929 = vrot.lane.b32.xlu0 %v785, 127
  %v930 = vpop.permute.xlu0 %929
  %931 = vrot.lane.b32.xlu0 %v772, 127
  %v932 = vpop.permute.xlu0 %931
  %933 = vrot.lane.b32.xlu0 %v774, 127
  %v934 = vpop.permute.xlu0 %933
  %935 = vrot.lane.b32.xlu0 %v776, 127
  %v936 = vpop.permute.xlu0 %935
  %937 = vrot.lane.b32.xlu0 %v778, 127
  %v938 = vpop.permute.xlu0 %937
  %939 = vrot.lane.b32.xlu0 %v780, 127
  %v940 = vpop.permute.xlu0 %939
  %941 = vrot.lane.b32.xlu0 %v782, 127
  %v942 = vpop.permute.xlu0 %941
  %943 = vrot.lane.b32.xlu0 %v784, 127
  %v944 = vpop.permute.xlu0 %943
  %945 = vrot.lane.b32.xlu0 %v786, 127
  %v946 = vpop.permute.xlu0 %945
  %vm947 = vcmp.lt.s32.totalorder %v485, 127
  %v948 = vsel %vm947, %v916, %v932
  %v949 = vsel %vm947, %v918, %v934
  %v950 = vsel %vm947, %v920, %v936
  %v951 = vsel %vm947, %v922, %v938
  %v952 = vsel %vm947, %v924, %v940
  %v953 = vsel %vm947, %v926, %v942
  %v954 = vsel %vm947, %v928, %v944
  %v955 = vsel %vm947, %v930, %v946
  %v956 = vsel %vm947, %v932, %v916
  %v957 = vsel %vm947, %v934, %v918
  %v958 = vsel %vm947, %v936, %v920
  %v959 = vsel %vm947, %v938, %v922
  %v960 = vsel %vm947, %v940, %v924
  %v961 = vsel %vm947, %v942, %v926
  %v962 = vsel %vm947, %v944, %v928
  %v963 = vsel %vm947, %v946, %v930
  %964 = vrot.lane.b32.xlu0 %v771, 7
  %v965 = vpop.permute.xlu0 %964
  %966 = vrot.lane.b32.xlu0 %v773, 7
  %v967 = vpop.permute.xlu0 %966
  %968 = vrot.lane.b32.xlu0 %v775, 7
  %v969 = vpop.permute.xlu0 %968
  %970 = vrot.lane.b32.xlu0 %v777, 7
  %v971 = vpop.permute.xlu0 %970
  %972 = vrot.lane.b32.xlu0 %v779, 7
  %v973 = vpop.permute.xlu0 %972
  %974 = vrot.lane.b32.xlu0 %v781, 7
  %v975 = vpop.permute.xlu0 %974
  %976 = vrot.lane.b32.xlu0 %v783, 7
  %v977 = vpop.permute.xlu0 %976
  %978 = vrot.lane.b32.xlu0 %v785, 7
  %v979 = vpop.permute.xlu0 %978
  %980 = vrot.lane.b32.xlu0 %v772, 7
  %v981 = vpop.permute.xlu0 %980
  %982 = vrot.lane.b32.xlu0 %v774, 7
  %v983 = vpop.permute.xlu0 %982
  %984 = vrot.lane.b32.xlu0 %v776, 7
  %v985 = vpop.permute.xlu0 %984
  %986 = vrot.lane.b32.xlu0 %v778, 7
  %v987 = vpop.permute.xlu0 %986
  %988 = vrot.lane.b32.xlu0 %v780, 7
  %v989 = vpop.permute.xlu0 %988
  %990 = vrot.lane.b32.xlu0 %v782, 7
  %v991 = vpop.permute.xlu0 %990
  %992 = vrot.lane.b32.xlu0 %v784, 7
  %v993 = vpop.permute.xlu0 %992
  %994 = vrot.lane.b32.xlu0 %v786, 7
  %v995 = vpop.permute.xlu0 %994
  %vm996 = vcmp.lt.s32.totalorder %v485, 7
  %v997 = vsel %vm996, %v965, %v981
  %v998 = vsel %vm996, %v967, %v983
  %v999 = vsel %vm996, %v969, %v985
  %v1000 = vsel %vm996, %v971, %v987
  %v1001 = vsel %vm996, %v973, %v989
  %v1002 = vsel %vm996, %v975, %v991
  %v1003 = vsel %vm996, %v977, %v993
  %v1004 = vsel %vm996, %v979, %v995
  %v1005 = vsel %vm996, %v981, %v965
  %v1006 = vsel %vm996, %v983, %v967
  %v1007 = vsel %vm996, %v985, %v969
  %v1008 = vsel %vm996, %v987, %v971
  %v1009 = vsel %vm996, %v989, %v973
  %v1010 = vsel %vm996, %v991, %v975
  %v1011 = vsel %vm996, %v993, %v977
  %v1012 = vsel %vm996, %v995, %v979
  %v1013 = vsel %vm489, 1, 0
  %v1014 = vsel %vm490, 1, 0
  %vm1015 = vcmp.eq.s32.totalorder %v1013, 1
  %vm1016 = vcmp.eq.s32.totalorder %v1014, 1
  %v1017 = vsel %vm1015, %v948, %v1005
  %v1018 = vsel %vm1016, %v956, %v997
  %v1019 = vsel %vm1015, %v949, %v1006
  %v1020 = vsel %vm1016, %v957, %v998
  %v1021 = vsel %vm1015, %v950, %v1007
  %v1022 = vsel %vm1016, %v958, %v999
  %v1023 = vsel %vm1015, %v951, %v1008
  %v1024 = vsel %vm1016, %v959, %v1000
  %v1025 = vsel %vm1015, %v952, %v1009
  %v1026 = vsel %vm1016, %v960, %v1001
  %v1027 = vsel %vm1015, %v953, %v1010
  %v1028 = vsel %vm1016, %v961, %v1002
  %v1029 = vsel %vm1015, %v954, %v1011
  %v1030 = vsel %vm1016, %v962, %v1003
  %v1031 = vsel %vm1015, %v955, %v1012
  %v1032 = vsel %vm1016, %v963, %v1004
  %v1033 = vmax.f32 %v771, %v1017
  %v1034 = vmax.f32 %v772, %v1018
  %v1035 = vmax.f32 %v773, %v1019
  %v1036 = vmax.f32 %v774, %v1020
  %v1037 = vmax.f32 %v775, %v1021
  %v1038 = vmax.f32 %v776, %v1022
  %v1039 = vmax.f32 %v777, %v1023
  %v1040 = vmax.f32 %v778, %v1024
  %v1041 = vmax.f32 %v779, %v1025
  %v1042 = vmax.f32 %v780, %v1026
  %v1043 = vmax.f32 %v781, %v1027
  %v1044 = vmax.f32 %v782, %v1028
  %v1045 = vmax.f32 %v783, %v1029
  %v1046 = vmax.f32 %v784, %v1030
  %v1047 = vmax.f32 %v785, %v1031
  %v1048 = vmax.f32 %v786, %v1032
  %1049 = vrot.lane.b32.xlu0 %v899, 127
  %v1050 = vpop.permute.xlu0 %1049
  %1051 = vrot.lane.b32.xlu0 %v901, 127
  %v1052 = vpop.permute.xlu0 %1051
  %1053 = vrot.lane.b32.xlu0 %v903, 127
  %v1054 = vpop.permute.xlu0 %1053
  %1055 = vrot.lane.b32.xlu0 %v905, 127
  %v1056 = vpop.permute.xlu0 %1055
  %1057 = vrot.lane.b32.xlu0 %v907, 127
  %v1058 = vpop.permute.xlu0 %1057
  %1059 = vrot.lane.b32.xlu0 %v909, 127
  %v1060 = vpop.permute.xlu0 %1059
  %1061 = vrot.lane.b32.xlu0 %v911, 127
  %v1062 = vpop.permute.xlu0 %1061
  %1063 = vrot.lane.b32.xlu0 %v913, 127
  %v1064 = vpop.permute.xlu0 %1063
  %1065 = vrot.lane.b32.xlu0 %v900, 127
  %v1066 = vpop.permute.xlu0 %1065
  %1067 = vrot.lane.b32.xlu0 %v902, 127
  %v1068 = vpop.permute.xlu0 %1067
  %1069 = vrot.lane.b32.xlu0 %v904, 127
  %v1070 = vpop.permute.xlu0 %1069
  %1071 = vrot.lane.b32.xlu0 %v906, 127
  %v1072 = vpop.permute.xlu0 %1071
  %1073 = vrot.lane.b32.xlu0 %v908, 127
  %v1074 = vpop.permute.xlu0 %1073
  %1075 = vrot.lane.b32.xlu0 %v910, 127
  %v1076 = vpop.permute.xlu0 %1075
  %1077 = vrot.lane.b32.xlu0 %v912, 127
  %v1078 = vpop.permute.xlu0 %1077
  %1079 = vrot.lane.b32.xlu0 %v914, 127
  %v1080 = vpop.permute.xlu0 %1079
  %v1081 = vsel %vm947, %v1050, %v1066
  %v1082 = vsel %vm947, %v1052, %v1068
  %v1083 = vsel %vm947, %v1054, %v1070
  %v1084 = vsel %vm947, %v1056, %v1072
  %v1085 = vsel %vm947, %v1058, %v1074
  %v1086 = vsel %vm947, %v1060, %v1076
  %v1087 = vsel %vm947, %v1062, %v1078
  %v1088 = vsel %vm947, %v1064, %v1080
  %v1089 = vsel %vm947, %v1066, %v1050
  %v1090 = vsel %vm947, %v1068, %v1052
  %v1091 = vsel %vm947, %v1070, %v1054
  %v1092 = vsel %vm947, %v1072, %v1056
  %v1093 = vsel %vm947, %v1074, %v1058
  %v1094 = vsel %vm947, %v1076, %v1060
  %v1095 = vsel %vm947, %v1078, %v1062
  %v1096 = vsel %vm947, %v1080, %v1064
  %1097 = vrot.lane.b32.xlu0 %v899, 7
  %v1098 = vpop.permute.xlu0 %1097
  %1099 = vrot.lane.b32.xlu0 %v901, 7
  %v1100 = vpop.permute.xlu0 %1099
  %1101 = vrot.lane.b32.xlu0 %v903, 7
  %v1102 = vpop.permute.xlu0 %1101
  %1103 = vrot.lane.b32.xlu0 %v905, 7
  %v1104 = vpop.permute.xlu0 %1103
  %1105 = vrot.lane.b32.xlu0 %v907, 7
  %v1106 = vpop.permute.xlu0 %1105
  %1107 = vrot.lane.b32.xlu0 %v909, 7
  %v1108 = vpop.permute.xlu0 %1107
  %1109 = vrot.lane.b32.xlu0 %v911, 7
  %v1110 = vpop.permute.xlu0 %1109
  %1111 = vrot.lane.b32.xlu0 %v913, 7
  %v1112 = vpop.permute.xlu0 %1111
  %1113 = vrot.lane.b32.xlu0 %v900, 7
  %v1114 = vpop.permute.xlu0 %1113
  %1115 = vrot.lane.b32.xlu0 %v902, 7
  %v1116 = vpop.permute.xlu0 %1115
  %1117 = vrot.lane.b32.xlu0 %v904, 7
  %v1118 = vpop.permute.xlu0 %1117
  %1119 = vrot.lane.b32.xlu0 %v906, 7
  %v1120 = vpop.permute.xlu0 %1119
  %1121 = vrot.lane.b32.xlu0 %v908, 7
  %v1122 = vpop.permute.xlu0 %1121
  %1123 = vrot.lane.b32.xlu0 %v910, 7
  %v1124 = vpop.permute.xlu0 %1123
  %1125 = vrot.lane.b32.xlu0 %v912, 7
  %v1126 = vpop.permute.xlu0 %1125
  %1127 = vrot.lane.b32.xlu0 %v914, 7
  %v1128 = vpop.permute.xlu0 %1127
  %v1129 = vsel %vm996, %v1098, %v1114
  %v1130 = vsel %vm996, %v1100, %v1116
  %v1131 = vsel %vm996, %v1102, %v1118
  %v1132 = vsel %vm996, %v1104, %v1120
  %v1133 = vsel %vm996, %v1106, %v1122
  %v1134 = vsel %vm996, %v1108, %v1124
  %v1135 = vsel %vm996, %v1110, %v1126
  %v1136 = vsel %vm996, %v1112, %v1128
  %v1137 = vsel %vm996, %v1114, %v1098
  %v1138 = vsel %vm996, %v1116, %v1100
  %v1139 = vsel %vm996, %v1118, %v1102
  %v1140 = vsel %vm996, %v1120, %v1104
  %v1141 = vsel %vm996, %v1122, %v1106
  %v1142 = vsel %vm996, %v1124, %v1108
  %v1143 = vsel %vm996, %v1126, %v1110
  %v1144 = vsel %vm996, %v1128, %v1112
  %v1145 = vsel %vm1015, %v1081, %v1137
  %v1146 = vsel %vm1016, %v1089, %v1129
  %v1147 = vsel %vm1015, %v1082, %v1138
  %v1148 = vsel %vm1016, %v1090, %v1130
  %v1149 = vsel %vm1015, %v1083, %v1139
  %v1150 = vsel %vm1016, %v1091, %v1131
  %v1151 = vsel %vm1015, %v1084, %v1140
  %v1152 = vsel %vm1016, %v1092, %v1132
  %v1153 = vsel %vm1015, %v1085, %v1141
  %v1154 = vsel %vm1016, %v1093, %v1133
  %v1155 = vsel %vm1015, %v1086, %v1142
  %v1156 = vsel %vm1016, %v1094, %v1134
  %v1157 = vsel %vm1015, %v1087, %v1143
  %v1158 = vsel %vm1016, %v1095, %v1135
  %v1159 = vsel %vm1015, %v1088, %v1144
  %v1160 = vsel %vm1016, %v1096, %v1136
  %v1161 = vmin.f32 %v899, %v1145
  %v1162 = vmin.f32 %v900, %v1146
  %v1163 = vmin.f32 %v901, %v1147
  %v1164 = vmin.f32 %v902, %v1148
  %v1165 = vmin.f32 %v903, %v1149
  %v1166 = vmin.f32 %v904, %v1150
  %v1167 = vmin.f32 %v905, %v1151
  %v1168 = vmin.f32 %v906, %v1152
  %v1169 = vmin.f32 %v907, %v1153
  %v1170 = vmin.f32 %v908, %v1154
  %v1171 = vmin.f32 %v909, %v1155
  %v1172 = vmin.f32 %v910, %v1156
  %v1173 = vmin.f32 %v911, %v1157
  %v1174 = vmin.f32 %v912, %v1158
  %v1175 = vmin.f32 %v913, %v1159
  %v1176 = vmin.f32 %v914, %v1160
  %vm1177 = vcmp.ge.f32.partialorder %v212, 0.0
  %vm1178 = vcmp.ge.f32.partialorder %v214, 0.0
  %vm1179 = vcmp.ge.f32.partialorder %v218, 0.0
  %vm1180 = vcmp.ge.f32.partialorder %v220, 0.0
  %vm1181 = vcmp.ge.f32.partialorder %v224, 0.0
  %vm1182 = vcmp.ge.f32.partialorder %v226, 0.0
  %vm1183 = vcmp.ge.f32.partialorder %v230, 0.0
  %vm1184 = vcmp.ge.f32.partialorder %v232, 0.0
  %vm1185 = vcmp.ge.f32.partialorder %v236, 0.0
  %vm1186 = vcmp.ge.f32.partialorder %v238, 0.0
  %vm1187 = vcmp.ge.f32.partialorder %v242, 0.0
  %vm1188 = vcmp.ge.f32.partialorder %v244, 0.0
  %vm1189 = vcmp.ge.f32.partialorder %v248, 0.0
  %vm1190 = vcmp.ge.f32.partialorder %v250, 0.0
  %vm1191 = vcmp.ge.f32.partialorder %v254, 0.0
  %vm1192 = vcmp.ge.f32.partialorder %v256, 0.0
  %v1193 = vsel %vm1177, %v1033, %v1161
  %v1194 = vsel %vm1178, %v1034, %v1162
  %v1195 = vsel %vm1179, %v1035, %v1163
  %v1196 = vsel %vm1180, %v1036, %v1164
  %v1197 = vsel %vm1181, %v1037, %v1165
  %v1198 = vsel %vm1182, %v1038, %v1166
  %v1199 = vsel %vm1183, %v1039, %v1167
  %v1200 = vsel %vm1184, %v1040, %v1168
  %v1201 = vsel %vm1185, %v1041, %v1169
  %v1202 = vsel %vm1186, %v1042, %v1170
  %v1203 = vsel %vm1187, %v1043, %v1171
  %v1204 = vsel %vm1188, %v1044, %v1172
  %v1205 = vsel %vm1189, %v1045, %v1173
  %v1206 = vsel %vm1190, %v1046, %v1174
  %v1207 = vsel %vm1191, %v1047, %v1175
  %v1208 = vsel %vm1192, %v1048, %v1176
  %v1209 = vmul.f32 %v212, %v1193
  %v1210 = vmul.f32 %v214, %v1194
  %v1211 = vmul.f32 %v218, %v1195
  %v1212 = vmul.f32 %v220, %v1196
  %v1213 = vmul.f32 %v224, %v1197
  %v1214 = vmul.f32 %v226, %v1198
  %v1215 = vmul.f32 %v230, %v1199
  %v1216 = vmul.f32 %v232, %v1200
  %v1217 = vmul.f32 %v236, %v1201
  %v1218 = vmul.f32 %v238, %v1202
  %v1219 = vmul.f32 %v242, %v1203
  %v1220 = vmul.f32 %v244, %v1204
  %v1221 = vmul.f32 %v248, %v1205
  %v1222 = vmul.f32 %v250, %v1206
  %v1223 = vmul.f32 %v254, %v1207
  %v1224 = vmul.f32 %v256, %v1208
  %v1225 = vmul.f32 %v212, %v325
  %v1226 = vmul.f32 %v214, %v327
  %v1227 = vmul.f32 %v218, %v331
  %v1228 = vmul.f32 %v220, %v333
  %v1229 = vmul.f32 %v224, %v337
  %v1230 = vmul.f32 %v226, %v339
  %v1231 = vmul.f32 %v230, %v343
  %v1232 = vmul.f32 %v232, %v345
  %v1233 = vmul.f32 %v236, %v349
  %v1234 = vmul.f32 %v238, %v351
  %v1235 = vmul.f32 %v242, %v355
  %v1236 = vmul.f32 %v244, %v357
  %v1237 = vmul.f32 %v248, %v361
  %v1238 = vmul.f32 %v250, %v363
  %v1239 = vmul.f32 %v254, %v367
  %v1240 = vmul.f32 %v256, %v369
  %v1241 = vsub.f32 %v1225, %v1209
  %v1242 = vsub.f32 %v1226, %v1210
  %v1243 = vsub.f32 %v1227, %v1211
  %v1244 = vsub.f32 %v1228, %v1212
  %v1245 = vsub.f32 %v1229, %v1213
  %v1246 = vsub.f32 %v1230, %v1214
  %v1247 = vsub.f32 %v1231, %v1215
  %v1248 = vsub.f32 %v1232, %v1216
  %v1249 = vsub.f32 %v1233, %v1217
  %v1250 = vsub.f32 %v1234, %v1218
  %v1251 = vsub.f32 %v1235, %v1219
  %v1252 = vsub.f32 %v1236, %v1220
  %v1253 = vsub.f32 %v1237, %v1221
  %v1254 = vsub.f32 %v1238, %v1222
  %v1255 = vsub.f32 %v1239, %v1223
  %v1256 = vsub.f32 %v1240, %v1224
  %v1257 = vmul.f32 %v1241, 1.442695
  %v1258 = vpow.pop %v1257
  %v1259 = vmul.f32 %v1242, 1.442695
  %v1260 = vpow.pop %v1259
  %v1261 = vmul.f32 %v1243, 1.442695
  %v1262 = vpow.pop %v1261
  %v1263 = vmul.f32 %v1244, 1.442695
  %v1264 = vpow.pop %v1263
  %v1265 = vmul.f32 %v1245, 1.442695
  %v1266 = vpow.pop %v1265
  %v1267 = vmul.f32 %v1246, 1.442695
  %v1268 = vpow.pop %v1267
  %v1269 = vmul.f32 %v1247, 1.442695
  %v1270 = vpow.pop %v1269
  %v1271 = vmul.f32 %v1248, 1.442695
  %v1272 = vpow.pop %v1271
  %v1273 = vmul.f32 %v1249, 1.442695
  %v1274 = vpow.pop %v1273
  %v1275 = vmul.f32 %v1250, 1.442695
  %v1276 = vpow.pop %v1275
  %v1277 = vmul.f32 %v1251, 1.442695
  %v1278 = vpow.pop %v1277
  %v1279 = vmul.f32 %v1252, 1.442695
  %v1280 = vpow.pop %v1279
  %v1281 = vmul.f32 %v1253, 1.442695
  %v1282 = vpow.pop %v1281
  %v1283 = vmul.f32 %v1254, 1.442695
  %v1284 = vpow.pop %v1283
  %v1285 = vmul.f32 %v1255, 1.442695
  %v1286 = vpow.pop %v1285
  %v1287 = vmul.f32 %v1256, 1.442695
  %v1288 = vpow.pop %v1287
  %v1289 = vmul.f32 %v1258, %v438
  %v1290 = vmul.f32 %v1260, %v440
  %v1291 = vmul.f32 %v1262, %v444
  %v1292 = vmul.f32 %v1264, %v446
  %v1293 = vmul.f32 %v1266, %v450
  %v1294 = vmul.f32 %v1268, %v452
  %v1295 = vmul.f32 %v1270, %v456
  %v1296 = vmul.f32 %v1272, %v458
  %v1297 = vmul.f32 %v1274, %v462
  %v1298 = vmul.f32 %v1276, %v464
  %v1299 = vmul.f32 %v1278, %v468
  %v1300 = vmul.f32 %v1280, %v470
  %v1301 = vmul.f32 %v1282, %v474
  %v1302 = vmul.f32 %v1284, %v476
  %v1303 = vmul.f32 %v1286, %v480
  %v1304 = vmul.f32 %v1288, %v482
  %1305 = vrot.lane.b32.xlu0 %v325, 127
  %v1306 = vpop.permute.xlu0 %1305
  %1307 = vrot.lane.b32.xlu0 %v331, 127
  %v1308 = vpop.permute.xlu0 %1307
  %1309 = vrot.lane.b32.xlu0 %v337, 127
  %v1310 = vpop.permute.xlu0 %1309
  %1311 = vrot.lane.b32.xlu0 %v343, 127
  %v1312 = vpop.permute.xlu0 %1311
  %1313 = vrot.lane.b32.xlu0 %v349, 127
  %v1314 = vpop.permute.xlu0 %1313
  %1315 = vrot.lane.b32.xlu0 %v355, 127
  %v1316 = vpop.permute.xlu0 %1315
  %1317 = vrot.lane.b32.xlu0 %v361, 127
  %v1318 = vpop.permute.xlu0 %1317
  %1319 = vrot.lane.b32.xlu0 %v367, 127
  %v1320 = vpop.permute.xlu0 %1319
  %1321 = vrot.lane.b32.xlu0 %v327, 127
  %v1322 = vpop.permute.xlu0 %1321
  %1323 = vrot.lane.b32.xlu0 %v333, 127
  %v1324 = vpop.permute.xlu0 %1323
  %1325 = vrot.lane.b32.xlu0 %v339, 127
  %v1326 = vpop.permute.xlu0 %1325
  %1327 = vrot.lane.b32.xlu0 %v345, 127
  %v1328 = vpop.permute.xlu0 %1327
  %1329 = vrot.lane.b32.xlu0 %v351, 127
  %v1330 = vpop.permute.xlu0 %1329
  %1331 = vrot.lane.b32.xlu0 %v357, 127
  %v1332 = vpop.permute.xlu0 %1331
  %1333 = vrot.lane.b32.xlu0 %v363, 127
  %v1334 = vpop.permute.xlu0 %1333
  %1335 = vrot.lane.b32.xlu0 %v369, 127
  %v1336 = vpop.permute.xlu0 %1335
  %v1337 = vsel %vm947, %v1306, %v1322
  %v1338 = vsel %vm947, %v1308, %v1324
  %v1339 = vsel %vm947, %v1310, %v1326
  %v1340 = vsel %vm947, %v1312, %v1328
  %v1341 = vsel %vm947, %v1314, %v1330
  %v1342 = vsel %vm947, %v1316, %v1332
  %v1343 = vsel %vm947, %v1318, %v1334
  %v1344 = vsel %vm947, %v1320, %v1336
  %v1345 = vsel %vm947, %v1322, %v1306
  %v1346 = vsel %vm947, %v1324, %v1308
  %v1347 = vsel %vm947, %v1326, %v1310
  %v1348 = vsel %vm947, %v1328, %v1312
  %v1349 = vsel %vm947, %v1330, %v1314
  %v1350 = vsel %vm947, %v1332, %v1316
  %v1351 = vsel %vm947, %v1334, %v1318
  %v1352 = vsel %vm947, %v1336, %v1320
  %1353 = vrot.lane.b32.xlu0 %v325, 7
  %v1354 = vpop.permute.xlu0 %1353
  %1355 = vrot.lane.b32.xlu0 %v331, 7
  %v1356 = vpop.permute.xlu0 %1355
  %1357 = vrot.lane.b32.xlu0 %v337, 7
  %v1358 = vpop.permute.xlu0 %1357
  %1359 = vrot.lane.b32.xlu0 %v343, 7
  %v1360 = vpop.permute.xlu0 %1359
  %1361 = vrot.lane.b32.xlu0 %v349, 7
  %v1362 = vpop.permute.xlu0 %1361
  %1363 = vrot.lane.b32.xlu0 %v355, 7
  %v1364 = vpop.permute.xlu0 %1363
  %1365 = vrot.lane.b32.xlu0 %v361, 7
  %v1366 = vpop.permute.xlu0 %1365
  %1367 = vrot.lane.b32.xlu0 %v367, 7
  %v1368 = vpop.permute.xlu0 %1367
  %1369 = vrot.lane.b32.xlu0 %v327, 7
  %v1370 = vpop.permute.xlu0 %1369
  %1371 = vrot.lane.b32.xlu0 %v333, 7
  %v1372 = vpop.permute.xlu0 %1371
  %1373 = vrot.lane.b32.xlu0 %v339, 7
  %v1374 = vpop.permute.xlu0 %1373
  %1375 = vrot.lane.b32.xlu0 %v345, 7
  %v1376 = vpop.permute.xlu0 %1375
  %1377 = vrot.lane.b32.xlu0 %v351, 7
  %v1378 = vpop.permute.xlu0 %1377
  %1379 = vrot.lane.b32.xlu0 %v357, 7
  %v1380 = vpop.permute.xlu0 %1379
  %1381 = vrot.lane.b32.xlu0 %v363, 7
  %v1382 = vpop.permute.xlu0 %1381
  %1383 = vrot.lane.b32.xlu0 %v369, 7
  %v1384 = vpop.permute.xlu0 %1383
  %v1385 = vsel %vm996, %v1354, %v1370
  %v1386 = vsel %vm996, %v1356, %v1372
  %v1387 = vsel %vm996, %v1358, %v1374
  %v1388 = vsel %vm996, %v1360, %v1376
  %v1389 = vsel %vm996, %v1362, %v1378
  %v1390 = vsel %vm996, %v1364, %v1380
  %v1391 = vsel %vm996, %v1366, %v1382
  %v1392 = vsel %vm996, %v1368, %v1384
  %v1393 = vsel %vm996, %v1370, %v1354
  %v1394 = vsel %vm996, %v1372, %v1356
  %v1395 = vsel %vm996, %v1374, %v1358
  %v1396 = vsel %vm996, %v1376, %v1360
  %v1397 = vsel %vm996, %v1378, %v1362
  %v1398 = vsel %vm996, %v1380, %v1364
  %v1399 = vsel %vm996, %v1382, %v1366
  %v1400 = vsel %vm996, %v1384, %v1368
  %v1401 = vsel %vm1015, %v1337, %v1393
  %v1402 = vsel %vm1016, %v1345, %v1385
  %v1403 = vsel %vm1015, %v1338, %v1394
  %v1404 = vsel %vm1016, %v1346, %v1386
  %v1405 = vsel %vm1015, %v1339, %v1395
  %v1406 = vsel %vm1016, %v1347, %v1387
  %v1407 = vsel %vm1015, %v1340, %v1396
  %v1408 = vsel %vm1016, %v1348, %v1388
  %v1409 = vsel %vm1015, %v1341, %v1397
  %v1410 = vsel %vm1016, %v1349, %v1389
  %v1411 = vsel %vm1015, %v1342, %v1398
  %v1412 = vsel %vm1016, %v1350, %v1390
  %v1413 = vsel %vm1015, %v1343, %v1399
  %v1414 = vsel %vm1016, %v1351, %v1391
  %v1415 = vsel %vm1015, %v1344, %v1400
  %v1416 = vsel %vm1016, %v1352, %v1392
  %1417 = vrot.lane.b32.xlu0 %v438, 127
  %v1418 = vpop.permute.xlu0 %1417
  %1419 = vrot.lane.b32.xlu0 %v444, 127
  %v1420 = vpop.permute.xlu0 %1419
  %1421 = vrot.lane.b32.xlu0 %v450, 127
  %v1422 = vpop.permute.xlu0 %1421
  %1423 = vrot.lane.b32.xlu0 %v456, 127
  %v1424 = vpop.permute.xlu0 %1423
  %1425 = vrot.lane.b32.xlu0 %v462, 127
  %v1426 = vpop.permute.xlu0 %1425
  %1427 = vrot.lane.b32.xlu0 %v468, 127
  %v1428 = vpop.permute.xlu0 %1427
  %1429 = vrot.lane.b32.xlu0 %v474, 127
  %v1430 = vpop.permute.xlu0 %1429
  %1431 = vrot.lane.b32.xlu0 %v480, 127
  %v1432 = vpop.permute.xlu0 %1431
  %1433 = vrot.lane.b32.xlu0 %v440, 127
  %v1434 = vpop.permute.xlu0 %1433
  %1435 = vrot.lane.b32.xlu0 %v446, 127
  %v1436 = vpop.permute.xlu0 %1435
  %1437 = vrot.lane.b32.xlu0 %v452, 127
  %v1438 = vpop.permute.xlu0 %1437
  %1439 = vrot.lane.b32.xlu0 %v458, 127
  %v1440 = vpop.permute.xlu0 %1439
  %1441 = vrot.lane.b32.xlu0 %v464, 127
  %v1442 = vpop.permute.xlu0 %1441
  %1443 = vrot.lane.b32.xlu0 %v470, 127
  %v1444 = vpop.permute.xlu0 %1443
  %1445 = vrot.lane.b32.xlu0 %v476, 127
  %v1446 = vpop.permute.xlu0 %1445
  %1447 = vrot.lane.b32.xlu0 %v482, 127
  %v1448 = vpop.permute.xlu0 %1447
  %v1449 = vsel %vm947, %v1418, %v1434
  %v1450 = vsel %vm947, %v1420, %v1436
  %v1451 = vsel %vm947, %v1422, %v1438
  %v1452 = vsel %vm947, %v1424, %v1440
  %v1453 = vsel %vm947, %v1426, %v1442
  %v1454 = vsel %vm947, %v1428, %v1444
  %v1455 = vsel %vm947, %v1430, %v1446
  %v1456 = vsel %vm947, %v1432, %v1448
  %v1457 = vsel %vm947, %v1434, %v1418
  %v1458 = vsel %vm947, %v1436, %v1420
  %v1459 = vsel %vm947, %v1438, %v1422
  %v1460 = vsel %vm947, %v1440, %v1424
  %v1461 = vsel %vm947, %v1442, %v1426
  %v1462 = vsel %vm947, %v1444, %v1428
  %v1463 = vsel %vm947, %v1446, %v1430
  %v1464 = vsel %vm947, %v1448, %v1432
  %1465 = vrot.lane.b32.xlu0 %v438, 7
  %v1466 = vpop.permute.xlu0 %1465
  %1467 = vrot.lane.b32.xlu0 %v444, 7
  %v1468 = vpop.permute.xlu0 %1467
  %1469 = vrot.lane.b32.xlu0 %v450, 7
  %v1470 = vpop.permute.xlu0 %1469
  %1471 = vrot.lane.b32.xlu0 %v456, 7
  %v1472 = vpop.permute.xlu0 %1471
  %1473 = vrot.lane.b32.xlu0 %v462, 7
  %v1474 = vpop.permute.xlu0 %1473
  %1475 = vrot.lane.b32.xlu0 %v468, 7
  %v1476 = vpop.permute.xlu0 %1475
  %1477 = vrot.lane.b32.xlu0 %v474, 7
  %v1478 = vpop.permute.xlu0 %1477
  %1479 = vrot.lane.b32.xlu0 %v480, 7
  %v1480 = vpop.permute.xlu0 %1479
  %1481 = vrot.lane.b32.xlu0 %v440, 7
  %v1482 = vpop.permute.xlu0 %1481
  %1483 = vrot.lane.b32.xlu0 %v446, 7
  %v1484 = vpop.permute.xlu0 %1483
  %1485 = vrot.lane.b32.xlu0 %v452, 7
  %v1486 = vpop.permute.xlu0 %1485
  %1487 = vrot.lane.b32.xlu0 %v458, 7
  %v1488 = vpop.permute.xlu0 %1487
  %1489 = vrot.lane.b32.xlu0 %v464, 7
  %v1490 = vpop.permute.xlu0 %1489
  %1491 = vrot.lane.b32.xlu0 %v470, 7
  %v1492 = vpop.permute.xlu0 %1491
  %1493 = vrot.lane.b32.xlu0 %v476, 7
  %v1494 = vpop.permute.xlu0 %1493
  %1495 = vrot.lane.b32.xlu0 %v482, 7
  %v1496 = vpop.permute.xlu0 %1495
  %v1497 = vsel %vm996, %v1466, %v1482
  %v1498 = vsel %vm996, %v1468, %v1484
  %v1499 = vsel %vm996, %v1470, %v1486
  %v1500 = vsel %vm996, %v1472, %v1488
  %v1501 = vsel %vm996, %v1474, %v1490
  %v1502 = vsel %vm996, %v1476, %v1492
  %v1503 = vsel %vm996, %v1478, %v1494
  %v1504 = vsel %vm996, %v1480, %v1496
  %v1505 = vsel %vm996, %v1482, %v1466
  %v1506 = vsel %vm996, %v1484, %v1468
  %v1507 = vsel %vm996, %v1486, %v1470
  %v1508 = vsel %vm996, %v1488, %v1472
  %v1509 = vsel %vm996, %v1490, %v1474
  %v1510 = vsel %vm996, %v1492, %v1476
  %v1511 = vsel %vm996, %v1494, %v1478
  %v1512 = vsel %vm996, %v1496, %v1480
  %v1513 = vsel %vm1015, %v1449, %v1505
  %v1514 = vsel %vm1016, %v1457, %v1497
  %v1515 = vsel %vm1015, %v1450, %v1506
  %v1516 = vsel %vm1016, %v1458, %v1498
  %v1517 = vsel %vm1015, %v1451, %v1507
  %v1518 = vsel %vm1016, %v1459, %v1499
  %v1519 = vsel %vm1015, %v1452, %v1508
  %v1520 = vsel %vm1016, %v1460, %v1500
  %v1521 = vsel %vm1015, %v1453, %v1509
  %v1522 = vsel %vm1016, %v1461, %v1501
  %v1523 = vsel %vm1015, %v1454, %v1510
  %v1524 = vsel %vm1016, %v1462, %v1502
  %v1525 = vsel %vm1015, %v1455, %v1511
  %v1526 = vsel %vm1016, %v1463, %v1503
  %v1527 = vsel %vm1015, %v1456, %v1512
  %v1528 = vsel %vm1016, %v1464, %v1504
  %v1529 = vmul.f32 %v212, %v1401
  %v1530 = vmul.f32 %v214, %v1402
  %v1531 = vmul.f32 %v218, %v1403
  %v1532 = vmul.f32 %v220, %v1404
  %v1533 = vmul.f32 %v224, %v1405
  %v1534 = vmul.f32 %v226, %v1406
  %v1535 = vmul.f32 %v230, %v1407
  %v1536 = vmul.f32 %v232, %v1408
  %v1537 = vmul.f32 %v236, %v1409
  %v1538 = vmul.f32 %v238, %v1410
  %v1539 = vmul.f32 %v242, %v1411
  %v1540 = vmul.f32 %v244, %v1412
  %v1541 = vmul.f32 %v248, %v1413
  %v1542 = vmul.f32 %v250, %v1414
  %v1543 = vmul.f32 %v254, %v1415
  %v1544 = vmul.f32 %v256, %v1416
  %v1545 = vsub.f32 %v1529, %v1209
  %v1546 = vsub.f32 %v1530, %v1210
  %v1547 = vsub.f32 %v1531, %v1211
  %v1548 = vsub.f32 %v1532, %v1212
  %v1549 = vsub.f32 %v1533, %v1213
  %v1550 = vsub.f32 %v1534, %v1214
  %v1551 = vsub.f32 %v1535, %v1215
  %v1552 = vsub.f32 %v1536, %v1216
  %v1553 = vsub.f32 %v1537, %v1217
  %v1554 = vsub.f32 %v1538, %v1218
  %v1555 = vsub.f32 %v1539, %v1219
  %v1556 = vsub.f32 %v1540, %v1220
  %v1557 = vsub.f32 %v1541, %v1221
  %v1558 = vsub.f32 %v1542, %v1222
  %v1559 = vsub.f32 %v1543, %v1223
  %v1560 = vsub.f32 %v1544, %v1224
  %v1561 = vmul.f32 %v1545, 1.442695
  %v1562 = vpow.pop %v1561
  %v1563 = vmul.f32 %v1546, 1.442695
  %v1564 = vpow.pop %v1563
  %v1565 = vmul.f32 %v1547, 1.442695
  %v1566 = vpow.pop %v1565
  %v1567 = vmul.f32 %v1548, 1.442695
  %v1568 = vpow.pop %v1567
  %v1569 = vmul.f32 %v1549, 1.442695
  %v1570 = vpow.pop %v1569
  %v1571 = vmul.f32 %v1550, 1.442695
  %v1572 = vpow.pop %v1571
  %v1573 = vmul.f32 %v1551, 1.442695
  %v1574 = vpow.pop %v1573
  %v1575 = vmul.f32 %v1552, 1.442695
  %v1576 = vpow.pop %v1575
  %v1577 = vmul.f32 %v1553, 1.442695
  %v1578 = vpow.pop %v1577
  %v1579 = vmul.f32 %v1554, 1.442695
  %v1580 = vpow.pop %v1579
  %v1581 = vmul.f32 %v1555, 1.442695
  %v1582 = vpow.pop %v1581
  %v1583 = vmul.f32 %v1556, 1.442695
  %v1584 = vpow.pop %v1583
  %v1585 = vmul.f32 %v1557, 1.442695
  %v1586 = vpow.pop %v1585
  %v1587 = vmul.f32 %v1558, 1.442695
  %v1588 = vpow.pop %v1587
  %v1589 = vmul.f32 %v1559, 1.442695
  %v1590 = vpow.pop %v1589
  %v1591 = vmul.f32 %v1560, 1.442695
  %v1592 = vpow.pop %v1591
  %v1593 = vadd.f32 %v1258, %v1562
  %v1594 = vadd.f32 %v1260, %v1564
  %v1595 = vadd.f32 %v1262, %v1566
  %v1596 = vadd.f32 %v1264, %v1568
  %v1597 = vadd.f32 %v1266, %v1570
  %v1598 = vadd.f32 %v1268, %v1572
  %v1599 = vadd.f32 %v1270, %v1574
  %v1600 = vadd.f32 %v1272, %v1576
  %v1601 = vadd.f32 %v1274, %v1578
  %v1602 = vadd.f32 %v1276, %v1580
  %v1603 = vadd.f32 %v1278, %v1582
  %v1604 = vadd.f32 %v1280, %v1584
  %v1605 = vadd.f32 %v1282, %v1586
  %v1606 = vadd.f32 %v1284, %v1588
  %v1607 = vadd.f32 %v1286, %v1590
  %v1608 = vadd.f32 %v1288, %v1592
  %v1609 = vmul.f32 %v1562, %v1513
  %v1610 = vmul.f32 %v1564, %v1514
  %v1611 = vmul.f32 %v1566, %v1515
  %v1612 = vmul.f32 %v1568, %v1516
  %v1613 = vmul.f32 %v1570, %v1517
  %v1614 = vmul.f32 %v1572, %v1518
  %v1615 = vmul.f32 %v1574, %v1519
  %v1616 = vmul.f32 %v1576, %v1520
  %v1617 = vmul.f32 %v1578, %v1521
  %v1618 = vmul.f32 %v1580, %v1522
  %v1619 = vmul.f32 %v1582, %v1523
  %v1620 = vmul.f32 %v1584, %v1524
  %v1621 = vmul.f32 %v1586, %v1525
  %v1622 = vmul.f32 %v1588, %v1526
  %v1623 = vmul.f32 %v1590, %v1527
  %v1624 = vmul.f32 %v1592, %v1528
  %v1625 = vadd.f32 %v1289, %v1609
  %v1626 = vadd.f32 %v1290, %v1610
  %v1627 = vadd.f32 %v1291, %v1611
  %v1628 = vadd.f32 %v1292, %v1612
  %v1629 = vadd.f32 %v1293, %v1613
  %v1630 = vadd.f32 %v1294, %v1614
  %v1631 = vadd.f32 %v1295, %v1615
  %v1632 = vadd.f32 %v1296, %v1616
  %v1633 = vadd.f32 %v1297, %v1617
  %v1634 = vadd.f32 %v1298, %v1618
  %v1635 = vadd.f32 %v1299, %v1619
  %v1636 = vadd.f32 %v1300, %v1620
  %v1637 = vadd.f32 %v1301, %v1621
  %v1638 = vadd.f32 %v1302, %v1622
  %v1639 = vadd.f32 %v1303, %v1623
  %v1640 = vadd.f32 %v1304, %v1624
  %1641 = vrot.lane.b32.xlu0 %v325, 126
  %v1642 = vpop.permute.xlu0 %1641
  %1643 = vrot.lane.b32.xlu0 %v331, 126
  %v1644 = vpop.permute.xlu0 %1643
  %1645 = vrot.lane.b32.xlu0 %v337, 126
  %v1646 = vpop.permute.xlu0 %1645
  %1647 = vrot.lane.b32.xlu0 %v343, 126
  %v1648 = vpop.permute.xlu0 %1647
  %1649 = vrot.lane.b32.xlu0 %v349, 126
  %v1650 = vpop.permute.xlu0 %1649
  %1651 = vrot.lane.b32.xlu0 %v355, 126
  %v1652 = vpop.permute.xlu0 %1651
  %1653 = vrot.lane.b32.xlu0 %v361, 126
  %v1654 = vpop.permute.xlu0 %1653
  %1655 = vrot.lane.b32.xlu0 %v367, 126
  %v1656 = vpop.permute.xlu0 %1655
  %1657 = vrot.lane.b32.xlu0 %v327, 126
  %v1658 = vpop.permute.xlu0 %1657
  %1659 = vrot.lane.b32.xlu0 %v333, 126
  %v1660 = vpop.permute.xlu0 %1659
  %1661 = vrot.lane.b32.xlu0 %v339, 126
  %v1662 = vpop.permute.xlu0 %1661
  %1663 = vrot.lane.b32.xlu0 %v345, 126
  %v1664 = vpop.permute.xlu0 %1663
  %1665 = vrot.lane.b32.xlu0 %v351, 126
  %v1666 = vpop.permute.xlu0 %1665
  %1667 = vrot.lane.b32.xlu0 %v357, 126
  %v1668 = vpop.permute.xlu0 %1667
  %1669 = vrot.lane.b32.xlu0 %v363, 126
  %v1670 = vpop.permute.xlu0 %1669
  %1671 = vrot.lane.b32.xlu0 %v369, 126
  %v1672 = vpop.permute.xlu0 %1671
  %v1673 = vsel %vm685, %v1642, %v1658
  %v1674 = vsel %vm685, %v1644, %v1660
  %v1675 = vsel %vm685, %v1646, %v1662
  %v1676 = vsel %vm685, %v1648, %v1664
  %v1677 = vsel %vm685, %v1650, %v1666
  %v1678 = vsel %vm685, %v1652, %v1668
  %v1679 = vsel %vm685, %v1654, %v1670
  %v1680 = vsel %vm685, %v1656, %v1672
  %v1681 = vsel %vm685, %v1658, %v1642
  %v1682 = vsel %vm685, %v1660, %v1644
  %v1683 = vsel %vm685, %v1662, %v1646
  %v1684 = vsel %vm685, %v1664, %v1648
  %v1685 = vsel %vm685, %v1666, %v1650
  %v1686 = vsel %vm685, %v1668, %v1652
  %v1687 = vsel %vm685, %v1670, %v1654
  %v1688 = vsel %vm685, %v1672, %v1656
  %1689 = vrot.lane.b32.xlu0 %v325, 6
  %v1690 = vpop.permute.xlu0 %1689
  %1691 = vrot.lane.b32.xlu0 %v331, 6
  %v1692 = vpop.permute.xlu0 %1691
  %1693 = vrot.lane.b32.xlu0 %v337, 6
  %v1694 = vpop.permute.xlu0 %1693
  %1695 = vrot.lane.b32.xlu0 %v343, 6
  %v1696 = vpop.permute.xlu0 %1695
  %1697 = vrot.lane.b32.xlu0 %v349, 6
  %v1698 = vpop.permute.xlu0 %1697
  %1699 = vrot.lane.b32.xlu0 %v355, 6
  %v1700 = vpop.permute.xlu0 %1699
  %1701 = vrot.lane.b32.xlu0 %v361, 6
  %v1702 = vpop.permute.xlu0 %1701
  %1703 = vrot.lane.b32.xlu0 %v367, 6
  %v1704 = vpop.permute.xlu0 %1703
  %1705 = vrot.lane.b32.xlu0 %v327, 6
  %v1706 = vpop.permute.xlu0 %1705
  %1707 = vrot.lane.b32.xlu0 %v333, 6
  %v1708 = vpop.permute.xlu0 %1707
  %1709 = vrot.lane.b32.xlu0 %v339, 6
  %v1710 = vpop.permute.xlu0 %1709
  %1711 = vrot.lane.b32.xlu0 %v345, 6
  %v1712 = vpop.permute.xlu0 %1711
  %1713 = vrot.lane.b32.xlu0 %v351, 6
  %v1714 = vpop.permute.xlu0 %1713
  %1715 = vrot.lane.b32.xlu0 %v357, 6
  %v1716 = vpop.permute.xlu0 %1715
  %1717 = vrot.lane.b32.xlu0 %v363, 6
  %v1718 = vpop.permute.xlu0 %1717
  %1719 = vrot.lane.b32.xlu0 %v369, 6
  %v1720 = vpop.permute.xlu0 %1719
  %v1721 = vsel %vm734, %v1690, %v1706
  %v1722 = vsel %vm734, %v1692, %v1708
  %v1723 = vsel %vm734, %v1694, %v1710
  %v1724 = vsel %vm734, %v1696, %v1712
  %v1725 = vsel %vm734, %v1698, %v1714
  %v1726 = vsel %vm734, %v1700, %v1716
  %v1727 = vsel %vm734, %v1702, %v1718
  %v1728 = vsel %vm734, %v1704, %v1720
  %v1729 = vsel %vm734, %v1706, %v1690
  %v1730 = vsel %vm734, %v1708, %v1692
  %v1731 = vsel %vm734, %v1710, %v1694
  %v1732 = vsel %vm734, %v1712, %v1696
  %v1733 = vsel %vm734, %v1714, %v1698
  %v1734 = vsel %vm734, %v1716, %v1700
  %v1735 = vsel %vm734, %v1718, %v1702
  %v1736 = vsel %vm734, %v1720, %v1704
  %v1737 = vsel %vm753, %v1673, %v1729
  %v1738 = vsel %vm754, %v1681, %v1721
  %v1739 = vsel %vm753, %v1674, %v1730
  %v1740 = vsel %vm754, %v1682, %v1722
  %v1741 = vsel %vm753, %v1675, %v1731
  %v1742 = vsel %vm754, %v1683, %v1723
  %v1743 = vsel %vm753, %v1676, %v1732
  %v1744 = vsel %vm754, %v1684, %v1724
  %v1745 = vsel %vm753, %v1677, %v1733
  %v1746 = vsel %vm754, %v1685, %v1725
  %v1747 = vsel %vm753, %v1678, %v1734
  %v1748 = vsel %vm754, %v1686, %v1726
  %v1749 = vsel %vm753, %v1679, %v1735
  %v1750 = vsel %vm754, %v1687, %v1727
  %v1751 = vsel %vm753, %v1680, %v1736
  %v1752 = vsel %vm754, %v1688, %v1728
  %1753 = vrot.lane.b32.xlu0 %v438, 126
  %v1754 = vpop.permute.xlu0 %1753
  %1755 = vrot.lane.b32.xlu0 %v444, 126
  %v1756 = vpop.permute.xlu0 %1755
  %1757 = vrot.lane.b32.xlu0 %v450, 126
  %v1758 = vpop.permute.xlu0 %1757
  %1759 = vrot.lane.b32.xlu0 %v456, 126
  %v1760 = vpop.permute.xlu0 %1759
  %1761 = vrot.lane.b32.xlu0 %v462, 126
  %v1762 = vpop.permute.xlu0 %1761
  %1763 = vrot.lane.b32.xlu0 %v468, 126
  %v1764 = vpop.permute.xlu0 %1763
  %1765 = vrot.lane.b32.xlu0 %v474, 126
  %v1766 = vpop.permute.xlu0 %1765
  %1767 = vrot.lane.b32.xlu0 %v480, 126
  %v1768 = vpop.permute.xlu0 %1767
  %1769 = vrot.lane.b32.xlu0 %v440, 126
  %v1770 = vpop.permute.xlu0 %1769
  %1771 = vrot.lane.b32.xlu0 %v446, 126
  %v1772 = vpop.permute.xlu0 %1771
  %1773 = vrot.lane.b32.xlu0 %v452, 126
  %v1774 = vpop.permute.xlu0 %1773
  %1775 = vrot.lane.b32.xlu0 %v458, 126
  %v1776 = vpop.permute.xlu0 %1775
  %1777 = vrot.lane.b32.xlu0 %v464, 126
  %v1778 = vpop.permute.xlu0 %1777
  %1779 = vrot.lane.b32.xlu0 %v470, 126
  %v1780 = vpop.permute.xlu0 %1779
  %1781 = vrot.lane.b32.xlu0 %v476, 126
  %v1782 = vpop.permute.xlu0 %1781
  %1783 = vrot.lane.b32.xlu0 %v482, 126
  %v1784 = vpop.permute.xlu0 %1783
  %v1785 = vsel %vm685, %v1754, %v1770
  %v1786 = vsel %vm685, %v1756, %v1772
  %v1787 = vsel %vm685, %v1758, %v1774
  %v1788 = vsel %vm685, %v1760, %v1776
  %v1789 = vsel %vm685, %v1762, %v1778
  %v1790 = vsel %vm685, %v1764, %v1780
  %v1791 = vsel %vm685, %v1766, %v1782
  %v1792 = vsel %vm685, %v1768, %v1784
  %v1793 = vsel %vm685, %v1770, %v1754
  %v1794 = vsel %vm685, %v1772, %v1756
  %v1795 = vsel %vm685, %v1774, %v1758
  %v1796 = vsel %vm685, %v1776, %v1760
  %v1797 = vsel %vm685, %v1778, %v1762
  %v1798 = vsel %vm685, %v1780, %v1764
  %v1799 = vsel %vm685, %v1782, %v1766
  %v1800 = vsel %vm685, %v1784, %v1768
  %1801 = vrot.lane.b32.xlu0 %v438, 6
  %v1802 = vpop.permute.xlu0 %1801
  %1803 = vrot.lane.b32.xlu0 %v444, 6
  %v1804 = vpop.permute.xlu0 %1803
  %1805 = vrot.lane.b32.xlu0 %v450, 6
  %v1806 = vpop.permute.xlu0 %1805
  %1807 = vrot.lane.b32.xlu0 %v456, 6
  %v1808 = vpop.permute.xlu0 %1807
  %1809 = vrot.lane.b32.xlu0 %v462, 6
  %v1810 = vpop.permute.xlu0 %1809
  %1811 = vrot.lane.b32.xlu0 %v468, 6
  %v1812 = vpop.permute.xlu0 %1811
  %1813 = vrot.lane.b32.xlu0 %v474, 6
  %v1814 = vpop.permute.xlu0 %1813
  %1815 = vrot.lane.b32.xlu0 %v480, 6
  %v1816 = vpop.permute.xlu0 %1815
  %1817 = vrot.lane.b32.xlu0 %v440, 6
  %v1818 = vpop.permute.xlu0 %1817
  %1819 = vrot.lane.b32.xlu0 %v446, 6
  %v1820 = vpop.permute.xlu0 %1819
  %1821 = vrot.lane.b32.xlu0 %v452, 6
  %v1822 = vpop.permute.xlu0 %1821
  %1823 = vrot.lane.b32.xlu0 %v458, 6
  %v1824 = vpop.permute.xlu0 %1823
  %1825 = vrot.lane.b32.xlu0 %v464, 6
  %v1826 = vpop.permute.xlu0 %1825
  %1827 = vrot.lane.b32.xlu0 %v470, 6
  %v1828 = vpop.permute.xlu0 %1827
  %1829 = vrot.lane.b32.xlu0 %v476, 6
  %v1830 = vpop.permute.xlu0 %1829
  %1831 = vrot.lane.b32.xlu0 %v482, 6
  %v1832 = vpop.permute.xlu0 %1831
  %v1833 = vsel %vm734, %v1802, %v1818
  %v1834 = vsel %vm734, %v1804, %v1820
  %v1835 = vsel %vm734, %v1806, %v1822
  %v1836 = vsel %vm734, %v1808, %v1824
  %v1837 = vsel %vm734, %v1810, %v1826
  %v1838 = vsel %vm734, %v1812, %v1828
  %v1839 = vsel %vm734, %v1814, %v1830
  %v1840 = vsel %vm734, %v1816, %v1832
  %v1841 = vsel %vm734, %v1818, %v1802
  %v1842 = vsel %vm734, %v1820, %v1804
  %v1843 = vsel %vm734, %v1822, %v1806
  %v1844 = vsel %vm734, %v1824, %v1808
  %v1845 = vsel %vm734, %v1826, %v1810
  %v1846 = vsel %vm734, %v1828, %v1812
  %v1847 = vsel %vm734, %v1830, %v1814
  %v1848 = vsel %vm734, %v1832, %v1816
  %v1849 = vsel %vm753, %v1785, %v1841
  %v1850 = vsel %vm754, %v1793, %v1833
  %v1851 = vsel %vm753, %v1786, %v1842
  %v1852 = vsel %vm754, %v1794, %v1834
  %v1853 = vsel %vm753, %v1787, %v1843
  %v1854 = vsel %vm754, %v1795, %v1835
  %v1855 = vsel %vm753, %v1788, %v1844
  %v1856 = vsel %vm754, %v1796, %v1836
  %v1857 = vsel %vm753, %v1789, %v1845
  %v1858 = vsel %vm754, %v1797, %v1837
  %v1859 = vsel %vm753, %v1790, %v1846
  %v1860 = vsel %vm754, %v1798, %v1838
  %v1861 = vsel %vm753, %v1791, %v1847
  %v1862 = vsel %vm754, %v1799, %v1839
  %v1863 = vsel %vm753, %v1792, %v1848
  %v1864 = vsel %vm754, %v1800, %v1840
  %v1865 = vmul.f32 %v212, %v1737
  %v1866 = vmul.f32 %v214, %v1738
  %v1867 = vmul.f32 %v218, %v1739
  %v1868 = vmul.f32 %v220, %v1740
  %v1869 = vmul.f32 %v224, %v1741
  %v1870 = vmul.f32 %v226, %v1742
  %v1871 = vmul.f32 %v230, %v1743
  %v1872 = vmul.f32 %v232, %v1744
  %v1873 = vmul.f32 %v236, %v1745
  %v1874 = vmul.f32 %v238, %v1746
  %v1875 = vmul.f32 %v242, %v1747
  %v1876 = vmul.f32 %v244, %v1748
  %v1877 = vmul.f32 %v248, %v1749
  %v1878 = vmul.f32 %v250, %v1750
  %v1879 = vmul.f32 %v254, %v1751
  %v1880 = vmul.f32 %v256, %v1752
  %v1881 = vsub.f32 %v1865, %v1209
  %v1882 = vsub.f32 %v1866, %v1210
  %v1883 = vsub.f32 %v1867, %v1211
  %v1884 = vsub.f32 %v1868, %v1212
  %v1885 = vsub.f32 %v1869, %v1213
  %v1886 = vsub.f32 %v1870, %v1214
  %v1887 = vsub.f32 %v1871, %v1215
  %v1888 = vsub.f32 %v1872, %v1216
  %v1889 = vsub.f32 %v1873, %v1217
  %v1890 = vsub.f32 %v1874, %v1218
  %v1891 = vsub.f32 %v1875, %v1219
  %v1892 = vsub.f32 %v1876, %v1220
  %v1893 = vsub.f32 %v1877, %v1221
  %v1894 = vsub.f32 %v1878, %v1222
  %v1895 = vsub.f32 %v1879, %v1223
  %v1896 = vsub.f32 %v1880, %v1224
  %v1897 = vmul.f32 %v1881, 1.442695
  %v1898 = vpow.pop %v1897
  %v1899 = vmul.f32 %v1882, 1.442695
  %v1900 = vpow.pop %v1899
  %v1901 = vmul.f32 %v1883, 1.442695
  %v1902 = vpow.pop %v1901
  %v1903 = vmul.f32 %v1884, 1.442695
  %v1904 = vpow.pop %v1903
  %v1905 = vmul.f32 %v1885, 1.442695
  %v1906 = vpow.pop %v1905
  %v1907 = vmul.f32 %v1886, 1.442695
  %v1908 = vpow.pop %v1907
  %v1909 = vmul.f32 %v1887, 1.442695
  %v1910 = vpow.pop %v1909
  %v1911 = vmul.f32 %v1888, 1.442695
  %v1912 = vpow.pop %v1911
  %v1913 = vmul.f32 %v1889, 1.442695
  %v1914 = vpow.pop %v1913
  %v1915 = vmul.f32 %v1890, 1.442695
  %v1916 = vpow.pop %v1915
  %v1917 = vmul.f32 %v1891, 1.442695
  %v1918 = vpow.pop %v1917
  %v1919 = vmul.f32 %v1892, 1.442695
  %v1920 = vpow.pop %v1919
  %v1921 = vmul.f32 %v1893, 1.442695
  %v1922 = vpow.pop %v1921
  %v1923 = vmul.f32 %v1894, 1.442695
  %v1924 = vpow.pop %v1923
  %v1925 = vmul.f32 %v1895, 1.442695
  %v1926 = vpow.pop %v1925
  %v1927 = vmul.f32 %v1896, 1.442695
  %v1928 = vpow.pop %v1927
  %v1929 = vadd.f32 %v1593, %v1898
  %v1930 = vadd.f32 %v1594, %v1900
  %v1931 = vadd.f32 %v1595, %v1902
  %v1932 = vadd.f32 %v1596, %v1904
  %v1933 = vadd.f32 %v1597, %v1906
  %v1934 = vadd.f32 %v1598, %v1908
  %v1935 = vadd.f32 %v1599, %v1910
  %v1936 = vadd.f32 %v1600, %v1912
  %v1937 = vadd.f32 %v1601, %v1914
  %v1938 = vadd.f32 %v1602, %v1916
  %v1939 = vadd.f32 %v1603, %v1918
  %v1940 = vadd.f32 %v1604, %v1920
  %v1941 = vadd.f32 %v1605, %v1922
  %v1942 = vadd.f32 %v1606, %v1924
  %v1943 = vadd.f32 %v1607, %v1926
  %v1944 = vadd.f32 %v1608, %v1928
  %v1945 = vmul.f32 %v1898, %v1849
  %v1946 = vmul.f32 %v1900, %v1850
  %v1947 = vmul.f32 %v1902, %v1851
  %v1948 = vmul.f32 %v1904, %v1852
  %v1949 = vmul.f32 %v1906, %v1853
  %v1950 = vmul.f32 %v1908, %v1854
  %v1951 = vmul.f32 %v1910, %v1855
  %v1952 = vmul.f32 %v1912, %v1856
  %v1953 = vmul.f32 %v1914, %v1857
  %v1954 = vmul.f32 %v1916, %v1858
  %v1955 = vmul.f32 %v1918, %v1859
  %v1956 = vmul.f32 %v1920, %v1860
  %v1957 = vmul.f32 %v1922, %v1861
  %v1958 = vmul.f32 %v1924, %v1862
  %v1959 = vmul.f32 %v1926, %v1863
  %v1960 = vmul.f32 %v1928, %v1864
  %v1961 = vadd.f32 %v1625, %v1945
  %v1962 = vadd.f32 %v1626, %v1946
  %v1963 = vadd.f32 %v1627, %v1947
  %v1964 = vadd.f32 %v1628, %v1948
  %v1965 = vadd.f32 %v1629, %v1949
  %v1966 = vadd.f32 %v1630, %v1950
  %v1967 = vadd.f32 %v1631, %v1951
  %v1968 = vadd.f32 %v1632, %v1952
  %v1969 = vadd.f32 %v1633, %v1953
  %v1970 = vadd.f32 %v1634, %v1954
  %v1971 = vadd.f32 %v1635, %v1955
  %v1972 = vadd.f32 %v1636, %v1956
  %v1973 = vadd.f32 %v1637, %v1957
  %v1974 = vadd.f32 %v1638, %v1958
  %v1975 = vadd.f32 %v1639, %v1959
  %v1976 = vadd.f32 %v1640, %v1960
  %1977 = vrot.lane.b32.xlu0 %v325, 125
  %v1978 = vpop.permute.xlu0 %1977
  %1979 = vrot.lane.b32.xlu0 %v331, 125
  %v1980 = vpop.permute.xlu0 %1979
  %1981 = vrot.lane.b32.xlu0 %v337, 125
  %v1982 = vpop.permute.xlu0 %1981
  %1983 = vrot.lane.b32.xlu0 %v343, 125
  %v1984 = vpop.permute.xlu0 %1983
  %1985 = vrot.lane.b32.xlu0 %v349, 125
  %v1986 = vpop.permute.xlu0 %1985
  %1987 = vrot.lane.b32.xlu0 %v355, 125
  %v1988 = vpop.permute.xlu0 %1987
  %1989 = vrot.lane.b32.xlu0 %v361, 125
  %v1990 = vpop.permute.xlu0 %1989
  %1991 = vrot.lane.b32.xlu0 %v367, 125
  %v1992 = vpop.permute.xlu0 %1991
  %1993 = vrot.lane.b32.xlu0 %v327, 125
  %v1994 = vpop.permute.xlu0 %1993
  %1995 = vrot.lane.b32.xlu0 %v333, 125
  %v1996 = vpop.permute.xlu0 %1995
  %1997 = vrot.lane.b32.xlu0 %v339, 125
  %v1998 = vpop.permute.xlu0 %1997
  %1999 = vrot.lane.b32.xlu0 %v345, 125
  %v2000 = vpop.permute.xlu0 %1999
  %2001 = vrot.lane.b32.xlu0 %v351, 125
  %v2002 = vpop.permute.xlu0 %2001
  %2003 = vrot.lane.b32.xlu0 %v357, 125
  %v2004 = vpop.permute.xlu0 %2003
  %2005 = vrot.lane.b32.xlu0 %v363, 125
  %v2006 = vpop.permute.xlu0 %2005
  %2007 = vrot.lane.b32.xlu0 %v369, 125
  %v2008 = vpop.permute.xlu0 %2007
  %vm2009 = vcmp.lt.s32.totalorder %v485, 125
  %v2010 = vsel %vm2009, %v1978, %v1994
  %v2011 = vsel %vm2009, %v1980, %v1996
  %v2012 = vsel %vm2009, %v1982, %v1998
  %v2013 = vsel %vm2009, %v1984, %v2000
  %v2014 = vsel %vm2009, %v1986, %v2002
  %v2015 = vsel %vm2009, %v1988, %v2004
  %v2016 = vsel %vm2009, %v1990, %v2006
  %v2017 = vsel %vm2009, %v1992, %v2008
  %v2018 = vsel %vm2009, %v1994, %v1978
  %v2019 = vsel %vm2009, %v1996, %v1980
  %v2020 = vsel %vm2009, %v1998, %v1982
  %v2021 = vsel %vm2009, %v2000, %v1984
  %v2022 = vsel %vm2009, %v2002, %v1986
  %v2023 = vsel %vm2009, %v2004, %v1988
  %v2024 = vsel %vm2009, %v2006, %v1990
  %v2025 = vsel %vm2009, %v2008, %v1992
  %2026 = vrot.lane.b32.xlu0 %v325, 5
  %v2027 = vpop.permute.xlu0 %2026
  %2028 = vrot.lane.b32.xlu0 %v331, 5
  %v2029 = vpop.permute.xlu0 %2028
  %2030 = vrot.lane.b32.xlu0 %v337, 5
  %v2031 = vpop.permute.xlu0 %2030
  %2032 = vrot.lane.b32.xlu0 %v343, 5
  %v2033 = vpop.permute.xlu0 %2032
  %2034 = vrot.lane.b32.xlu0 %v349, 5
  %v2035 = vpop.permute.xlu0 %2034
  %2036 = vrot.lane.b32.xlu0 %v355, 5
  %v2037 = vpop.permute.xlu0 %2036
  %2038 = vrot.lane.b32.xlu0 %v361, 5
  %v2039 = vpop.permute.xlu0 %2038
  %2040 = vrot.lane.b32.xlu0 %v367, 5
  %v2041 = vpop.permute.xlu0 %2040
  %2042 = vrot.lane.b32.xlu0 %v327, 5
  %v2043 = vpop.permute.xlu0 %2042
  %2044 = vrot.lane.b32.xlu0 %v333, 5
  %v2045 = vpop.permute.xlu0 %2044
  %2046 = vrot.lane.b32.xlu0 %v339, 5
  %v2047 = vpop.permute.xlu0 %2046
  %2048 = vrot.lane.b32.xlu0 %v345, 5
  %v2049 = vpop.permute.xlu0 %2048
  %2050 = vrot.lane.b32.xlu0 %v351, 5
  %v2051 = vpop.permute.xlu0 %2050
  %2052 = vrot.lane.b32.xlu0 %v357, 5
  %v2053 = vpop.permute.xlu0 %2052
  %2054 = vrot.lane.b32.xlu0 %v363, 5
  %v2055 = vpop.permute.xlu0 %2054
  %2056 = vrot.lane.b32.xlu0 %v369, 5
  %v2057 = vpop.permute.xlu0 %2056
  %vm2058 = vcmp.lt.s32.totalorder %v485, 5
  %v2059 = vsel %vm2058, %v2027, %v2043
  %v2060 = vsel %vm2058, %v2029, %v2045
  %v2061 = vsel %vm2058, %v2031, %v2047
  %v2062 = vsel %vm2058, %v2033, %v2049
  %v2063 = vsel %vm2058, %v2035, %v2051
  %v2064 = vsel %vm2058, %v2037, %v2053
  %v2065 = vsel %vm2058, %v2039, %v2055
  %v2066 = vsel %vm2058, %v2041, %v2057
  %v2067 = vsel %vm2058, %v2043, %v2027
  %v2068 = vsel %vm2058, %v2045, %v2029
  %v2069 = vsel %vm2058, %v2047, %v2031
  %v2070 = vsel %vm2058, %v2049, %v2033
  %v2071 = vsel %vm2058, %v2051, %v2035
  %v2072 = vsel %vm2058, %v2053, %v2037
  %v2073 = vsel %vm2058, %v2055, %v2039
  %v2074 = vsel %vm2058, %v2057, %v2041
  %v2075 = vsel %vm493, 1, 0
  %v2076 = vsel %vm494, 1, 0
  %vm2077 = vcmp.eq.s32.totalorder %v2075, 1
  %vm2078 = vcmp.eq.s32.totalorder %v2076, 1
  %v2079 = vsel %vm2077, %v2010, %v2067
  %v2080 = vsel %vm2078, %v2018, %v2059
  %v2081 = vsel %vm2077, %v2011, %v2068
  %v2082 = vsel %vm2078, %v2019, %v2060
  %v2083 = vsel %vm2077, %v2012, %v2069
  %v2084 = vsel %vm2078, %v2020, %v2061
  %v2085 = vsel %vm2077, %v2013, %v2070
  %v2086 = vsel %vm2078, %v2021, %v2062
  %v2087 = vsel %vm2077, %v2014, %v2071
  %v2088 = vsel %vm2078, %v2022, %v2063
  %v2089 = vsel %vm2077, %v2015, %v2072
  %v2090 = vsel %vm2078, %v2023, %v2064
  %v2091 = vsel %vm2077, %v2016, %v2073
  %v2092 = vsel %vm2078, %v2024, %v2065
  %v2093 = vsel %vm2077, %v2017, %v2074
  %v2094 = vsel %vm2078, %v2025, %v2066
  %2095 = vrot.lane.b32.xlu0 %v438, 125
  %v2096 = vpop.permute.xlu0 %2095
  %2097 = vrot.lane.b32.xlu0 %v444, 125
  %v2098 = vpop.permute.xlu0 %2097
  %2099 = vrot.lane.b32.xlu0 %v450, 125
  %v2100 = vpop.permute.xlu0 %2099
  %2101 = vrot.lane.b32.xlu0 %v456, 125
  %v2102 = vpop.permute.xlu0 %2101
  %2103 = vrot.lane.b32.xlu0 %v462, 125
  %v2104 = vpop.permute.xlu0 %2103
  %2105 = vrot.lane.b32.xlu0 %v468, 125
  %v2106 = vpop.permute.xlu0 %2105
  %2107 = vrot.lane.b32.xlu0 %v474, 125
  %v2108 = vpop.permute.xlu0 %2107
  %2109 = vrot.lane.b32.xlu0 %v480, 125
  %v2110 = vpop.permute.xlu0 %2109
  %2111 = vrot.lane.b32.xlu0 %v440, 125
  %v2112 = vpop.permute.xlu0 %2111
  %2113 = vrot.lane.b32.xlu0 %v446, 125
  %v2114 = vpop.permute.xlu0 %2113
  %2115 = vrot.lane.b32.xlu0 %v452, 125
  %v2116 = vpop.permute.xlu0 %2115
  %2117 = vrot.lane.b32.xlu0 %v458, 125
  %v2118 = vpop.permute.xlu0 %2117
  %2119 = vrot.lane.b32.xlu0 %v464, 125
  %v2120 = vpop.permute.xlu0 %2119
  %2121 = vrot.lane.b32.xlu0 %v470, 125
  %v2122 = vpop.permute.xlu0 %2121
  %2123 = vrot.lane.b32.xlu0 %v476, 125
  %v2124 = vpop.permute.xlu0 %2123
  %2125 = vrot.lane.b32.xlu0 %v482, 125
  %v2126 = vpop.permute.xlu0 %2125
  %v2127 = vsel %vm2009, %v2096, %v2112
  %v2128 = vsel %vm2009, %v2098, %v2114
  %v2129 = vsel %vm2009, %v2100, %v2116
  %v2130 = vsel %vm2009, %v2102, %v2118
  %v2131 = vsel %vm2009, %v2104, %v2120
  %v2132 = vsel %vm2009, %v2106, %v2122
  %v2133 = vsel %vm2009, %v2108, %v2124
  %v2134 = vsel %vm2009, %v2110, %v2126
  %v2135 = vsel %vm2009, %v2112, %v2096
  %v2136 = vsel %vm2009, %v2114, %v2098
  %v2137 = vsel %vm2009, %v2116, %v2100
  %v2138 = vsel %vm2009, %v2118, %v2102
  %v2139 = vsel %vm2009, %v2120, %v2104
  %v2140 = vsel %vm2009, %v2122, %v2106
  %v2141 = vsel %vm2009, %v2124, %v2108
  %v2142 = vsel %vm2009, %v2126, %v2110
  %2143 = vrot.lane.b32.xlu0 %v438, 5
  %v2144 = vpop.permute.xlu0 %2143
  %2145 = vrot.lane.b32.xlu0 %v444, 5
  %v2146 = vpop.permute.xlu0 %2145
  %2147 = vrot.lane.b32.xlu0 %v450, 5
  %v2148 = vpop.permute.xlu0 %2147
  %2149 = vrot.lane.b32.xlu0 %v456, 5
  %v2150 = vpop.permute.xlu0 %2149
  %2151 = vrot.lane.b32.xlu0 %v462, 5
  %v2152 = vpop.permute.xlu0 %2151
  %2153 = vrot.lane.b32.xlu0 %v468, 5
  %v2154 = vpop.permute.xlu0 %2153
  %2155 = vrot.lane.b32.xlu0 %v474, 5
  %v2156 = vpop.permute.xlu0 %2155
  %2157 = vrot.lane.b32.xlu0 %v480, 5
  %v2158 = vpop.permute.xlu0 %2157
  %2159 = vrot.lane.b32.xlu0 %v440, 5
  %v2160 = vpop.permute.xlu0 %2159
  %2161 = vrot.lane.b32.xlu0 %v446, 5
  %v2162 = vpop.permute.xlu0 %2161
  %2163 = vrot.lane.b32.xlu0 %v452, 5
  %v2164 = vpop.permute.xlu0 %2163
  %2165 = vrot.lane.b32.xlu0 %v458, 5
  %v2166 = vpop.permute.xlu0 %2165
  %2167 = vrot.lane.b32.xlu0 %v464, 5
  %v2168 = vpop.permute.xlu0 %2167
  %2169 = vrot.lane.b32.xlu0 %v470, 5
  %v2170 = vpop.permute.xlu0 %2169
  %2171 = vrot.lane.b32.xlu0 %v476, 5
  %v2172 = vpop.permute.xlu0 %2171
  %2173 = vrot.lane.b32.xlu0 %v482, 5
  %v2174 = vpop.permute.xlu0 %2173
  %v2175 = vsel %vm2058, %v2144, %v2160
  %v2176 = vsel %vm2058, %v2146, %v2162
  %v2177 = vsel %vm2058, %v2148, %v2164
  %v2178 = vsel %vm2058, %v2150, %v2166
  %v2179 = vsel %vm2058, %v2152, %v2168
  %v2180 = vsel %vm2058, %v2154, %v2170
  %v2181 = vsel %vm2058, %v2156, %v2172
  %v2182 = vsel %vm2058, %v2158, %v2174
  %v2183 = vsel %vm2058, %v2160, %v2144
  %v2184 = vsel %vm2058, %v2162, %v2146
  %v2185 = vsel %vm2058, %v2164, %v2148
  %v2186 = vsel %vm2058, %v2166, %v2150
  %v2187 = vsel %vm2058, %v2168, %v2152
  %v2188 = vsel %vm2058, %v2170, %v2154
  %v2189 = vsel %vm2058, %v2172, %v2156
  %v2190 = vsel %vm2058, %v2174, %v2158
  %v2191 = vsel %vm2077, %v2127, %v2183
  %v2192 = vsel %vm2078, %v2135, %v2175
  %v2193 = vsel %vm2077, %v2128, %v2184
  %v2194 = vsel %vm2078, %v2136, %v2176
  %v2195 = vsel %vm2077, %v2129, %v2185
  %v2196 = vsel %vm2078, %v2137, %v2177
  %v2197 = vsel %vm2077, %v2130, %v2186
  %v2198 = vsel %vm2078, %v2138, %v2178
  %v2199 = vsel %vm2077, %v2131, %v2187
  %v2200 = vsel %vm2078, %v2139, %v2179
  %v2201 = vsel %vm2077, %v2132, %v2188
  %v2202 = vsel %vm2078, %v2140, %v2180
  %v2203 = vsel %vm2077, %v2133, %v2189
  %v2204 = vsel %vm2078, %v2141, %v2181
  %v2205 = vsel %vm2077, %v2134, %v2190
  %v2206 = vsel %vm2078, %v2142, %v2182
  %v2207 = vmul.f32 %v212, %v2079
  %v2208 = vmul.f32 %v214, %v2080
  %v2209 = vmul.f32 %v218, %v2081
  %v2210 = vmul.f32 %v220, %v2082
  %v2211 = vmul.f32 %v224, %v2083
  %v2212 = vmul.f32 %v226, %v2084
  %v2213 = vmul.f32 %v230, %v2085
  %v2214 = vmul.f32 %v232, %v2086
  %v2215 = vmul.f32 %v236, %v2087
  %v2216 = vmul.f32 %v238, %v2088
  %v2217 = vmul.f32 %v242, %v2089
  %v2218 = vmul.f32 %v244, %v2090
  %v2219 = vmul.f32 %v248, %v2091
  %v2220 = vmul.f32 %v250, %v2092
  %v2221 = vmul.f32 %v254, %v2093
  %v2222 = vmul.f32 %v256, %v2094
  %v2223 = vsub.f32 %v2207, %v1209
  %v2224 = vsub.f32 %v2208, %v1210
  %v2225 = vsub.f32 %v2209, %v1211
  %v2226 = vsub.f32 %v2210, %v1212
  %v2227 = vsub.f32 %v2211, %v1213
  %v2228 = vsub.f32 %v2212, %v1214
  %v2229 = vsub.f32 %v2213, %v1215
  %v2230 = vsub.f32 %v2214, %v1216
  %v2231 = vsub.f32 %v2215, %v1217
  %v2232 = vsub.f32 %v2216, %v1218
  %v2233 = vsub.f32 %v2217, %v1219
  %v2234 = vsub.f32 %v2218, %v1220
  %v2235 = vsub.f32 %v2219, %v1221
  %v2236 = vsub.f32 %v2220, %v1222
  %v2237 = vsub.f32 %v2221, %v1223
  %v2238 = vsub.f32 %v2222, %v1224
  %v2239 = vmul.f32 %v2223, 1.442695
  %v2240 = vpow.pop %v2239
  %v2241 = vmul.f32 %v2224, 1.442695
  %v2242 = vpow.pop %v2241
  %v2243 = vmul.f32 %v2225, 1.442695
  %v2244 = vpow.pop %v2243
  %v2245 = vmul.f32 %v2226, 1.442695
  %v2246 = vpow.pop %v2245
  %v2247 = vmul.f32 %v2227, 1.442695
  %v2248 = vpow.pop %v2247
  %v2249 = vmul.f32 %v2228, 1.442695
  %v2250 = vpow.pop %v2249
  %v2251 = vmul.f32 %v2229, 1.442695
  %v2252 = vpow.pop %v2251
  %v2253 = vmul.f32 %v2230, 1.442695
  %v2254 = vpow.pop %v2253
  %v2255 = vmul.f32 %v2231, 1.442695
  %v2256 = vpow.pop %v2255
  %v2257 = vmul.f32 %v2232, 1.442695
  %v2258 = vpow.pop %v2257
  %v2259 = vmul.f32 %v2233, 1.442695
  %v2260 = vpow.pop %v2259
  %v2261 = vmul.f32 %v2234, 1.442695
  %v2262 = vpow.pop %v2261
  %v2263 = vmul.f32 %v2235, 1.442695
  %v2264 = vpow.pop %v2263
  %v2265 = vmul.f32 %v2236, 1.442695
  %v2266 = vpow.pop %v2265
  %v2267 = vmul.f32 %v2237, 1.442695
  %v2268 = vpow.pop %v2267
  %v2269 = vmul.f32 %v2238, 1.442695
  %v2270 = vpow.pop %v2269
  %v2271 = vadd.f32 %v1929, %v2240
  %v2272 = vadd.f32 %v1930, %v2242
  %v2273 = vadd.f32 %v1931, %v2244
  %v2274 = vadd.f32 %v1932, %v2246
  %v2275 = vadd.f32 %v1933, %v2248
  %v2276 = vadd.f32 %v1934, %v2250
  %v2277 = vadd.f32 %v1935, %v2252
  %v2278 = vadd.f32 %v1936, %v2254
  %v2279 = vadd.f32 %v1937, %v2256
  %v2280 = vadd.f32 %v1938, %v2258
  %v2281 = vadd.f32 %v1939, %v2260
  %v2282 = vadd.f32 %v1940, %v2262
  %v2283 = vadd.f32 %v1941, %v2264
  %v2284 = vadd.f32 %v1942, %v2266
  %v2285 = vadd.f32 %v1943, %v2268
  %v2286 = vadd.f32 %v1944, %v2270
  %v2287 = vmul.f32 %v2240, %v2191
  %v2288 = vmul.f32 %v2242, %v2192
  %v2289 = vmul.f32 %v2244, %v2193
  %v2290 = vmul.f32 %v2246, %v2194
  %v2291 = vmul.f32 %v2248, %v2195
  %v2292 = vmul.f32 %v2250, %v2196
  %v2293 = vmul.f32 %v2252, %v2197
  %v2294 = vmul.f32 %v2254, %v2198
  %v2295 = vmul.f32 %v2256, %v2199
  %v2296 = vmul.f32 %v2258, %v2200
  %v2297 = vmul.f32 %v2260, %v2201
  %v2298 = vmul.f32 %v2262, %v2202
  %v2299 = vmul.f32 %v2264, %v2203
  %v2300 = vmul.f32 %v2266, %v2204
  %v2301 = vmul.f32 %v2268, %v2205
  %v2302 = vmul.f32 %v2270, %v2206
  %v2303 = vadd.f32 %v1961, %v2287
  %v2304 = vadd.f32 %v1962, %v2288
  %v2305 = vadd.f32 %v1963, %v2289
  %v2306 = vadd.f32 %v1964, %v2290
  %v2307 = vadd.f32 %v1965, %v2291
  %v2308 = vadd.f32 %v1966, %v2292
  %v2309 = vadd.f32 %v1967, %v2293
  %v2310 = vadd.f32 %v1968, %v2294
  %v2311 = vadd.f32 %v1969, %v2295
  %v2312 = vadd.f32 %v1970, %v2296
  %v2313 = vadd.f32 %v1971, %v2297
  %v2314 = vadd.f32 %v1972, %v2298
  %v2315 = vadd.f32 %v1973, %v2299
  %v2316 = vadd.f32 %v1974, %v2300
  %v2317 = vadd.f32 %v1975, %v2301
  %v2318 = vadd.f32 %v1976, %v2302
  %2319 = vrot.lane.b32.xlu0 %v438, 124
  %v2320 = vpop.permute.xlu0 %2319
  %2321 = vrot.lane.b32.xlu0 %v444, 124
  %v2322 = vpop.permute.xlu0 %2321
  %2323 = vrot.lane.b32.xlu0 %v450, 124
  %v2324 = vpop.permute.xlu0 %2323
  %2325 = vrot.lane.b32.xlu0 %v456, 124
  %v2326 = vpop.permute.xlu0 %2325
  %2327 = vrot.lane.b32.xlu0 %v462, 124
  %v2328 = vpop.permute.xlu0 %2327
  %2329 = vrot.lane.b32.xlu0 %v468, 124
  %v2330 = vpop.permute.xlu0 %2329
  %2331 = vrot.lane.b32.xlu0 %v474, 124
  %v2332 = vpop.permute.xlu0 %2331
  %2333 = vrot.lane.b32.xlu0 %v480, 124
  %v2334 = vpop.permute.xlu0 %2333
  %2335 = vrot.lane.b32.xlu0 %v440, 124
  %v2336 = vpop.permute.xlu0 %2335
  %2337 = vrot.lane.b32.xlu0 %v446, 124
  %v2338 = vpop.permute.xlu0 %2337
  %2339 = vrot.lane.b32.xlu0 %v452, 124
  %v2340 = vpop.permute.xlu0 %2339
  %2341 = vrot.lane.b32.xlu0 %v458, 124
  %v2342 = vpop.permute.xlu0 %2341
  %2343 = vrot.lane.b32.xlu0 %v464, 124
  %v2344 = vpop.permute.xlu0 %2343
  %2345 = vrot.lane.b32.xlu0 %v470, 124
  %v2346 = vpop.permute.xlu0 %2345
  %2347 = vrot.lane.b32.xlu0 %v476, 124
  %v2348 = vpop.permute.xlu0 %2347
  %2349 = vrot.lane.b32.xlu0 %v482, 124
  %v2350 = vpop.permute.xlu0 %2349
  %v2351 = vsel %vm535, %v2320, %v2336
  %v2352 = vsel %vm535, %v2322, %v2338
  %v2353 = vsel %vm535, %v2324, %v2340
  %v2354 = vsel %vm535, %v2326, %v2342
  %v2355 = vsel %vm535, %v2328, %v2344
  %v2356 = vsel %vm535, %v2330, %v2346
  %v2357 = vsel %vm535, %v2332, %v2348
  %v2358 = vsel %vm535, %v2334, %v2350
  %v2359 = vsel %vm535, %v2336, %v2320
  %v2360 = vsel %vm535, %v2338, %v2322
  %v2361 = vsel %vm535, %v2340, %v2324
  %v2362 = vsel %vm535, %v2342, %v2326
  %v2363 = vsel %vm535, %v2344, %v2328
  %v2364 = vsel %vm535, %v2346, %v2330
  %v2365 = vsel %vm535, %v2348, %v2332
  %v2366 = vsel %vm535, %v2350, %v2334
  %2367 = vrot.lane.b32.xlu0 %v438, 4
  %v2368 = vpop.permute.xlu0 %2367
  %2369 = vrot.lane.b32.xlu0 %v444, 4
  %v2370 = vpop.permute.xlu0 %2369
  %2371 = vrot.lane.b32.xlu0 %v450, 4
  %v2372 = vpop.permute.xlu0 %2371
  %2373 = vrot.lane.b32.xlu0 %v456, 4
  %v2374 = vpop.permute.xlu0 %2373
  %2375 = vrot.lane.b32.xlu0 %v462, 4
  %v2376 = vpop.permute.xlu0 %2375
  %2377 = vrot.lane.b32.xlu0 %v468, 4
  %v2378 = vpop.permute.xlu0 %2377
  %2379 = vrot.lane.b32.xlu0 %v474, 4
  %v2380 = vpop.permute.xlu0 %2379
  %2381 = vrot.lane.b32.xlu0 %v480, 4
  %v2382 = vpop.permute.xlu0 %2381
  %2383 = vrot.lane.b32.xlu0 %v440, 4
  %v2384 = vpop.permute.xlu0 %2383
  %2385 = vrot.lane.b32.xlu0 %v446, 4
  %v2386 = vpop.permute.xlu0 %2385
  %2387 = vrot.lane.b32.xlu0 %v452, 4
  %v2388 = vpop.permute.xlu0 %2387
  %2389 = vrot.lane.b32.xlu0 %v458, 4
  %v2390 = vpop.permute.xlu0 %2389
  %2391 = vrot.lane.b32.xlu0 %v464, 4
  %v2392 = vpop.permute.xlu0 %2391
  %2393 = vrot.lane.b32.xlu0 %v470, 4
  %v2394 = vpop.permute.xlu0 %2393
  %2395 = vrot.lane.b32.xlu0 %v476, 4
  %v2396 = vpop.permute.xlu0 %2395
  %2397 = vrot.lane.b32.xlu0 %v482, 4
  %v2398 = vpop.permute.xlu0 %2397
  %v2399 = vsel %vm584, %v2368, %v2384
  %v2400 = vsel %vm584, %v2370, %v2386
  %v2401 = vsel %vm584, %v2372, %v2388
  %v2402 = vsel %vm584, %v2374, %v2390
  %v2403 = vsel %vm584, %v2376, %v2392
  %v2404 = vsel %vm584, %v2378, %v2394
  %v2405 = vsel %vm584, %v2380, %v2396
  %v2406 = vsel %vm584, %v2382, %v2398
  %v2407 = vsel %vm584, %v2384, %v2368
  %v2408 = vsel %vm584, %v2386, %v2370
  %v2409 = vsel %vm584, %v2388, %v2372
  %v2410 = vsel %vm584, %v2390, %v2374
  %v2411 = vsel %vm584, %v2392, %v2376
  %v2412 = vsel %vm584, %v2394, %v2378
  %v2413 = vsel %vm584, %v2396, %v2380
  %v2414 = vsel %vm584, %v2398, %v2382
  %v2415 = vsel %vm603, %v2351, %v2407
  %v2416 = vsel %vm604, %v2359, %v2399
  %v2417 = vsel %vm603, %v2352, %v2408
  %v2418 = vsel %vm604, %v2360, %v2400
  %v2419 = vsel %vm603, %v2353, %v2409
  %v2420 = vsel %vm604, %v2361, %v2401
  %v2421 = vsel %vm603, %v2354, %v2410
  %v2422 = vsel %vm604, %v2362, %v2402
  %v2423 = vsel %vm603, %v2355, %v2411
  %v2424 = vsel %vm604, %v2363, %v2403
  %v2425 = vsel %vm603, %v2356, %v2412
  %v2426 = vsel %vm604, %v2364, %v2404
  %v2427 = vsel %vm603, %v2357, %v2413
  %v2428 = vsel %vm604, %v2365, %v2405
  %v2429 = vsel %vm603, %v2358, %v2414
  %v2430 = vsel %vm604, %v2366, %v2406
  %v2431 = vmul.f32 %v212, %v605
  %v2432 = vmul.f32 %v214, %v606
  %v2433 = vmul.f32 %v218, %v607
  %v2434 = vmul.f32 %v220, %v608
  %v2435 = vmul.f32 %v224, %v609
  %v2436 = vmul.f32 %v226, %v610
  %v2437 = vmul.f32 %v230, %v611
  %v2438 = vmul.f32 %v232, %v612
  %v2439 = vmul.f32 %v236, %v613
  %v2440 = vmul.f32 %v238, %v614
  %v2441 = vmul.f32 %v242, %v615
  %v2442 = vmul.f32 %v244, %v616
  %v2443 = vmul.f32 %v248, %v617
  %v2444 = vmul.f32 %v250, %v618
  %v2445 = vmul.f32 %v254, %v619
  %v2446 = vmul.f32 %v256, %v620
  %v2447 = vsub.f32 %v2431, %v1209
  %v2448 = vsub.f32 %v2432, %v1210
  %v2449 = vsub.f32 %v2433, %v1211
  %v2450 = vsub.f32 %v2434, %v1212
  %v2451 = vsub.f32 %v2435, %v1213
  %v2452 = vsub.f32 %v2436, %v1214
  %v2453 = vsub.f32 %v2437, %v1215
  %v2454 = vsub.f32 %v2438, %v1216
  %v2455 = vsub.f32 %v2439, %v1217
  %v2456 = vsub.f32 %v2440, %v1218
  %v2457 = vsub.f32 %v2441, %v1219
  %v2458 = vsub.f32 %v2442, %v1220
  %v2459 = vsub.f32 %v2443, %v1221
  %v2460 = vsub.f32 %v2444, %v1222
  %v2461 = vsub.f32 %v2445, %v1223
  %v2462 = vsub.f32 %v2446, %v1224
  %v2463 = vmul.f32 %v2447, 1.442695
  %v2464 = vpow.pop %v2463
  %v2465 = vmul.f32 %v2448, 1.442695
  %v2466 = vpow.pop %v2465
  %v2467 = vmul.f32 %v2449, 1.442695
  %v2468 = vpow.pop %v2467
  %v2469 = vmul.f32 %v2450, 1.442695
  %v2470 = vpow.pop %v2469
  %v2471 = vmul.f32 %v2451, 1.442695
  %v2472 = vpow.pop %v2471
  %v2473 = vmul.f32 %v2452, 1.442695
  %v2474 = vpow.pop %v2473
  %v2475 = vmul.f32 %v2453, 1.442695
  %v2476 = vpow.pop %v2475
  %v2477 = vmul.f32 %v2454, 1.442695
  %v2478 = vpow.pop %v2477
  %v2479 = vmul.f32 %v2455, 1.442695
  %v2480 = vpow.pop %v2479
  %v2481 = vmul.f32 %v2456, 1.442695
  %v2482 = vpow.pop %v2481
  %v2483 = vmul.f32 %v2457, 1.442695
  %v2484 = vpow.pop %v2483
  %v2485 = vmul.f32 %v2458, 1.442695
  %v2486 = vpow.pop %v2485
  %v2487 = vmul.f32 %v2459, 1.442695
  %v2488 = vpow.pop %v2487
  %v2489 = vmul.f32 %v2460, 1.442695
  %v2490 = vpow.pop %v2489
  %v2491 = vmul.f32 %v2461, 1.442695
  %v2492 = vpow.pop %v2491
  %v2493 = vmul.f32 %v2462, 1.442695
  %v2494 = vpow.pop %v2493
  %v2495 = vadd.f32 %v2271, %v2464
  %v2496 = vadd.f32 %v2272, %v2466
  %v2497 = vadd.f32 %v2273, %v2468
  %v2498 = vadd.f32 %v2274, %v2470
  %v2499 = vadd.f32 %v2275, %v2472
  %v2500 = vadd.f32 %v2276, %v2474
  %v2501 = vadd.f32 %v2277, %v2476
  %v2502 = vadd.f32 %v2278, %v2478
  %v2503 = vadd.f32 %v2279, %v2480
  %v2504 = vadd.f32 %v2280, %v2482
  %v2505 = vadd.f32 %v2281, %v2484
  %v2506 = vadd.f32 %v2282, %v2486
  %v2507 = vadd.f32 %v2283, %v2488
  %v2508 = vadd.f32 %v2284, %v2490
  %v2509 = vadd.f32 %v2285, %v2492
  %v2510 = vadd.f32 %v2286, %v2494
  %v2511 = vmul.f32 %v2464, %v2415
  %v2512 = vmul.f32 %v2466, %v2416
  %v2513 = vmul.f32 %v2468, %v2417
  %v2514 = vmul.f32 %v2470, %v2418
  %v2515 = vmul.f32 %v2472, %v2419
  %v2516 = vmul.f32 %v2474, %v2420
  %v2517 = vmul.f32 %v2476, %v2421
  %v2518 = vmul.f32 %v2478, %v2422
  %v2519 = vmul.f32 %v2480, %v2423
  %v2520 = vmul.f32 %v2482, %v2424
  %v2521 = vmul.f32 %v2484, %v2425
  %v2522 = vmul.f32 %v2486, %v2426
  %v2523 = vmul.f32 %v2488, %v2427
  %v2524 = vmul.f32 %v2490, %v2428
  %v2525 = vmul.f32 %v2492, %v2429
  %v2526 = vmul.f32 %v2494, %v2430
  %v2527 = vadd.f32 %v2303, %v2511
  %v2528 = vadd.f32 %v2304, %v2512
  %v2529 = vadd.f32 %v2305, %v2513
  %v2530 = vadd.f32 %v2306, %v2514
  %v2531 = vadd.f32 %v2307, %v2515
  %v2532 = vadd.f32 %v2308, %v2516
  %v2533 = vadd.f32 %v2309, %v2517
  %v2534 = vadd.f32 %v2310, %v2518
  %v2535 = vadd.f32 %v2311, %v2519
  %v2536 = vadd.f32 %v2312, %v2520
  %v2537 = vadd.f32 %v2313, %v2521
  %v2538 = vadd.f32 %v2314, %v2522
  %v2539 = vadd.f32 %v2315, %v2523
  %v2540 = vadd.f32 %v2316, %v2524
  %v2541 = vadd.f32 %v2317, %v2525
  %v2542 = vadd.f32 %v2318, %v2526
  %2543 = vrot.lane.b32.xlu0 %v325, 123
  %v2544 = vpop.permute.xlu0 %2543
  %2545 = vrot.lane.b32.xlu0 %v331, 123
  %v2546 = vpop.permute.xlu0 %2545
  %2547 = vrot.lane.b32.xlu0 %v337, 123
  %v2548 = vpop.permute.xlu0 %2547
  %2549 = vrot.lane.b32.xlu0 %v343, 123
  %v2550 = vpop.permute.xlu0 %2549
  %2551 = vrot.lane.b32.xlu0 %v349, 123
  %v2552 = vpop.permute.xlu0 %2551
  %2553 = vrot.lane.b32.xlu0 %v355, 123
  %v2554 = vpop.permute.xlu0 %2553
  %2555 = vrot.lane.b32.xlu0 %v361, 123
  %v2556 = vpop.permute.xlu0 %2555
  %2557 = vrot.lane.b32.xlu0 %v367, 123
  %v2558 = vpop.permute.xlu0 %2557
  %2559 = vrot.lane.b32.xlu0 %v327, 123
  %v2560 = vpop.permute.xlu0 %2559
  %2561 = vrot.lane.b32.xlu0 %v333, 123
  %v2562 = vpop.permute.xlu0 %2561
  %2563 = vrot.lane.b32.xlu0 %v339, 123
  %v2564 = vpop.permute.xlu0 %2563
  %2565 = vrot.lane.b32.xlu0 %v345, 123
  %v2566 = vpop.permute.xlu0 %2565
  %2567 = vrot.lane.b32.xlu0 %v351, 123
  %v2568 = vpop.permute.xlu0 %2567
  %2569 = vrot.lane.b32.xlu0 %v357, 123
  %v2570 = vpop.permute.xlu0 %2569
  %2571 = vrot.lane.b32.xlu0 %v363, 123
  %v2572 = vpop.permute.xlu0 %2571
  %2573 = vrot.lane.b32.xlu0 %v369, 123
  %v2574 = vpop.permute.xlu0 %2573
  %vm2575 = vcmp.lt.s32.totalorder %v485, 123
  %v2576 = vsel %vm2575, %v2544, %v2560
  %v2577 = vsel %vm2575, %v2546, %v2562
  %v2578 = vsel %vm2575, %v2548, %v2564
  %v2579 = vsel %vm2575, %v2550, %v2566
  %v2580 = vsel %vm2575, %v2552, %v2568
  %v2581 = vsel %vm2575, %v2554, %v2570
  %v2582 = vsel %vm2575, %v2556, %v2572
  %v2583 = vsel %vm2575, %v2558, %v2574
  %v2584 = vsel %vm2575, %v2560, %v2544
  %v2585 = vsel %vm2575, %v2562, %v2546
  %v2586 = vsel %vm2575, %v2564, %v2548
  %v2587 = vsel %vm2575, %v2566, %v2550
  %v2588 = vsel %vm2575, %v2568, %v2552
  %v2589 = vsel %vm2575, %v2570, %v2554
  %v2590 = vsel %vm2575, %v2572, %v2556
  %v2591 = vsel %vm2575, %v2574, %v2558
  %2592 = vrot.lane.b32.xlu0 %v325, 3
  %v2593 = vpop.permute.xlu0 %2592
  %2594 = vrot.lane.b32.xlu0 %v331, 3
  %v2595 = vpop.permute.xlu0 %2594
  %2596 = vrot.lane.b32.xlu0 %v337, 3
  %v2597 = vpop.permute.xlu0 %2596
  %2598 = vrot.lane.b32.xlu0 %v343, 3
  %v2599 = vpop.permute.xlu0 %2598
  %2600 = vrot.lane.b32.xlu0 %v349, 3
  %v2601 = vpop.permute.xlu0 %2600
  %2602 = vrot.lane.b32.xlu0 %v355, 3
  %v2603 = vpop.permute.xlu0 %2602
  %2604 = vrot.lane.b32.xlu0 %v361, 3
  %v2605 = vpop.permute.xlu0 %2604
  %2606 = vrot.lane.b32.xlu0 %v367, 3
  %v2607 = vpop.permute.xlu0 %2606
  %2608 = vrot.lane.b32.xlu0 %v327, 3
  %v2609 = vpop.permute.xlu0 %2608
  %2610 = vrot.lane.b32.xlu0 %v333, 3
  %v2611 = vpop.permute.xlu0 %2610
  %2612 = vrot.lane.b32.xlu0 %v339, 3
  %v2613 = vpop.permute.xlu0 %2612
  %2614 = vrot.lane.b32.xlu0 %v345, 3
  %v2615 = vpop.permute.xlu0 %2614
  %2616 = vrot.lane.b32.xlu0 %v351, 3
  %v2617 = vpop.permute.xlu0 %2616
  %2618 = vrot.lane.b32.xlu0 %v357, 3
  %v2619 = vpop.permute.xlu0 %2618
  %2620 = vrot.lane.b32.xlu0 %v363, 3
  %v2621 = vpop.permute.xlu0 %2620
  %2622 = vrot.lane.b32.xlu0 %v369, 3
  %v2623 = vpop.permute.xlu0 %2622
  %vm2624 = vcmp.lt.s32.totalorder %v485, 3
  %v2625 = vsel %vm2624, %v2593, %v2609
  %v2626 = vsel %vm2624, %v2595, %v2611
  %v2627 = vsel %vm2624, %v2597, %v2613
  %v2628 = vsel %vm2624, %v2599, %v2615
  %v2629 = vsel %vm2624, %v2601, %v2617
  %v2630 = vsel %vm2624, %v2603, %v2619
  %v2631 = vsel %vm2624, %v2605, %v2621
  %v2632 = vsel %vm2624, %v2607, %v2623
  %v2633 = vsel %vm2624, %v2609, %v2593
  %v2634 = vsel %vm2624, %v2611, %v2595
  %v2635 = vsel %vm2624, %v2613, %v2597
  %v2636 = vsel %vm2624, %v2615, %v2599
  %v2637 = vsel %vm2624, %v2617, %v2601
  %v2638 = vsel %vm2624, %v2619, %v2603
  %v2639 = vsel %vm2624, %v2621, %v2605
  %v2640 = vsel %vm2624, %v2623, %v2607
  %v2641 = vsel %vm497, 1, 0
  %v2642 = vsel %vm498, 1, 0
  %vm2643 = vcmp.eq.s32.totalorder %v2641, 1
  %vm2644 = vcmp.eq.s32.totalorder %v2642, 1
  %v2645 = vsel %vm2643, %v2576, %v2633
  %v2646 = vsel %vm2644, %v2584, %v2625
  %v2647 = vsel %vm2643, %v2577, %v2634
  %v2648 = vsel %vm2644, %v2585, %v2626
  %v2649 = vsel %vm2643, %v2578, %v2635
  %v2650 = vsel %vm2644, %v2586, %v2627
  %v2651 = vsel %vm2643, %v2579, %v2636
  %v2652 = vsel %vm2644, %v2587, %v2628
  %v2653 = vsel %vm2643, %v2580, %v2637
  %v2654 = vsel %vm2644, %v2588, %v2629
  %v2655 = vsel %vm2643, %v2581, %v2638
  %v2656 = vsel %vm2644, %v2589, %v2630
  %v2657 = vsel %vm2643, %v2582, %v2639
  %v2658 = vsel %vm2644, %v2590, %v2631
  %v2659 = vsel %vm2643, %v2583, %v2640
  %v2660 = vsel %vm2644, %v2591, %v2632
  %2661 = vrot.lane.b32.xlu0 %v438, 123
  %v2662 = vpop.permute.xlu0 %2661
  %2663 = vrot.lane.b32.xlu0 %v444, 123
  %v2664 = vpop.permute.xlu0 %2663
  %2665 = vrot.lane.b32.xlu0 %v450, 123
  %v2666 = vpop.permute.xlu0 %2665
  %2667 = vrot.lane.b32.xlu0 %v456, 123
  %v2668 = vpop.permute.xlu0 %2667
  %2669 = vrot.lane.b32.xlu0 %v462, 123
  %v2670 = vpop.permute.xlu0 %2669
  %2671 = vrot.lane.b32.xlu0 %v468, 123
  %v2672 = vpop.permute.xlu0 %2671
  %2673 = vrot.lane.b32.xlu0 %v474, 123
  %v2674 = vpop.permute.xlu0 %2673
  %2675 = vrot.lane.b32.xlu0 %v480, 123
  %v2676 = vpop.permute.xlu0 %2675
  %2677 = vrot.lane.b32.xlu0 %v440, 123
  %v2678 = vpop.permute.xlu0 %2677
  %2679 = vrot.lane.b32.xlu0 %v446, 123
  %v2680 = vpop.permute.xlu0 %2679
  %2681 = vrot.lane.b32.xlu0 %v452, 123
  %v2682 = vpop.permute.xlu0 %2681
  %2683 = vrot.lane.b32.xlu0 %v458, 123
  %v2684 = vpop.permute.xlu0 %2683
  %2685 = vrot.lane.b32.xlu0 %v464, 123
  %v2686 = vpop.permute.xlu0 %2685
  %2687 = vrot.lane.b32.xlu0 %v470, 123
  %v2688 = vpop.permute.xlu0 %2687
  %2689 = vrot.lane.b32.xlu0 %v476, 123
  %v2690 = vpop.permute.xlu0 %2689
  %2691 = vrot.lane.b32.xlu0 %v482, 123
  %v2692 = vpop.permute.xlu0 %2691
  %v2693 = vsel %vm2575, %v2662, %v2678
  %v2694 = vsel %vm2575, %v2664, %v2680
  %v2695 = vsel %vm2575, %v2666, %v2682
  %v2696 = vsel %vm2575, %v2668, %v2684
  %v2697 = vsel %vm2575, %v2670, %v2686
  %v2698 = vsel %vm2575, %v2672, %v2688
  %v2699 = vsel %vm2575, %v2674, %v2690
  %v2700 = vsel %vm2575, %v2676, %v2692
  %v2701 = vsel %vm2575, %v2678, %v2662
  %v2702 = vsel %vm2575, %v2680, %v2664
  %v2703 = vsel %vm2575, %v2682, %v2666
  %v2704 = vsel %vm2575, %v2684, %v2668
  %v2705 = vsel %vm2575, %v2686, %v2670
  %v2706 = vsel %vm2575, %v2688, %v2672
  %v2707 = vsel %vm2575, %v2690, %v2674
  %v2708 = vsel %vm2575, %v2692, %v2676
  %2709 = vrot.lane.b32.xlu0 %v438, 3
  %v2710 = vpop.permute.xlu0 %2709
  %2711 = vrot.lane.b32.xlu0 %v444, 3
  %v2712 = vpop.permute.xlu0 %2711
  %2713 = vrot.lane.b32.xlu0 %v450, 3
  %v2714 = vpop.permute.xlu0 %2713
  %2715 = vrot.lane.b32.xlu0 %v456, 3
  %v2716 = vpop.permute.xlu0 %2715
  %2717 = vrot.lane.b32.xlu0 %v462, 3
  %v2718 = vpop.permute.xlu0 %2717
  %2719 = vrot.lane.b32.xlu0 %v468, 3
  %v2720 = vpop.permute.xlu0 %2719
  %2721 = vrot.lane.b32.xlu0 %v474, 3
  %v2722 = vpop.permute.xlu0 %2721
  %2723 = vrot.lane.b32.xlu0 %v480, 3
  %v2724 = vpop.permute.xlu0 %2723
  %2725 = vrot.lane.b32.xlu0 %v440, 3
  %v2726 = vpop.permute.xlu0 %2725
  %2727 = vrot.lane.b32.xlu0 %v446, 3
  %v2728 = vpop.permute.xlu0 %2727
  %2729 = vrot.lane.b32.xlu0 %v452, 3
  %v2730 = vpop.permute.xlu0 %2729
  %2731 = vrot.lane.b32.xlu0 %v458, 3
  %v2732 = vpop.permute.xlu0 %2731
  %2733 = vrot.lane.b32.xlu0 %v464, 3
  %v2734 = vpop.permute.xlu0 %2733
  %2735 = vrot.lane.b32.xlu0 %v470, 3
  %v2736 = vpop.permute.xlu0 %2735
  %2737 = vrot.lane.b32.xlu0 %v476, 3
  %v2738 = vpop.permute.xlu0 %2737
  %2739 = vrot.lane.b32.xlu0 %v482, 3
  %v2740 = vpop.permute.xlu0 %2739
  %v2741 = vsel %vm2624, %v2710, %v2726
  %v2742 = vsel %vm2624, %v2712, %v2728
  %v2743 = vsel %vm2624, %v2714, %v2730
  %v2744 = vsel %vm2624, %v2716, %v2732
  %v2745 = vsel %vm2624, %v2718, %v2734
  %v2746 = vsel %vm2624, %v2720, %v2736
  %v2747 = vsel %vm2624, %v2722, %v2738
  %v2748 = vsel %vm2624, %v2724, %v2740
  %v2749 = vsel %vm2624, %v2726, %v2710
  %v2750 = vsel %vm2624, %v2728, %v2712
  %v2751 = vsel %vm2624, %v2730, %v2714
  %v2752 = vsel %vm2624, %v2732, %v2716
  %v2753 = vsel %vm2624, %v2734, %v2718
  %v2754 = vsel %vm2624, %v2736, %v2720
  %v2755 = vsel %vm2624, %v2738, %v2722
  %v2756 = vsel %vm2624, %v2740, %v2724
  %v2757 = vsel %vm2643, %v2693, %v2749
  %v2758 = vsel %vm2644, %v2701, %v2741
  %v2759 = vsel %vm2643, %v2694, %v2750
  %v2760 = vsel %vm2644, %v2702, %v2742
  %v2761 = vsel %vm2643, %v2695, %v2751
  %v2762 = vsel %vm2644, %v2703, %v2743
  %v2763 = vsel %vm2643, %v2696, %v2752
  %v2764 = vsel %vm2644, %v2704, %v2744
  %v2765 = vsel %vm2643, %v2697, %v2753
  %v2766 = vsel %vm2644, %v2705, %v2745
  %v2767 = vsel %vm2643, %v2698, %v2754
  %v2768 = vsel %vm2644, %v2706, %v2746
  %v2769 = vsel %vm2643, %v2699, %v2755
  %v2770 = vsel %vm2644, %v2707, %v2747
  %v2771 = vsel %vm2643, %v2700, %v2756
  %v2772 = vsel %vm2644, %v2708, %v2748
  %v2773 = vmul.f32 %v212, %v2645
  %v2774 = vmul.f32 %v214, %v2646
  %v2775 = vmul.f32 %v218, %v2647
  %v2776 = vmul.f32 %v220, %v2648
  %v2777 = vmul.f32 %v224, %v2649
  %v2778 = vmul.f32 %v226, %v2650
  %v2779 = vmul.f32 %v230, %v2651
  %v2780 = vmul.f32 %v232, %v2652
  %v2781 = vmul.f32 %v236, %v2653
  %v2782 = vmul.f32 %v238, %v2654
  %v2783 = vmul.f32 %v242, %v2655
  %v2784 = vmul.f32 %v244, %v2656
  %v2785 = vmul.f32 %v248, %v2657
  %v2786 = vmul.f32 %v250, %v2658
  %v2787 = vmul.f32 %v254, %v2659
  %v2788 = vmul.f32 %v256, %v2660
  %v2789 = vsub.f32 %v2773, %v1209
  %v2790 = vsub.f32 %v2774, %v1210
  %v2791 = vsub.f32 %v2775, %v1211
  %v2792 = vsub.f32 %v2776, %v1212
  %v2793 = vsub.f32 %v2777, %v1213
  %v2794 = vsub.f32 %v2778, %v1214
  %v2795 = vsub.f32 %v2779, %v1215
  %v2796 = vsub.f32 %v2780, %v1216
  %v2797 = vsub.f32 %v2781, %v1217
  %v2798 = vsub.f32 %v2782, %v1218
  %v2799 = vsub.f32 %v2783, %v1219
  %v2800 = vsub.f32 %v2784, %v1220
  %v2801 = vsub.f32 %v2785, %v1221
  %v2802 = vsub.f32 %v2786, %v1222
  %v2803 = vsub.f32 %v2787, %v1223
  %v2804 = vsub.f32 %v2788, %v1224
  %v2805 = vmul.f32 %v2789, 1.442695
  %v2806 = vpow.pop %v2805
  %v2807 = vmul.f32 %v2790, 1.442695
  %v2808 = vpow.pop %v2807
  %v2809 = vmul.f32 %v2791, 1.442695
  %v2810 = vpow.pop %v2809
  %v2811 = vmul.f32 %v2792, 1.442695
  %v2812 = vpow.pop %v2811
  %v2813 = vmul.f32 %v2793, 1.442695
  %v2814 = vpow.pop %v2813
  %v2815 = vmul.f32 %v2794, 1.442695
  %v2816 = vpow.pop %v2815
  %v2817 = vmul.f32 %v2795, 1.442695
  %v2818 = vpow.pop %v2817
  %v2819 = vmul.f32 %v2796, 1.442695
  %v2820 = vpow.pop %v2819
  %v2821 = vmul.f32 %v2797, 1.442695
  %v2822 = vpow.pop %v2821
  %v2823 = vmul.f32 %v2798, 1.442695
  %v2824 = vpow.pop %v2823
  %v2825 = vmul.f32 %v2799, 1.442695
  %v2826 = vpow.pop %v2825
  %v2827 = vmul.f32 %v2800, 1.442695
  %v2828 = vpow.pop %v2827
  %v2829 = vmul.f32 %v2801, 1.442695
  %v2830 = vpow.pop %v2829
  %v2831 = vmul.f32 %v2802, 1.442695
  %v2832 = vpow.pop %v2831
  %v2833 = vmul.f32 %v2803, 1.442695
  %v2834 = vpow.pop %v2833
  %v2835 = vmul.f32 %v2804, 1.442695
  %v2836 = vpow.pop %v2835
  %v2837 = vadd.f32 %v2495, %v2806
  %v2838 = vadd.f32 %v2496, %v2808
  %v2839 = vadd.f32 %v2497, %v2810
  %v2840 = vadd.f32 %v2498, %v2812
  %v2841 = vadd.f32 %v2499, %v2814
  %v2842 = vadd.f32 %v2500, %v2816
  %v2843 = vadd.f32 %v2501, %v2818
  %v2844 = vadd.f32 %v2502, %v2820
  %v2845 = vadd.f32 %v2503, %v2822
  %v2846 = vadd.f32 %v2504, %v2824
  %v2847 = vadd.f32 %v2505, %v2826
  %v2848 = vadd.f32 %v2506, %v2828
  %v2849 = vadd.f32 %v2507, %v2830
  %v2850 = vadd.f32 %v2508, %v2832
  %v2851 = vadd.f32 %v2509, %v2834
  %v2852 = vadd.f32 %v2510, %v2836
  %v2853 = vmul.f32 %v2806, %v2757
  %v2854 = vmul.f32 %v2808, %v2758
  %v2855 = vmul.f32 %v2810, %v2759
  %v2856 = vmul.f32 %v2812, %v2760
  %v2857 = vmul.f32 %v2814, %v2761
  %v2858 = vmul.f32 %v2816, %v2762
  %v2859 = vmul.f32 %v2818, %v2763
  %v2860 = vmul.f32 %v2820, %v2764
  %v2861 = vmul.f32 %v2822, %v2765
  %v2862 = vmul.f32 %v2824, %v2766
  %v2863 = vmul.f32 %v2826, %v2767
  %v2864 = vmul.f32 %v2828, %v2768
  %v2865 = vmul.f32 %v2830, %v2769
  %v2866 = vmul.f32 %v2832, %v2770
  %v2867 = vmul.f32 %v2834, %v2771
  %v2868 = vmul.f32 %v2836, %v2772
  %v2869 = vadd.f32 %v2527, %v2853
  %v2870 = vadd.f32 %v2528, %v2854
  %v2871 = vadd.f32 %v2529, %v2855
  %v2872 = vadd.f32 %v2530, %v2856
  %v2873 = vadd.f32 %v2531, %v2857
  %v2874 = vadd.f32 %v2532, %v2858
  %v2875 = vadd.f32 %v2533, %v2859
  %v2876 = vadd.f32 %v2534, %v2860
  %v2877 = vadd.f32 %v2535, %v2861
  %v2878 = vadd.f32 %v2536, %v2862
  %v2879 = vadd.f32 %v2537, %v2863
  %v2880 = vadd.f32 %v2538, %v2864
  %v2881 = vadd.f32 %v2539, %v2865
  %v2882 = vadd.f32 %v2540, %v2866
  %v2883 = vadd.f32 %v2541, %v2867
  %v2884 = vadd.f32 %v2542, %v2868
  %2885 = vrot.lane.b32.xlu0 %v325, 122
  %v2886 = vpop.permute.xlu0 %2885
  %2887 = vrot.lane.b32.xlu0 %v331, 122
  %v2888 = vpop.permute.xlu0 %2887
  %2889 = vrot.lane.b32.xlu0 %v337, 122
  %v2890 = vpop.permute.xlu0 %2889
  %2891 = vrot.lane.b32.xlu0 %v343, 122
  %v2892 = vpop.permute.xlu0 %2891
  %2893 = vrot.lane.b32.xlu0 %v349, 122
  %v2894 = vpop.permute.xlu0 %2893
  %2895 = vrot.lane.b32.xlu0 %v355, 122
  %v2896 = vpop.permute.xlu0 %2895
  %2897 = vrot.lane.b32.xlu0 %v361, 122
  %v2898 = vpop.permute.xlu0 %2897
  %2899 = vrot.lane.b32.xlu0 %v367, 122
  %v2900 = vpop.permute.xlu0 %2899
  %2901 = vrot.lane.b32.xlu0 %v327, 122
  %v2902 = vpop.permute.xlu0 %2901
  %2903 = vrot.lane.b32.xlu0 %v333, 122
  %v2904 = vpop.permute.xlu0 %2903
  %2905 = vrot.lane.b32.xlu0 %v339, 122
  %v2906 = vpop.permute.xlu0 %2905
  %2907 = vrot.lane.b32.xlu0 %v345, 122
  %v2908 = vpop.permute.xlu0 %2907
  %2909 = vrot.lane.b32.xlu0 %v351, 122
  %v2910 = vpop.permute.xlu0 %2909
  %2911 = vrot.lane.b32.xlu0 %v357, 122
  %v2912 = vpop.permute.xlu0 %2911
  %2913 = vrot.lane.b32.xlu0 %v363, 122
  %v2914 = vpop.permute.xlu0 %2913
  %2915 = vrot.lane.b32.xlu0 %v369, 122
  %v2916 = vpop.permute.xlu0 %2915
  %vm2917 = vcmp.lt.s32.totalorder %v485, 122
  %v2918 = vsel %vm2917, %v2886, %v2902
  %v2919 = vsel %vm2917, %v2888, %v2904
  %v2920 = vsel %vm2917, %v2890, %v2906
  %v2921 = vsel %vm2917, %v2892, %v2908
  %v2922 = vsel %vm2917, %v2894, %v2910
  %v2923 = vsel %vm2917, %v2896, %v2912
  %v2924 = vsel %vm2917, %v2898, %v2914
  %v2925 = vsel %vm2917, %v2900, %v2916
  %v2926 = vsel %vm2917, %v2902, %v2886
  %v2927 = vsel %vm2917, %v2904, %v2888
  %v2928 = vsel %vm2917, %v2906, %v2890
  %v2929 = vsel %vm2917, %v2908, %v2892
  %v2930 = vsel %vm2917, %v2910, %v2894
  %v2931 = vsel %vm2917, %v2912, %v2896
  %v2932 = vsel %vm2917, %v2914, %v2898
  %v2933 = vsel %vm2917, %v2916, %v2900
  %2934 = vrot.lane.b32.xlu0 %v325, 2
  %v2935 = vpop.permute.xlu0 %2934
  %2936 = vrot.lane.b32.xlu0 %v331, 2
  %v2937 = vpop.permute.xlu0 %2936
  %2938 = vrot.lane.b32.xlu0 %v337, 2
  %v2939 = vpop.permute.xlu0 %2938
  %2940 = vrot.lane.b32.xlu0 %v343, 2
  %v2941 = vpop.permute.xlu0 %2940
  %2942 = vrot.lane.b32.xlu0 %v349, 2
  %v2943 = vpop.permute.xlu0 %2942
  %2944 = vrot.lane.b32.xlu0 %v355, 2
  %v2945 = vpop.permute.xlu0 %2944
  %2946 = vrot.lane.b32.xlu0 %v361, 2
  %v2947 = vpop.permute.xlu0 %2946
  %2948 = vrot.lane.b32.xlu0 %v367, 2
  %v2949 = vpop.permute.xlu0 %2948
  %2950 = vrot.lane.b32.xlu0 %v327, 2
  %v2951 = vpop.permute.xlu0 %2950
  %2952 = vrot.lane.b32.xlu0 %v333, 2
  %v2953 = vpop.permute.xlu0 %2952
  %2954 = vrot.lane.b32.xlu0 %v339, 2
  %v2955 = vpop.permute.xlu0 %2954
  %2956 = vrot.lane.b32.xlu0 %v345, 2
  %v2957 = vpop.permute.xlu0 %2956
  %2958 = vrot.lane.b32.xlu0 %v351, 2
  %v2959 = vpop.permute.xlu0 %2958
  %2960 = vrot.lane.b32.xlu0 %v357, 2
  %v2961 = vpop.permute.xlu0 %2960
  %2962 = vrot.lane.b32.xlu0 %v363, 2
  %v2963 = vpop.permute.xlu0 %2962
  %2964 = vrot.lane.b32.xlu0 %v369, 2
  %v2965 = vpop.permute.xlu0 %2964
  %vm2966 = vcmp.lt.s32.totalorder %v485, 2
  %v2967 = vsel %vm2966, %v2935, %v2951
  %v2968 = vsel %vm2966, %v2937, %v2953
  %v2969 = vsel %vm2966, %v2939, %v2955
  %v2970 = vsel %vm2966, %v2941, %v2957
  %v2971 = vsel %vm2966, %v2943, %v2959
  %v2972 = vsel %vm2966, %v2945, %v2961
  %v2973 = vsel %vm2966, %v2947, %v2963
  %v2974 = vsel %vm2966, %v2949, %v2965
  %v2975 = vsel %vm2966, %v2951, %v2935
  %v2976 = vsel %vm2966, %v2953, %v2937
  %v2977 = vsel %vm2966, %v2955, %v2939
  %v2978 = vsel %vm2966, %v2957, %v2941
  %v2979 = vsel %vm2966, %v2959, %v2943
  %v2980 = vsel %vm2966, %v2961, %v2945
  %v2981 = vsel %vm2966, %v2963, %v2947
  %v2982 = vsel %vm2966, %v2965, %v2949
  %v2983 = vsel %vm499, 1, 0
  %v2984 = vsel %vm500, 1, 0
  %vm2985 = vcmp.eq.s32.totalorder %v2983, 1
  %vm2986 = vcmp.eq.s32.totalorder %v2984, 1
  %v2987 = vsel %vm2985, %v2918, %v2975
  %v2988 = vsel %vm2986, %v2926, %v2967
  %v2989 = vsel %vm2985, %v2919, %v2976
  %v2990 = vsel %vm2986, %v2927, %v2968
  %v2991 = vsel %vm2985, %v2920, %v2977
  %v2992 = vsel %vm2986, %v2928, %v2969
  %v2993 = vsel %vm2985, %v2921, %v2978
  %v2994 = vsel %vm2986, %v2929, %v2970
  %v2995 = vsel %vm2985, %v2922, %v2979
  %v2996 = vsel %vm2986, %v2930, %v2971
  %v2997 = vsel %vm2985, %v2923, %v2980
  %v2998 = vsel %vm2986, %v2931, %v2972
  %v2999 = vsel %vm2985, %v2924, %v2981
  %v3000 = vsel %vm2986, %v2932, %v2973
  %v3001 = vsel %vm2985, %v2925, %v2982
  %v3002 = vsel %vm2986, %v2933, %v2974
  %3003 = vrot.lane.b32.xlu0 %v438, 122
  %v3004 = vpop.permute.xlu0 %3003
  %3005 = vrot.lane.b32.xlu0 %v444, 122
  %v3006 = vpop.permute.xlu0 %3005
  %3007 = vrot.lane.b32.xlu0 %v450, 122
  %v3008 = vpop.permute.xlu0 %3007
  %3009 = vrot.lane.b32.xlu0 %v456, 122
  %v3010 = vpop.permute.xlu0 %3009
  %3011 = vrot.lane.b32.xlu0 %v462, 122
  %v3012 = vpop.permute.xlu0 %3011
  %3013 = vrot.lane.b32.xlu0 %v468, 122
  %v3014 = vpop.permute.xlu0 %3013
  %3015 = vrot.lane.b32.xlu0 %v474, 122
  %v3016 = vpop.permute.xlu0 %3015
  %3017 = vrot.lane.b32.xlu0 %v480, 122
  %v3018 = vpop.permute.xlu0 %3017
  %3019 = vrot.lane.b32.xlu0 %v440, 122
  %v3020 = vpop.permute.xlu0 %3019
  %3021 = vrot.lane.b32.xlu0 %v446, 122
  %v3022 = vpop.permute.xlu0 %3021
  %3023 = vrot.lane.b32.xlu0 %v452, 122
  %v3024 = vpop.permute.xlu0 %3023
  %3025 = vrot.lane.b32.xlu0 %v458, 122
  %v3026 = vpop.permute.xlu0 %3025
  %3027 = vrot.lane.b32.xlu0 %v464, 122
  %v3028 = vpop.permute.xlu0 %3027
  %3029 = vrot.lane.b32.xlu0 %v470, 122
  %v3030 = vpop.permute.xlu0 %3029
  %3031 = vrot.lane.b32.xlu0 %v476, 122
  %v3032 = vpop.permute.xlu0 %3031
  %3033 = vrot.lane.b32.xlu0 %v482, 122
  %v3034 = vpop.permute.xlu0 %3033
  %v3035 = vsel %vm2917, %v3004, %v3020
  %v3036 = vsel %vm2917, %v3006, %v3022
  %v3037 = vsel %vm2917, %v3008, %v3024
  %v3038 = vsel %vm2917, %v3010, %v3026
  %v3039 = vsel %vm2917, %v3012, %v3028
  %v3040 = vsel %vm2917, %v3014, %v3030
  %v3041 = vsel %vm2917, %v3016, %v3032
  %v3042 = vsel %vm2917, %v3018, %v3034
  %v3043 = vsel %vm2917, %v3020, %v3004
  %v3044 = vsel %vm2917, %v3022, %v3006
  %v3045 = vsel %vm2917, %v3024, %v3008
  %v3046 = vsel %vm2917, %v3026, %v3010
  %v3047 = vsel %vm2917, %v3028, %v3012
  %v3048 = vsel %vm2917, %v3030, %v3014
  %v3049 = vsel %vm2917, %v3032, %v3016
  %v3050 = vsel %vm2917, %v3034, %v3018
  %3051 = vrot.lane.b32.xlu0 %v438, 2
  %v3052 = vpop.permute.xlu0 %3051
  %3053 = vrot.lane.b32.xlu0 %v444, 2
  %v3054 = vpop.permute.xlu0 %3053
  %3055 = vrot.lane.b32.xlu0 %v450, 2
  %v3056 = vpop.permute.xlu0 %3055
  %3057 = vrot.lane.b32.xlu0 %v456, 2
  %v3058 = vpop.permute.xlu0 %3057
  %3059 = vrot.lane.b32.xlu0 %v462, 2
  %v3060 = vpop.permute.xlu0 %3059
  %3061 = vrot.lane.b32.xlu0 %v468, 2
  %v3062 = vpop.permute.xlu0 %3061
  %3063 = vrot.lane.b32.xlu0 %v474, 2
  %v3064 = vpop.permute.xlu0 %3063
  %3065 = vrot.lane.b32.xlu0 %v480, 2
  %v3066 = vpop.permute.xlu0 %3065
  %3067 = vrot.lane.b32.xlu0 %v440, 2
  %v3068 = vpop.permute.xlu0 %3067
  %3069 = vrot.lane.b32.xlu0 %v446, 2
  %v3070 = vpop.permute.xlu0 %3069
  %3071 = vrot.lane.b32.xlu0 %v452, 2
  %v3072 = vpop.permute.xlu0 %3071
  %3073 = vrot.lane.b32.xlu0 %v458, 2
  %v3074 = vpop.permute.xlu0 %3073
  %3075 = vrot.lane.b32.xlu0 %v464, 2
  %v3076 = vpop.permute.xlu0 %3075
  %3077 = vrot.lane.b32.xlu0 %v470, 2
  %v3078 = vpop.permute.xlu0 %3077
  %3079 = vrot.lane.b32.xlu0 %v476, 2
  %v3080 = vpop.permute.xlu0 %3079
  %3081 = vrot.lane.b32.xlu0 %v482, 2
  %v3082 = vpop.permute.xlu0 %3081
  %v3083 = vsel %vm2966, %v3052, %v3068
  %v3084 = vsel %vm2966, %v3054, %v3070
  %v3085 = vsel %vm2966, %v3056, %v3072
  %v3086 = vsel %vm2966, %v3058, %v3074
  %v3087 = vsel %vm2966, %v3060, %v3076
  %v3088 = vsel %vm2966, %v3062, %v3078
  %v3089 = vsel %vm2966, %v3064, %v3080
  %v3090 = vsel %vm2966, %v3066, %v3082
  %v3091 = vsel %vm2966, %v3068, %v3052
  %v3092 = vsel %vm2966, %v3070, %v3054
  %v3093 = vsel %vm2966, %v3072, %v3056
  %v3094 = vsel %vm2966, %v3074, %v3058
  %v3095 = vsel %vm2966, %v3076, %v3060
  %v3096 = vsel %vm2966, %v3078, %v3062
  %v3097 = vsel %vm2966, %v3080, %v3064
  %v3098 = vsel %vm2966, %v3082, %v3066
  %v3099 = vsel %vm2985, %v3035, %v3091
  %v3100 = vsel %vm2986, %v3043, %v3083
  %v3101 = vsel %vm2985, %v3036, %v3092
  %v3102 = vsel %vm2986, %v3044, %v3084
  %v3103 = vsel %vm2985, %v3037, %v3093
  %v3104 = vsel %vm2986, %v3045, %v3085
  %v3105 = vsel %vm2985, %v3038, %v3094
  %v3106 = vsel %vm2986, %v3046, %v3086
  %v3107 = vsel %vm2985, %v3039, %v3095
  %v3108 = vsel %vm2986, %v3047, %v3087
  %v3109 = vsel %vm2985, %v3040, %v3096
  %v3110 = vsel %vm2986, %v3048, %v3088
  %v3111 = vsel %vm2985, %v3041, %v3097
  %v3112 = vsel %vm2986, %v3049, %v3089
  %v3113 = vsel %vm2985, %v3042, %v3098
  %v3114 = vsel %vm2986, %v3050, %v3090
  %v3115 = vmul.f32 %v212, %v2987
  %v3116 = vmul.f32 %v214, %v2988
  %v3117 = vmul.f32 %v218, %v2989
  %v3118 = vmul.f32 %v220, %v2990
  %v3119 = vmul.f32 %v224, %v2991
  %v3120 = vmul.f32 %v226, %v2992
  %v3121 = vmul.f32 %v230, %v2993
  %v3122 = vmul.f32 %v232, %v2994
  %v3123 = vmul.f32 %v236, %v2995
  %v3124 = vmul.f32 %v238, %v2996
  %v3125 = vmul.f32 %v242, %v2997
  %v3126 = vmul.f32 %v244, %v2998
  %v3127 = vmul.f32 %v248, %v2999
  %v3128 = vmul.f32 %v250, %v3000
  %v3129 = vmul.f32 %v254, %v3001
  %v3130 = vmul.f32 %v256, %v3002
  %v3131 = vsub.f32 %v3115, %v1209
  %v3132 = vsub.f32 %v3116, %v1210
  %v3133 = vsub.f32 %v3117, %v1211
  %v3134 = vsub.f32 %v3118, %v1212
  %v3135 = vsub.f32 %v3119, %v1213
  %v3136 = vsub.f32 %v3120, %v1214
  %v3137 = vsub.f32 %v3121, %v1215
  %v3138 = vsub.f32 %v3122, %v1216
  %v3139 = vsub.f32 %v3123, %v1217
  %v3140 = vsub.f32 %v3124, %v1218
  %v3141 = vsub.f32 %v3125, %v1219
  %v3142 = vsub.f32 %v3126, %v1220
  %v3143 = vsub.f32 %v3127, %v1221
  %v3144 = vsub.f32 %v3128, %v1222
  %v3145 = vsub.f32 %v3129, %v1223
  %v3146 = vsub.f32 %v3130, %v1224
  %v3147 = vmul.f32 %v3131, 1.442695
  %v3148 = vpow.pop %v3147
  %v3149 = vmul.f32 %v3132, 1.442695
  %v3150 = vpow.pop %v3149
  %v3151 = vmul.f32 %v3133, 1.442695
  %v3152 = vpow.pop %v3151
  %v3153 = vmul.f32 %v3134, 1.442695
  %v3154 = vpow.pop %v3153
  %v3155 = vmul.f32 %v3135, 1.442695
  %v3156 = vpow.pop %v3155
  %v3157 = vmul.f32 %v3136, 1.442695
  %v3158 = vpow.pop %v3157
  %v3159 = vmul.f32 %v3137, 1.442695
  %v3160 = vpow.pop %v3159
  %v3161 = vmul.f32 %v3138, 1.442695
  %v3162 = vpow.pop %v3161
  %v3163 = vmul.f32 %v3139, 1.442695
  %v3164 = vpow.pop %v3163
  %v3165 = vmul.f32 %v3140, 1.442695
  %v3166 = vpow.pop %v3165
  %v3167 = vmul.f32 %v3141, 1.442695
  %v3168 = vpow.pop %v3167
  %v3169 = vmul.f32 %v3142, 1.442695
  %v3170 = vpow.pop %v3169
  %v3171 = vmul.f32 %v3143, 1.442695
  %v3172 = vpow.pop %v3171
  %v3173 = vmul.f32 %v3144, 1.442695
  %v3174 = vpow.pop %v3173
  %v3175 = vmul.f32 %v3145, 1.442695
  %v3176 = vpow.pop %v3175
  %v3177 = vmul.f32 %v3146, 1.442695
  %v3178 = vpow.pop %v3177
  %v3179 = vadd.f32 %v2837, %v3148
  %v3180 = vadd.f32 %v2838, %v3150
  %v3181 = vadd.f32 %v2839, %v3152
  %v3182 = vadd.f32 %v2840, %v3154
  %v3183 = vadd.f32 %v2841, %v3156
  %v3184 = vadd.f32 %v2842, %v3158
  %v3185 = vadd.f32 %v2843, %v3160
  %v3186 = vadd.f32 %v2844, %v3162
  %v3187 = vadd.f32 %v2845, %v3164
  %v3188 = vadd.f32 %v2846, %v3166
  %v3189 = vadd.f32 %v2847, %v3168
  %v3190 = vadd.f32 %v2848, %v3170
  %v3191 = vadd.f32 %v2849, %v3172
  %v3192 = vadd.f32 %v2850, %v3174
  %v3193 = vadd.f32 %v2851, %v3176
  %v3194 = vadd.f32 %v2852, %v3178
  %v3195 = vmul.f32 %v3148, %v3099
  %v3196 = vmul.f32 %v3150, %v3100
  %v3197 = vmul.f32 %v3152, %v3101
  %v3198 = vmul.f32 %v3154, %v3102
  %v3199 = vmul.f32 %v3156, %v3103
  %v3200 = vmul.f32 %v3158, %v3104
  %v3201 = vmul.f32 %v3160, %v3105
  %v3202 = vmul.f32 %v3162, %v3106
  %v3203 = vmul.f32 %v3164, %v3107
  %v3204 = vmul.f32 %v3166, %v3108
  %v3205 = vmul.f32 %v3168, %v3109
  %v3206 = vmul.f32 %v3170, %v3110
  %v3207 = vmul.f32 %v3172, %v3111
  %v3208 = vmul.f32 %v3174, %v3112
  %v3209 = vmul.f32 %v3176, %v3113
  %v3210 = vmul.f32 %v3178, %v3114
  %v3211 = vadd.f32 %v2869, %v3195
  %v3212 = vadd.f32 %v2870, %v3196
  %v3213 = vadd.f32 %v2871, %v3197
  %v3214 = vadd.f32 %v2872, %v3198
  %v3215 = vadd.f32 %v2873, %v3199
  %v3216 = vadd.f32 %v2874, %v3200
  %v3217 = vadd.f32 %v2875, %v3201
  %v3218 = vadd.f32 %v2876, %v3202
  %v3219 = vadd.f32 %v2877, %v3203
  %v3220 = vadd.f32 %v2878, %v3204
  %v3221 = vadd.f32 %v2879, %v3205
  %v3222 = vadd.f32 %v2880, %v3206
  %v3223 = vadd.f32 %v2881, %v3207
  %v3224 = vadd.f32 %v2882, %v3208
  %v3225 = vadd.f32 %v2883, %v3209
  %v3226 = vadd.f32 %v2884, %v3210
  %3227 = vrot.lane.b32.xlu0 %v325, 121
  %v3228 = vpop.permute.xlu0 %3227
  %3229 = vrot.lane.b32.xlu0 %v331, 121
  %v3230 = vpop.permute.xlu0 %3229
  %3231 = vrot.lane.b32.xlu0 %v337, 121
  %v3232 = vpop.permute.xlu0 %3231
  %3233 = vrot.lane.b32.xlu0 %v343, 121
  %v3234 = vpop.permute.xlu0 %3233
  %3235 = vrot.lane.b32.xlu0 %v349, 121
  %v3236 = vpop.permute.xlu0 %3235
  %3237 = vrot.lane.b32.xlu0 %v355, 121
  %v3238 = vpop.permute.xlu0 %3237
  %3239 = vrot.lane.b32.xlu0 %v361, 121
  %v3240 = vpop.permute.xlu0 %3239
  %3241 = vrot.lane.b32.xlu0 %v367, 121
  %v3242 = vpop.permute.xlu0 %3241
  %3243 = vrot.lane.b32.xlu0 %v327, 121
  %v3244 = vpop.permute.xlu0 %3243
  %3245 = vrot.lane.b32.xlu0 %v333, 121
  %v3246 = vpop.permute.xlu0 %3245
  %3247 = vrot.lane.b32.xlu0 %v339, 121
  %v3248 = vpop.permute.xlu0 %3247
  %3249 = vrot.lane.b32.xlu0 %v345, 121
  %v3250 = vpop.permute.xlu0 %3249
  %3251 = vrot.lane.b32.xlu0 %v351, 121
  %v3252 = vpop.permute.xlu0 %3251
  %3253 = vrot.lane.b32.xlu0 %v357, 121
  %v3254 = vpop.permute.xlu0 %3253
  %3255 = vrot.lane.b32.xlu0 %v363, 121
  %v3256 = vpop.permute.xlu0 %3255
  %3257 = vrot.lane.b32.xlu0 %v369, 121
  %v3258 = vpop.permute.xlu0 %3257
  %vm3259 = vcmp.lt.s32.totalorder %v485, 121
  %v3260 = vsel %vm3259, %v3228, %v3244
  %v3261 = vsel %vm3259, %v3230, %v3246
  %v3262 = vsel %vm3259, %v3232, %v3248
  %v3263 = vsel %vm3259, %v3234, %v3250
  %v3264 = vsel %vm3259, %v3236, %v3252
  %v3265 = vsel %vm3259, %v3238, %v3254
  %v3266 = vsel %vm3259, %v3240, %v3256
  %v3267 = vsel %vm3259, %v3242, %v3258
  %v3268 = vsel %vm3259, %v3244, %v3228
  %v3269 = vsel %vm3259, %v3246, %v3230
  %v3270 = vsel %vm3259, %v3248, %v3232
  %v3271 = vsel %vm3259, %v3250, %v3234
  %v3272 = vsel %vm3259, %v3252, %v3236
  %v3273 = vsel %vm3259, %v3254, %v3238
  %v3274 = vsel %vm3259, %v3256, %v3240
  %v3275 = vsel %vm3259, %v3258, %v3242
  %3276 = vrot.lane.b32.xlu0 %v325, 1
  %v3277 = vpop.permute.xlu0 %3276
  %3278 = vrot.lane.b32.xlu0 %v331, 1
  %v3279 = vpop.permute.xlu0 %3278
  %3280 = vrot.lane.b32.xlu0 %v337, 1
  %v3281 = vpop.permute.xlu0 %3280
  %3282 = vrot.lane.b32.xlu0 %v343, 1
  %v3283 = vpop.permute.xlu0 %3282
  %3284 = vrot.lane.b32.xlu0 %v349, 1
  %v3285 = vpop.permute.xlu0 %3284
  %3286 = vrot.lane.b32.xlu0 %v355, 1
  %v3287 = vpop.permute.xlu0 %3286
  %3288 = vrot.lane.b32.xlu0 %v361, 1
  %v3289 = vpop.permute.xlu0 %3288
  %3290 = vrot.lane.b32.xlu0 %v367, 1
  %v3291 = vpop.permute.xlu0 %3290
  %3292 = vrot.lane.b32.xlu0 %v327, 1
  %v3293 = vpop.permute.xlu0 %3292
  %3294 = vrot.lane.b32.xlu0 %v333, 1
  %v3295 = vpop.permute.xlu0 %3294
  %3296 = vrot.lane.b32.xlu0 %v339, 1
  %v3297 = vpop.permute.xlu0 %3296
  %3298 = vrot.lane.b32.xlu0 %v345, 1
  %v3299 = vpop.permute.xlu0 %3298
  %3300 = vrot.lane.b32.xlu0 %v351, 1
  %v3301 = vpop.permute.xlu0 %3300
  %3302 = vrot.lane.b32.xlu0 %v357, 1
  %v3303 = vpop.permute.xlu0 %3302
  %3304 = vrot.lane.b32.xlu0 %v363, 1
  %v3305 = vpop.permute.xlu0 %3304
  %3306 = vrot.lane.b32.xlu0 %v369, 1
  %v3307 = vpop.permute.xlu0 %3306
  %vm3308 = vcmp.lt.s32.totalorder %v485, 1
  %v3309 = vsel %vm3308, %v3277, %v3293
  %v3310 = vsel %vm3308, %v3279, %v3295
  %v3311 = vsel %vm3308, %v3281, %v3297
  %v3312 = vsel %vm3308, %v3283, %v3299
  %v3313 = vsel %vm3308, %v3285, %v3301
  %v3314 = vsel %vm3308, %v3287, %v3303
  %v3315 = vsel %vm3308, %v3289, %v3305
  %v3316 = vsel %vm3308, %v3291, %v3307
  %v3317 = vsel %vm3308, %v3293, %v3277
  %v3318 = vsel %vm3308, %v3295, %v3279
  %v3319 = vsel %vm3308, %v3297, %v3281
  %v3320 = vsel %vm3308, %v3299, %v3283
  %v3321 = vsel %vm3308, %v3301, %v3285
  %v3322 = vsel %vm3308, %v3303, %v3287
  %v3323 = vsel %vm3308, %v3305, %v3289
  %v3324 = vsel %vm3308, %v3307, %v3291
  %v3325 = vsel %vm501, 1, 0
  %v3326 = vsel %vm502, 1, 0
  %vm3327 = vcmp.eq.s32.totalorder %v3325, 1
  %vm3328 = vcmp.eq.s32.totalorder %v3326, 1
  %v3329 = vsel %vm3327, %v3260, %v3317
  %v3330 = vsel %vm3328, %v3268, %v3309
  %v3331 = vsel %vm3327, %v3261, %v3318
  %v3332 = vsel %vm3328, %v3269, %v3310
  %v3333 = vsel %vm3327, %v3262, %v3319
  %v3334 = vsel %vm3328, %v3270, %v3311
  %v3335 = vsel %vm3327, %v3263, %v3320
  %v3336 = vsel %vm3328, %v3271, %v3312
  %v3337 = vsel %vm3327, %v3264, %v3321
  %v3338 = vsel %vm3328, %v3272, %v3313
  %v3339 = vsel %vm3327, %v3265, %v3322
  %v3340 = vsel %vm3328, %v3273, %v3314
  %v3341 = vsel %vm3327, %v3266, %v3323
  %v3342 = vsel %vm3328, %v3274, %v3315
  %v3343 = vsel %vm3327, %v3267, %v3324
  %v3344 = vsel %vm3328, %v3275, %v3316
  %3345 = vrot.lane.b32.xlu0 %v438, 121
  %v3346 = vpop.permute.xlu0 %3345
  %3347 = vrot.lane.b32.xlu0 %v444, 121
  %v3348 = vpop.permute.xlu0 %3347
  %3349 = vrot.lane.b32.xlu0 %v450, 121
  %v3350 = vpop.permute.xlu0 %3349
  %3351 = vrot.lane.b32.xlu0 %v456, 121
  %v3352 = vpop.permute.xlu0 %3351
  %3353 = vrot.lane.b32.xlu0 %v462, 121
  %v3354 = vpop.permute.xlu0 %3353
  %3355 = vrot.lane.b32.xlu0 %v468, 121
  %v3356 = vpop.permute.xlu0 %3355
  %3357 = vrot.lane.b32.xlu0 %v474, 121
  %v3358 = vpop.permute.xlu0 %3357
  %3359 = vrot.lane.b32.xlu0 %v480, 121
  %v3360 = vpop.permute.xlu0 %3359
  %3361 = vrot.lane.b32.xlu0 %v440, 121
  %v3362 = vpop.permute.xlu0 %3361
  %3363 = vrot.lane.b32.xlu0 %v446, 121
  %v3364 = vpop.permute.xlu0 %3363
  %3365 = vrot.lane.b32.xlu0 %v452, 121
  %v3366 = vpop.permute.xlu0 %3365
  %3367 = vrot.lane.b32.xlu0 %v458, 121
  %v3368 = vpop.permute.xlu0 %3367
  %3369 = vrot.lane.b32.xlu0 %v464, 121
  %v3370 = vpop.permute.xlu0 %3369
  %3371 = vrot.lane.b32.xlu0 %v470, 121
  %v3372 = vpop.permute.xlu0 %3371
  %3373 = vrot.lane.b32.xlu0 %v476, 121
  %v3374 = vpop.permute.xlu0 %3373
  %3375 = vrot.lane.b32.xlu0 %v482, 121
  %v3376 = vpop.permute.xlu0 %3375
  %v3377 = vsel %vm3259, %v3346, %v3362
  %v3378 = vsel %vm3259, %v3348, %v3364
  %v3379 = vsel %vm3259, %v3350, %v3366
  %v3380 = vsel %vm3259, %v3352, %v3368
  %v3381 = vsel %vm3259, %v3354, %v3370
  %v3382 = vsel %vm3259, %v3356, %v3372
  %v3383 = vsel %vm3259, %v3358, %v3374
  %v3384 = vsel %vm3259, %v3360, %v3376
  %v3385 = vsel %vm3259, %v3362, %v3346
  %v3386 = vsel %vm3259, %v3364, %v3348
  %v3387 = vsel %vm3259, %v3366, %v3350
  %v3388 = vsel %vm3259, %v3368, %v3352
  %v3389 = vsel %vm3259, %v3370, %v3354
  %v3390 = vsel %vm3259, %v3372, %v3356
  %v3391 = vsel %vm3259, %v3374, %v3358
  %v3392 = vsel %vm3259, %v3376, %v3360
  %3393 = vrot.lane.b32.xlu0 %v438, 1
  %v3394 = vpop.permute.xlu0 %3393
  %3395 = vrot.lane.b32.xlu0 %v444, 1
  %v3396 = vpop.permute.xlu0 %3395
  %3397 = vrot.lane.b32.xlu0 %v450, 1
  %v3398 = vpop.permute.xlu0 %3397
  %3399 = vrot.lane.b32.xlu0 %v456, 1
  %v3400 = vpop.permute.xlu0 %3399
  %3401 = vrot.lane.b32.xlu0 %v462, 1
  %v3402 = vpop.permute.xlu0 %3401
  %3403 = vrot.lane.b32.xlu0 %v468, 1
  %v3404 = vpop.permute.xlu0 %3403
  %3405 = vrot.lane.b32.xlu0 %v474, 1
  %v3406 = vpop.permute.xlu0 %3405
  %3407 = vrot.lane.b32.xlu0 %v480, 1
  %v3408 = vpop.permute.xlu0 %3407
  %3409 = vrot.lane.b32.xlu0 %v440, 1
  %v3410 = vpop.permute.xlu0 %3409
  %3411 = vrot.lane.b32.xlu0 %v446, 1
  %v3412 = vpop.permute.xlu0 %3411
  %3413 = vrot.lane.b32.xlu0 %v452, 1
  %v3414 = vpop.permute.xlu0 %3413
  %3415 = vrot.lane.b32.xlu0 %v458, 1
  %v3416 = vpop.permute.xlu0 %3415
  %3417 = vrot.lane.b32.xlu0 %v464, 1
  %v3418 = vpop.permute.xlu0 %3417
  %3419 = vrot.lane.b32.xlu0 %v470, 1
  %v3420 = vpop.permute.xlu0 %3419
  %3421 = vrot.lane.b32.xlu0 %v476, 1
  %v3422 = vpop.permute.xlu0 %3421
  %3423 = vrot.lane.b32.xlu0 %v482, 1
  %v3424 = vpop.permute.xlu0 %3423
  %v3425 = vsel %vm3308, %v3394, %v3410
  %v3426 = vsel %vm3308, %v3396, %v3412
  %v3427 = vsel %vm3308, %v3398, %v3414
  %v3428 = vsel %vm3308, %v3400, %v3416
  %v3429 = vsel %vm3308, %v3402, %v3418
  %v3430 = vsel %vm3308, %v3404, %v3420
  %v3431 = vsel %vm3308, %v3406, %v3422
  %v3432 = vsel %vm3308, %v3408, %v3424
  %v3433 = vsel %vm3308, %v3410, %v3394
  %v3434 = vsel %vm3308, %v3412, %v3396
  %v3435 = vsel %vm3308, %v3414, %v3398
  %v3436 = vsel %vm3308, %v3416, %v3400
  %v3437 = vsel %vm3308, %v3418, %v3402
  %v3438 = vsel %vm3308, %v3420, %v3404
  %v3439 = vsel %vm3308, %v3422, %v3406
  %v3440 = vsel %vm3308, %v3424, %v3408
  %v3441 = vsel %vm3327, %v3377, %v3433
  %v3442 = vsel %vm3328, %v3385, %v3425
  %v3443 = vsel %vm3327, %v3378, %v3434
  %v3444 = vsel %vm3328, %v3386, %v3426
  %v3445 = vsel %vm3327, %v3379, %v3435
  %v3446 = vsel %vm3328, %v3387, %v3427
  %v3447 = vsel %vm3327, %v3380, %v3436
  %v3448 = vsel %vm3328, %v3388, %v3428
  %v3449 = vsel %vm3327, %v3381, %v3437
  %v3450 = vsel %vm3328, %v3389, %v3429
  %v3451 = vsel %vm3327, %v3382, %v3438
  %v3452 = vsel %vm3328, %v3390, %v3430
  %v3453 = vsel %vm3327, %v3383, %v3439
  %v3454 = vsel %vm3328, %v3391, %v3431
  %v3455 = vsel %vm3327, %v3384, %v3440
  %v3456 = vsel %vm3328, %v3392, %v3432
  %v3457 = vmul.f32 %v212, %v3329
  %v3458 = vmul.f32 %v214, %v3330
  %v3459 = vmul.f32 %v218, %v3331
  %v3460 = vmul.f32 %v220, %v3332
  %v3461 = vmul.f32 %v224, %v3333
  %v3462 = vmul.f32 %v226, %v3334
  %v3463 = vmul.f32 %v230, %v3335
  %v3464 = vmul.f32 %v232, %v3336
  %v3465 = vmul.f32 %v236, %v3337
  %v3466 = vmul.f32 %v238, %v3338
  %v3467 = vmul.f32 %v242, %v3339
  %v3468 = vmul.f32 %v244, %v3340
  %v3469 = vmul.f32 %v248, %v3341
  %v3470 = vmul.f32 %v250, %v3342
  %v3471 = vmul.f32 %v254, %v3343
  %v3472 = vmul.f32 %v256, %v3344
  %v3473 = vsub.f32 %v3457, %v1209
  %v3474 = vsub.f32 %v3458, %v1210
  %v3475 = vsub.f32 %v3459, %v1211
  %v3476 = vsub.f32 %v3460, %v1212
  %v3477 = vsub.f32 %v3461, %v1213
  %v3478 = vsub.f32 %v3462, %v1214
  %v3479 = vsub.f32 %v3463, %v1215
  %v3480 = vsub.f32 %v3464, %v1216
  %v3481 = vsub.f32 %v3465, %v1217
  %v3482 = vsub.f32 %v3466, %v1218
  %v3483 = vsub.f32 %v3467, %v1219
  %v3484 = vsub.f32 %v3468, %v1220
  %v3485 = vsub.f32 %v3469, %v1221
  %v3486 = vsub.f32 %v3470, %v1222
  %v3487 = vsub.f32 %v3471, %v1223
  %v3488 = vsub.f32 %v3472, %v1224
  %v3489 = vmul.f32 %v3473, 1.442695
  %v3490 = vpow.pop %v3489
  %v3491 = vmul.f32 %v3474, 1.442695
  %v3492 = vpow.pop %v3491
  %v3493 = vmul.f32 %v3475, 1.442695
  %v3494 = vpow.pop %v3493
  %v3495 = vmul.f32 %v3476, 1.442695
  %v3496 = vpow.pop %v3495
  %v3497 = vmul.f32 %v3477, 1.442695
  %v3498 = vpow.pop %v3497
  %v3499 = vmul.f32 %v3478, 1.442695
  %v3500 = vpow.pop %v3499
  %v3501 = vmul.f32 %v3479, 1.442695
  %v3502 = vpow.pop %v3501
  %v3503 = vmul.f32 %v3480, 1.442695
  %v3504 = vpow.pop %v3503
  %v3505 = vmul.f32 %v3481, 1.442695
  %v3506 = vpow.pop %v3505
  %v3507 = vmul.f32 %v3482, 1.442695
  %v3508 = vpow.pop %v3507
  %v3509 = vmul.f32 %v3483, 1.442695
  %v3510 = vpow.pop %v3509
  %v3511 = vmul.f32 %v3484, 1.442695
  %v3512 = vpow.pop %v3511
  %v3513 = vmul.f32 %v3485, 1.442695
  %v3514 = vpow.pop %v3513
  %v3515 = vmul.f32 %v3486, 1.442695
  %v3516 = vpow.pop %v3515
  %v3517 = vmul.f32 %v3487, 1.442695
  %v3518 = vpow.pop %v3517
  %v3519 = vmul.f32 %v3488, 1.442695
  %v3520 = vpow.pop %v3519
  %v3521 = vadd.f32 %v3179, %v3490
  %v3522 = vadd.f32 %v3180, %v3492
  %v3523 = vadd.f32 %v3181, %v3494
  %v3524 = vadd.f32 %v3182, %v3496
  %v3525 = vadd.f32 %v3183, %v3498
  %v3526 = vadd.f32 %v3184, %v3500
  %v3527 = vadd.f32 %v3185, %v3502
  %v3528 = vadd.f32 %v3186, %v3504
  %v3529 = vadd.f32 %v3187, %v3506
  %v3530 = vadd.f32 %v3188, %v3508
  %v3531 = vadd.f32 %v3189, %v3510
  %v3532 = vadd.f32 %v3190, %v3512
  %v3533 = vadd.f32 %v3191, %v3514
  %v3534 = vadd.f32 %v3192, %v3516
  %v3535 = vadd.f32 %v3193, %v3518
  %v3536 = vadd.f32 %v3194, %v3520
  %v3537 = vmul.f32 %v3490, %v3441
  %v3538 = vmul.f32 %v3492, %v3442
  %v3539 = vmul.f32 %v3494, %v3443
  %v3540 = vmul.f32 %v3496, %v3444
  %v3541 = vmul.f32 %v3498, %v3445
  %v3542 = vmul.f32 %v3500, %v3446
  %v3543 = vmul.f32 %v3502, %v3447
  %v3544 = vmul.f32 %v3504, %v3448
  %v3545 = vmul.f32 %v3506, %v3449
  %v3546 = vmul.f32 %v3508, %v3450
  %v3547 = vmul.f32 %v3510, %v3451
  %v3548 = vmul.f32 %v3512, %v3452
  %v3549 = vmul.f32 %v3514, %v3453
  %v3550 = vmul.f32 %v3516, %v3454
  %v3551 = vmul.f32 %v3518, %v3455
  %v3552 = vmul.f32 %v3520, %v3456
  %v3553 = vadd.f32 %v3211, %v3537
  %v3554 = vadd.f32 %v3212, %v3538
  %v3555 = vadd.f32 %v3213, %v3539
  %v3556 = vadd.f32 %v3214, %v3540
  %v3557 = vadd.f32 %v3215, %v3541
  %v3558 = vadd.f32 %v3216, %v3542
  %v3559 = vadd.f32 %v3217, %v3543
  %v3560 = vadd.f32 %v3218, %v3544
  %v3561 = vadd.f32 %v3219, %v3545
  %v3562 = vadd.f32 %v3220, %v3546
  %v3563 = vadd.f32 %v3221, %v3547
  %v3564 = vadd.f32 %v3222, %v3548
  %v3565 = vadd.f32 %v3223, %v3549
  %v3566 = vadd.f32 %v3224, %v3550
  %v3567 = vadd.f32 %v3225, %v3551
  %v3568 = vadd.f32 %v3226, %v3552
  %v3569 = vrcp.pop %v3521
  %v3570 = vrcp.pop %v3522
  %v3571 = vrcp.pop %v3523
  %v3572 = vrcp.pop %v3524
  %v3573 = vrcp.pop %v3525
  %v3574 = vrcp.pop %v3526
  %v3575 = vrcp.pop %v3527
  %v3576 = vrcp.pop %v3528
  %v3577 = vrcp.pop %v3529
  %v3578 = vrcp.pop %v3530
  %v3579 = vrcp.pop %v3531
  %v3580 = vrcp.pop %v3532
  %v3581 = vrcp.pop %v3533
  %v3582 = vrcp.pop %v3534
  %v3583 = vrcp.pop %v3535
  %v3584 = vrcp.pop %v3536
  %v3585 = vmul.f32 %v3521, %v3569
  %v3586 = vmul.f32 %v3522, %v3570
  %v3587 = vmul.f32 %v3523, %v3571
  %v3588 = vmul.f32 %v3524, %v3572
  %v3589 = vmul.f32 %v3525, %v3573
  %v3590 = vmul.f32 %v3526, %v3574
  %v3591 = vmul.f32 %v3527, %v3575
  %v3592 = vmul.f32 %v3528, %v3576
  %v3593 = vmul.f32 %v3529, %v3577
  %v3594 = vmul.f32 %v3530, %v3578
  %v3595 = vmul.f32 %v3531, %v3579
  %v3596 = vmul.f32 %v3532, %v3580
  %v3597 = vmul.f32 %v3533, %v3581
  %v3598 = vmul.f32 %v3534, %v3582
  %v3599 = vmul.f32 %v3535, %v3583
  %v3600 = vmul.f32 %v3536, %v3584
  %v3601 = vsub.f32 2.0, %v3585
  %v3602 = vsub.f32 2.0, %v3586
  %v3603 = vsub.f32 2.0, %v3587
  %v3604 = vsub.f32 2.0, %v3588
  %v3605 = vsub.f32 2.0, %v3589
  %v3606 = vsub.f32 2.0, %v3590
  %v3607 = vsub.f32 2.0, %v3591
  %v3608 = vsub.f32 2.0, %v3592
  %v3609 = vsub.f32 2.0, %v3593
  %v3610 = vsub.f32 2.0, %v3594
  %v3611 = vsub.f32 2.0, %v3595
  %v3612 = vsub.f32 2.0, %v3596
  %v3613 = vsub.f32 2.0, %v3597
  %v3614 = vsub.f32 2.0, %v3598
  %v3615 = vsub.f32 2.0, %v3599
  %v3616 = vsub.f32 2.0, %v3600
  %v3617 = vmul.f32 %v3569, %v3601
  %v3618 = vmul.f32 %v3570, %v3602
  %v3619 = vmul.f32 %v3571, %v3603
  %v3620 = vmul.f32 %v3572, %v3604
  %v3621 = vmul.f32 %v3573, %v3605
  %v3622 = vmul.f32 %v3574, %v3606
  %v3623 = vmul.f32 %v3575, %v3607
  %v3624 = vmul.f32 %v3576, %v3608
  %v3625 = vmul.f32 %v3577, %v3609
  %v3626 = vmul.f32 %v3578, %v3610
  %v3627 = vmul.f32 %v3579, %v3611
  %v3628 = vmul.f32 %v3580, %v3612
  %v3629 = vmul.f32 %v3581, %v3613
  %v3630 = vmul.f32 %v3582, %v3614
  %v3631 = vmul.f32 %v3583, %v3615
  %v3632 = vmul.f32 %v3584, %v3616
  %v3633 = vmul.f32 %v3553, %v3617
  %v3634 = vmul.f32 %v3554, %v3618
  %v3635 = vmul.f32 %v3555, %v3619
  %v3636 = vmul.f32 %v3556, %v3620
  %v3637 = vmul.f32 %v3557, %v3621
  %v3638 = vmul.f32 %v3558, %v3622
  %v3639 = vmul.f32 %v3559, %v3623
  %v3640 = vmul.f32 %v3560, %v3624
  %v3641 = vmul.f32 %v3561, %v3625
  %v3642 = vmul.f32 %v3562, %v3626
  %v3643 = vmul.f32 %v3563, %v3627
  %v3644 = vmul.f32 %v3564, %v3628
  %v3645 = vmul.f32 %v3565, %v3629
  %v3646 = vmul.f32 %v3566, %v3630
  %v3647 = vmul.f32 %v3567, %v3631
  %v3648 = vmul.f32 %v3568, %v3632
  %v3649 = vld [vmem:[%s2] sm:$0xff]
  %v3651 = vsel %vm120, %v3649, 0
  %3653 = vmatprep.subr.mxu0 0.0
  %3654 = vmatpush1.msra.mxu0 0.0
  %3655 = vmatprep.subr.mxu0 0.0
  %3656 = vmatpush1.msra.mxu0 0.0
  %3657 = vmatprep.subr.mxu0 0.0
  %3658 = vmatpush1.msra.mxu0 0.0
  %3659 = vmatprep.subr.mxu0 0.0
  %3660 = vmatpush1.msra.mxu0 0.0
  %3661 = vmatprep.subr.mxu0 0.0
  %3662 = vmatpush1.msra.mxu0 0.0
  %3663 = vmatprep.subr.mxu0 0.0
  %3664 = vmatpush1.msra.mxu0 0.0
  %3665 = vmatprep.subr.mxu0 0.0
  %3666 = vmatpush1.msra.mxu0 0.0
  %3667 = vmatprep.subr.mxu0 0.0
  %3668 = vmatpush1.msra.mxu0 0.0
  %3669 = vmatprep.subr.mxu0 %v3648
  %3670 = vmatpush1.msra.mxu0 %v3647
  %3671 = vmatprep.subr.mxu0 %v3646
  %3672 = vmatpush1.msra.mxu0 %v3645
  %3673 = vmatprep.subr.mxu0 %v3644
  %3674 = vmatpush1.msra.mxu0 %v3643
  %3675 = vmatprep.subr.mxu0 %v3642
  %3676 = vmatpush1.msra.mxu0 %v3641
  %3677 = vmatprep.subr.mxu0 %v3640
  %3678 = vmatpush1.msra.mxu0 %v3639
  %3679 = vmatprep.subr.mxu0 %v3638
  %3680 = vmatpush1.msra.mxu0 %v3637
  %3681 = vmatprep.subr.mxu0 %v3636
  %3682 = vmatpush1.msra.mxu0 %v3635
  %3683 = vmatprep.subr.mxu0 %v3634
  %3684 = vmatpush1.msra.mxu0 %v3633
  %3685 = vmatprep.subr.mxu0 0.0
  %3686 = vmatpush2.msra.mxu0 0.0
  %3687 = vmatprep.subr.mxu0 0.0
  %3688 = vmatpush2.msra.mxu0 0.0
  %3689 = vmatprep.subr.mxu0 0.0
  %3690 = vmatpush2.msra.mxu0 0.0
  %3691 = vmatprep.subr.mxu0 0.0
  %3692 = vmatpush2.msra.mxu0 0.0
  %3693 = vmatprep.subr.mxu0 0.0
  %3694 = vmatpush2.msra.mxu0 0.0
  %3695 = vmatprep.subr.mxu0 0.0
  %3696 = vmatpush2.msra.mxu0 0.0
  %3697 = vmatprep.subr.mxu0 0.0
  %3698 = vmatpush2.msra.mxu0 0.0
  %3699 = vmatprep.subr.mxu0 0.0
  %3700 = vmatpush2.msra.mxu0 0.0
  %3701 = vmatprep.subr.mxu0 0.0
  %3702 = vmatpush2.msra.mxu0 0.0
  %3703 = vmatprep.subr.mxu0 0.0
  %3704 = vmatpush2.msra.mxu0 0.0
  %3705 = vmatprep.subr.mxu0 0.0
  %3706 = vmatpush2.msra.mxu0 0.0
  %3707 = vmatprep.subr.mxu0 0.0
  %3708 = vmatpush2.msra.mxu0 0.0
  %3709 = vmatprep.subr.mxu0 0.0
  %3710 = vmatpush2.msra.mxu0 0.0
  %3711 = vmatprep.subr.mxu0 0.0
  %3712 = vmatpush2.msra.mxu0 0.0
  %3713 = vmatprep.subr.mxu0 0.0
  %3714 = vmatpush2.msra.mxu0 0.0
  %3715 = vmatprep.subr.mxu0 0.0
  %3716 = vmatpush2.msra.mxu0 0.0
  %3717 = vmatprep.mubr.f32.mxu0 0.0
  %3718 = vmatmul.mubr.f32.gmra.mxu0 %v3651
  %v3719 = vpop.f32.mrf.mxu0
  %v3720 = vadd.f32 0.0, %v3719
  %v3721 = vpop.f32.mrf.mxu0
  %v3722 = vadd.f32 0.0, %v3721
  %3723 = vdwg.mxu0
  %v3724 = vld [vmem:[%s7] sm:$0xff]
  %v3725 = vld [vmem:[%s7 + $0x8] sm:$0xff]
  %v3726 = vld [vmem:[%s7 + $0x10] sm:$0xff]
  %v3727 = vld [vmem:[%s7 + $0x18] sm:$0xff]
  %v3728 = vld [vmem:[%s7 + $0x20] sm:$0xff]
  %v3729 = vld [vmem:[%s7 + $0x28] sm:$0xff]
  %v3730 = vld [vmem:[%s7 + $0x30] sm:$0xff]
  %v3731 = vld [vmem:[%s7 + $0x38] sm:$0xff]
  %v3732 = vld [vmem:[%s7 + $0x40] sm:$0xff]
  %v3733 = vld [vmem:[%s7 + $0x48] sm:$0xff]
  %v3734 = vld [vmem:[%s7 + $0x50] sm:$0xff]
  %v3735 = vld [vmem:[%s7 + $0x58] sm:$0xff]
  %v3736 = vld [vmem:[%s7 + $0x60] sm:$0xff]
  %v3737 = vld [vmem:[%s7 + $0x68] sm:$0xff]
  %v3738 = vld [vmem:[%s7 + $0x70] sm:$0xff]
  %v3739 = vld [vmem:[%s7 + $0x78] sm:$0xff]
  %v3740 = vld [vmem:[%s7 + $0x80] sm:$0xff]
  %v3741 = vld [vmem:[%s7 + $0x88] sm:$0xff]
  %v3742 = vld [vmem:[%s7 + $0x90] sm:$0xff]
  %v3743 = vld [vmem:[%s7 + $0x98] sm:$0xff]
  %v3744 = vld [vmem:[%s7 + $0xa0] sm:$0xff]
  %v3745 = vld [vmem:[%s7 + $0xa8] sm:$0xff]
  %v3746 = vld [vmem:[%s7 + $0xb0] sm:$0xff]
  %v3747 = vld [vmem:[%s7 + $0xb8] sm:$0xff]
  %v3748 = vld [vmem:[%s7 + $0xc0] sm:$0xff]
  %v3749 = vld [vmem:[%s7 + $0xc8] sm:$0xff]
  %v3750 = vld [vmem:[%s7 + $0xd0] sm:$0xff]
  %v3751 = vld [vmem:[%s7 + $0xd8] sm:$0xff]
  %v3752 = vld [vmem:[%s7 + $0xe0] sm:$0xff]
  %v3753 = vld [vmem:[%s7 + $0xe8] sm:$0xff]
  %v3754 = vld [vmem:[%s7 + $0xf0] sm:$0xff]
  %v3755 = vld [vmem:[%s7 + $0xf8] sm:$0xff]
  %v3756 = vld [vmem:[%s7 + $0x100] sm:$0xff]
  %v3757 = vld [vmem:[%s7 + $0x108] sm:$0xff]
  %v3758 = vld [vmem:[%s7 + $0x110] sm:$0xff]
  %v3759 = vld [vmem:[%s7 + $0x118] sm:$0xff]
  %v3760 = vld [vmem:[%s7 + $0x120] sm:$0xff]
  %v3761 = vld [vmem:[%s7 + $0x128] sm:$0xff]
  %v3762 = vld [vmem:[%s7 + $0x130] sm:$0xff]
  %v3763 = vld [vmem:[%s7 + $0x138] sm:$0xff]
  %v3764 = vld [vmem:[%s7 + $0x140] sm:$0xff]
  %v3765 = vld [vmem:[%s7 + $0x148] sm:$0xff]
  %v3766 = vld [vmem:[%s7 + $0x150] sm:$0xff]
  %v3767 = vld [vmem:[%s7 + $0x158] sm:$0xff]
  %v3768 = vld [vmem:[%s7 + $0x160] sm:$0xff]
  %v3769 = vld [vmem:[%s7 + $0x168] sm:$0xff]
  %v3770 = vld [vmem:[%s7 + $0x170] sm:$0xff]
  %v3771 = vld [vmem:[%s7 + $0x178] sm:$0xff]
  %v3772 = vld [vmem:[%s7 + $0x180] sm:$0xff]
  %v3773 = vld [vmem:[%s7 + $0x188] sm:$0xff]
  %v3774 = vld [vmem:[%s7 + $0x190] sm:$0xff]
  %v3775 = vld [vmem:[%s7 + $0x198] sm:$0xff]
  %v3776 = vld [vmem:[%s7 + $0x1a0] sm:$0xff]
  %v3777 = vld [vmem:[%s7 + $0x1a8] sm:$0xff]
  %v3778 = vld [vmem:[%s7 + $0x1b0] sm:$0xff]
  %v3779 = vld [vmem:[%s7 + $0x1b8] sm:$0xff]
  %v3780 = vld [vmem:[%s7 + $0x1c0] sm:$0xff]
  %v3781 = vld [vmem:[%s7 + $0x1c8] sm:$0xff]
  %v3782 = vld [vmem:[%s7 + $0x1d0] sm:$0xff]
  %v3783 = vld [vmem:[%s7 + $0x1d8] sm:$0xff]
  %v3784 = vld [vmem:[%s7 + $0x1e0] sm:$0xff]
  %v3785 = vld [vmem:[%s7 + $0x1e8] sm:$0xff]
  %v3786 = vld [vmem:[%s7 + $0x1f0] sm:$0xff]
  %v3787 = vld [vmem:[%s7 + $0x1f8] sm:$0xff]
  %v3788 = vld [vmem:[%s8] sm:$0x3]
  %v3790 = vlaneseq
  %v3791 = vshrl.u32 %v3790, 7
  %v3792 = vsub.s32 0, %v3791
  %v3793 = vrot.slane %v3788, %v3792
  %v3794 = vlaneseq
  %v3795 = vshrl.u32 %v3794, 7
  %v3796 = vsub.s32 1, %v3795
  %v3797 = vrot.slane %v3788, %v3796
  %3800 = vmatprep.subr.mxu0 %v3755
  %3801 = vmatpush1.msra.mxu0 %v3754
  %3802 = vmatprep.subr.mxu0 %v3753
  %3803 = vmatpush1.msra.mxu0 %v3752
  %3804 = vmatprep.subr.mxu0 %v3751
  %3805 = vmatpush1.msra.mxu0 %v3750
  %3806 = vmatprep.subr.mxu0 %v3749
  %3807 = vmatpush1.msra.mxu0 %v3748
  %3808 = vmatprep.subr.mxu0 %v3747
  %3809 = vmatpush1.msra.mxu0 %v3746
  %3810 = vmatprep.subr.mxu0 %v3745
  %3811 = vmatpush1.msra.mxu0 %v3744
  %3812 = vmatprep.subr.mxu0 %v3743
  %3813 = vmatpush1.msra.mxu0 %v3742
  %3814 = vmatprep.subr.mxu0 %v3741
  %3815 = vmatpush1.msra.mxu0 %v3740
  %3816 = vmatprep.subr.mxu0 %v3739
  %3817 = vmatpush1.msra.mxu0 %v3738
  %3818 = vmatprep.subr.mxu0 %v3737
  %3819 = vmatpush1.msra.mxu0 %v3736
  %3820 = vmatprep.subr.mxu0 %v3735
  %3821 = vmatpush1.msra.mxu0 %v3734
  %3822 = vmatprep.subr.mxu0 %v3733
  %3823 = vmatpush1.msra.mxu0 %v3732
  %3824 = vmatprep.subr.mxu0 %v3731
  %3825 = vmatpush1.msra.mxu0 %v3730
  %3826 = vmatprep.subr.mxu0 %v3729
  %3827 = vmatpush1.msra.mxu0 %v3728
  %3828 = vmatprep.subr.mxu0 %v3727
  %3829 = vmatpush1.msra.mxu0 %v3726
  %3830 = vmatprep.subr.mxu0 %v3725
  %3831 = vmatpush1.msra.mxu0 %v3724
  %3832 = vmatprep.subr.mxu0 %v3787
  %3833 = vmatpush2.msra.mxu0 %v3786
  %3834 = vmatprep.subr.mxu0 %v3785
  %3835 = vmatpush2.msra.mxu0 %v3784
  %3836 = vmatprep.subr.mxu0 %v3783
  %3837 = vmatpush2.msra.mxu0 %v3782
  %3838 = vmatprep.subr.mxu0 %v3781
  %3839 = vmatpush2.msra.mxu0 %v3780
  %3840 = vmatprep.subr.mxu0 %v3779
  %3841 = vmatpush2.msra.mxu0 %v3778
  %3842 = vmatprep.subr.mxu0 %v3777
  %3843 = vmatpush2.msra.mxu0 %v3776
  %3844 = vmatprep.subr.mxu0 %v3775
  %3845 = vmatpush2.msra.mxu0 %v3774
  %3846 = vmatprep.subr.mxu0 %v3773
  %3847 = vmatpush2.msra.mxu0 %v3772
  %3848 = vmatprep.subr.mxu0 %v3771
  %3849 = vmatpush2.msra.mxu0 %v3770
  %3850 = vmatprep.subr.mxu0 %v3769
  %3851 = vmatpush2.msra.mxu0 %v3768
  %3852 = vmatprep.subr.mxu0 %v3767
  %3853 = vmatpush2.msra.mxu0 %v3766
  %3854 = vmatprep.subr.mxu0 %v3765
  %3855 = vmatpush2.msra.mxu0 %v3764
  %3856 = vmatprep.subr.mxu0 %v3763
  %3857 = vmatpush2.msra.mxu0 %v3762
  %3858 = vmatprep.subr.mxu0 %v3761
  %3859 = vmatpush2.msra.mxu0 %v3760
  %3860 = vmatprep.subr.mxu0 %v3759
  %3861 = vmatpush2.msra.mxu0 %v3758
  %3862 = vmatprep.subr.mxu0 %v3757
  %3863 = vmatpush2.msra.mxu0 %v3756
  %3864 = vmatprep.mubr.f32.mxu0 %v3722
  %3865 = vmatmul.mubr.f32.gmra.mxu0 %v3720
  %v3866 = vpop.f32.mrf.mxu0
  %v3867 = vadd.f32 %v3793, %v3866
  %v3868 = vpop.f32.mrf.mxu0
  %v3869 = vadd.f32 %v3797, %v3868
  %3870 = vdwg.mxu0
  %v3871 = vld [vmem:[%s5] sm:$0xff]
  %v3872 = vld [vmem:[%s5 + $0x8] sm:$0xff]
  %v3873 = vld [vmem:[%s5 + $0x10] sm:$0xff]
  %v3874 = vld [vmem:[%s5 + $0x18] sm:$0xff]
  %v3875 = vld [vmem:[%s5 + $0x20] sm:$0xff]
  %v3876 = vld [vmem:[%s5 + $0x28] sm:$0xff]
  %v3877 = vld [vmem:[%s5 + $0x30] sm:$0xff]
  %v3878 = vld [vmem:[%s5 + $0x38] sm:$0xff]
  %v3879 = vld [vmem:[%s5 + $0x40] sm:$0xff]
  %v3880 = vld [vmem:[%s5 + $0x48] sm:$0xff]
  %v3881 = vld [vmem:[%s5 + $0x50] sm:$0xff]
  %v3882 = vld [vmem:[%s5 + $0x58] sm:$0xff]
  %v3883 = vld [vmem:[%s5 + $0x60] sm:$0xff]
  %v3884 = vld [vmem:[%s5 + $0x68] sm:$0xff]
  %v3885 = vld [vmem:[%s5 + $0x70] sm:$0xff]
  %v3886 = vld [vmem:[%s5 + $0x78] sm:$0xff]
  %v3887 = vld [vmem:[%s5 + $0x80] sm:$0xff]
  %v3888 = vld [vmem:[%s5 + $0x88] sm:$0xff]
  %v3889 = vld [vmem:[%s5 + $0x90] sm:$0xff]
  %v3890 = vld [vmem:[%s5 + $0x98] sm:$0xff]
  %v3891 = vld [vmem:[%s5 + $0xa0] sm:$0xff]
  %v3892 = vld [vmem:[%s5 + $0xa8] sm:$0xff]
  %v3893 = vld [vmem:[%s5 + $0xb0] sm:$0xff]
  %v3894 = vld [vmem:[%s5 + $0xb8] sm:$0xff]
  %v3895 = vld [vmem:[%s5 + $0xc0] sm:$0xff]
  %v3896 = vld [vmem:[%s5 + $0xc8] sm:$0xff]
  %v3897 = vld [vmem:[%s5 + $0xd0] sm:$0xff]
  %v3898 = vld [vmem:[%s5 + $0xd8] sm:$0xff]
  %v3899 = vld [vmem:[%s5 + $0xe0] sm:$0xff]
  %v3900 = vld [vmem:[%s5 + $0xe8] sm:$0xff]
  %v3901 = vld [vmem:[%s5 + $0xf0] sm:$0xff]
  %v3902 = vld [vmem:[%s5 + $0xf8] sm:$0xff]
  %v3903 = vld [vmem:[%s6] sm:$0x1]
  %v3905 = vlaneseq
  %v3906 = vshrl.u32 %v3905, 7
  %v3907 = vsub.s32 0, %v3906
  %v3908 = vrot.slane %v3903, %v3907
  %3910 = vmatprep.subr.mxu0 0.0
  %3911 = vmatpush1.msra.mxu0 %v3886
  %3912 = vmatprep.subr.mxu0 0.0
  %3913 = vmatpush1.msra.mxu0 %v3885
  %3914 = vmatprep.subr.mxu0 0.0
  %3915 = vmatpush1.msra.mxu0 %v3884
  %3916 = vmatprep.subr.mxu0 0.0
  %3917 = vmatpush1.msra.mxu0 %v3883
  %3918 = vmatprep.subr.mxu0 0.0
  %3919 = vmatpush1.msra.mxu0 %v3882
  %3920 = vmatprep.subr.mxu0 0.0
  %3921 = vmatpush1.msra.mxu0 %v3881
  %3922 = vmatprep.subr.mxu0 0.0
  %3923 = vmatpush1.msra.mxu0 %v3880
  %3924 = vmatprep.subr.mxu0 0.0
  %3925 = vmatpush1.msra.mxu0 %v3879
  %3926 = vmatprep.subr.mxu0 0.0
  %3927 = vmatpush1.msra.mxu0 %v3878
  %3928 = vmatprep.subr.mxu0 0.0
  %3929 = vmatpush1.msra.mxu0 %v3877
  %3930 = vmatprep.subr.mxu0 0.0
  %3931 = vmatpush1.msra.mxu0 %v3876
  %3932 = vmatprep.subr.mxu0 0.0
  %3933 = vmatpush1.msra.mxu0 %v3875
  %3934 = vmatprep.subr.mxu0 0.0
  %3935 = vmatpush1.msra.mxu0 %v3874
  %3936 = vmatprep.subr.mxu0 0.0
  %3937 = vmatpush1.msra.mxu0 %v3873
  %3938 = vmatprep.subr.mxu0 0.0
  %3939 = vmatpush1.msra.mxu0 %v3872
  %3940 = vmatprep.subr.mxu0 0.0
  %3941 = vmatpush1.msra.mxu0 %v3871
  %3942 = vmatprep.subr.mxu0 0.0
  %3943 = vmatpush2.msra.mxu0 %v3902
  %3944 = vmatprep.subr.mxu0 0.0
  %3945 = vmatpush2.msra.mxu0 %v3901
  %3946 = vmatprep.subr.mxu0 0.0
  %3947 = vmatpush2.msra.mxu0 %v3900
  %3948 = vmatprep.subr.mxu0 0.0
  %3949 = vmatpush2.msra.mxu0 %v3899
  %3950 = vmatprep.subr.mxu0 0.0
  %3951 = vmatpush2.msra.mxu0 %v3898
  %3952 = vmatprep.subr.mxu0 0.0
  %3953 = vmatpush2.msra.mxu0 %v3897
  %3954 = vmatprep.subr.mxu0 0.0
  %3955 = vmatpush2.msra.mxu0 %v3896
  %3956 = vmatprep.subr.mxu0 0.0
  %3957 = vmatpush2.msra.mxu0 %v3895
  %3958 = vmatprep.subr.mxu0 0.0
  %3959 = vmatpush2.msra.mxu0 %v3894
  %3960 = vmatprep.subr.mxu0 0.0
  %3961 = vmatpush2.msra.mxu0 %v3893
  %3962 = vmatprep.subr.mxu0 0.0
  %3963 = vmatpush2.msra.mxu0 %v3892
  %3964 = vmatprep.subr.mxu0 0.0
  %3965 = vmatpush2.msra.mxu0 %v3891
  %3966 = vmatprep.subr.mxu0 0.0
  %3967 = vmatpush2.msra.mxu0 %v3890
  %3968 = vmatprep.subr.mxu0 0.0
  %3969 = vmatpush2.msra.mxu0 %v3889
  %3970 = vmatprep.subr.mxu0 0.0
  %3971 = vmatpush2.msra.mxu0 %v3888
  %3972 = vmatprep.subr.mxu0 0.0
  %3973 = vmatpush2.msra.mxu0 %v3887
  %3974 = vmatprep.mubr.f32.mxu0 %v3634
  %3975 = vmatmul.mubr.f32.gmra.mxu0 %v3633
  %v3976 = vpop.f32.mrf.mxu0
  %v3977 = vadd.f32 %v3908, %v3976
  %v3978 = vpop.f32.mrf.mxu0
  %3979 = vmatprep.mubr.f32.mxu0 %v3636
  %3980 = vmatmul.mubr.f32.gmra.mxu0 %v3635
  %v3981 = vpop.f32.mrf.mxu0
  %v3982 = vadd.f32 %v3908, %v3981
  %v3983 = vpop.f32.mrf.mxu0
  %3984 = vmatprep.mubr.f32.mxu0 %v3638
  %3985 = vmatmul.mubr.f32.gmra.mxu0 %v3637
  %v3986 = vpop.f32.mrf.mxu0
  %v3987 = vadd.f32 %v3908, %v3986
  %v3988 = vpop.f32.mrf.mxu0
  %3989 = vmatprep.mubr.f32.mxu0 %v3640
  %3990 = vmatmul.mubr.f32.gmra.mxu0 %v3639
  %v3991 = vpop.f32.mrf.mxu0
  %v3992 = vadd.f32 %v3908, %v3991
  %v3993 = vpop.f32.mrf.mxu0
  %3994 = vmatprep.mubr.f32.mxu0 %v3642
  %3995 = vmatmul.mubr.f32.gmra.mxu0 %v3641
  %v3996 = vpop.f32.mrf.mxu0
  %v3997 = vadd.f32 %v3908, %v3996
  %v3998 = vpop.f32.mrf.mxu0
  %3999 = vmatprep.mubr.f32.mxu0 %v3644
  %4000 = vmatmul.mubr.f32.gmra.mxu0 %v3643
  %v4001 = vpop.f32.mrf.mxu0
  %v4002 = vadd.f32 %v3908, %v4001
  %v4003 = vpop.f32.mrf.mxu0
  %4004 = vmatprep.mubr.f32.mxu0 %v3646
  %4005 = vmatmul.mubr.f32.gmra.mxu0 %v3645
  %v4006 = vpop.f32.mrf.mxu0
  %v4007 = vadd.f32 %v3908, %v4006
  %v4008 = vpop.f32.mrf.mxu0
  %4009 = vmatprep.mubr.f32.mxu0 %v3648
  %4010 = vmatmul.mubr.f32.gmra.mxu0 %v3647
  %v4011 = vpop.f32.mrf.mxu0
  %v4012 = vadd.f32 %v3908, %v4011
  %v4013 = vpop.f32.mrf.mxu0
  %4014 = vdwg.mxu0
  %v4015 = vsel %vm120, %v3977, -inf
  %4016 = vmax.xlane.f32.xlu0 %v4015
  %v4017 = vpop.xlane.xlu0 %4016
  %v4018 = vsel %vm120, %v3982, -inf
  %4019 = vmax.xlane.f32.xlu0 %v4018
  %v4020 = vpop.xlane.xlu0 %4019
  %v4021 = vsel %vm120, %v3987, -inf
  %4022 = vmax.xlane.f32.xlu0 %v4021
  %v4023 = vpop.xlane.xlu0 %4022
  %v4024 = vsel %vm120, %v3992, -inf
  %4025 = vmax.xlane.f32.xlu0 %v4024
  %v4026 = vpop.xlane.xlu0 %4025
  %v4027 = vsel %vm120, %v3997, -inf
  %4028 = vmax.xlane.f32.xlu0 %v4027
  %v4029 = vpop.xlane.xlu0 %4028
  %v4030 = vsel %vm120, %v4002, -inf
  %4031 = vmax.xlane.f32.xlu0 %v4030
  %v4032 = vpop.xlane.xlu0 %4031
  %v4033 = vsel %vm120, %v4007, -inf
  %4034 = vmax.xlane.f32.xlu0 %v4033
  %v4035 = vpop.xlane.xlu0 %4034
  %v4036 = vsel %vm120, %v4012, -inf
  %4037 = vmax.xlane.f32.xlu0 %v4036
  %v4038 = vpop.xlane.xlu0 %4037
  %v4039 = vsub.f32 %v3977, %v4017
  %v4040 = vsub.f32 %v3982, %v4020
  %v4041 = vsub.f32 %v3987, %v4023
  %v4042 = vsub.f32 %v3992, %v4026
  %v4043 = vsub.f32 %v3997, %v4029
  %v4044 = vsub.f32 %v4002, %v4032
  %v4045 = vsub.f32 %v4007, %v4035
  %v4046 = vsub.f32 %v4012, %v4038
  %v4047 = vmul.f32 %v4039, 1.442695
  %v4048 = vpow.pop %v4047
  %v4049 = vmul.f32 %v4040, 1.442695
  %v4050 = vpow.pop %v4049
  %v4051 = vmul.f32 %v4041, 1.442695
  %v4052 = vpow.pop %v4051
  %v4053 = vmul.f32 %v4042, 1.442695
  %v4054 = vpow.pop %v4053
  %v4055 = vmul.f32 %v4043, 1.442695
  %v4056 = vpow.pop %v4055
  %v4057 = vmul.f32 %v4044, 1.442695
  %v4058 = vpow.pop %v4057
  %v4059 = vmul.f32 %v4045, 1.442695
  %v4060 = vpow.pop %v4059
  %v4061 = vmul.f32 %v4046, 1.442695
  %v4062 = vpow.pop %v4061
  %v4063 = vsel %vm120, %v4048, 0.0
  %4064 = vadd.xlane.f32.xlu0 %v4063
  %v4065 = vpop.xlane.xlu0 %4064
  %v4066 = vsel %vm120, %v4050, 0.0
  %4067 = vadd.xlane.f32.xlu0 %v4066
  %v4068 = vpop.xlane.xlu0 %4067
  %v4069 = vsel %vm120, %v4052, 0.0
  %4070 = vadd.xlane.f32.xlu0 %v4069
  %v4071 = vpop.xlane.xlu0 %4070
  %v4072 = vsel %vm120, %v4054, 0.0
  %4073 = vadd.xlane.f32.xlu0 %v4072
  %v4074 = vpop.xlane.xlu0 %4073
  %v4075 = vsel %vm120, %v4056, 0.0
  %4076 = vadd.xlane.f32.xlu0 %v4075
  %v4077 = vpop.xlane.xlu0 %4076
  %v4078 = vsel %vm120, %v4058, 0.0
  %4079 = vadd.xlane.f32.xlu0 %v4078
  %v4080 = vpop.xlane.xlu0 %4079
  %v4081 = vsel %vm120, %v4060, 0.0
  %4082 = vadd.xlane.f32.xlu0 %v4081
  %v4083 = vpop.xlane.xlu0 %4082
  %v4084 = vsel %vm120, %v4062, 0.0
  %4085 = vadd.xlane.f32.xlu0 %v4084
  %v4086 = vpop.xlane.xlu0 %4085
  %v4087 = vrcp.pop %v4065
  %v4088 = vrcp.pop %v4068
  %v4089 = vrcp.pop %v4071
  %v4090 = vrcp.pop %v4074
  %v4091 = vrcp.pop %v4077
  %v4092 = vrcp.pop %v4080
  %v4093 = vrcp.pop %v4083
  %v4094 = vrcp.pop %v4086
  %v4095 = vmul.f32 %v4065, %v4087
  %v4096 = vmul.f32 %v4068, %v4088
  %v4097 = vmul.f32 %v4071, %v4089
  %v4098 = vmul.f32 %v4074, %v4090
  %v4099 = vmul.f32 %v4077, %v4091
  %v4100 = vmul.f32 %v4080, %v4092
  %v4101 = vmul.f32 %v4083, %v4093
  %v4102 = vmul.f32 %v4086, %v4094
  %v4103 = vsub.f32 2.0, %v4095
  %v4104 = vsub.f32 2.0, %v4096
  %v4105 = vsub.f32 2.0, %v4097
  %v4106 = vsub.f32 2.0, %v4098
  %v4107 = vsub.f32 2.0, %v4099
  %v4108 = vsub.f32 2.0, %v4100
  %v4109 = vsub.f32 2.0, %v4101
  %v4110 = vsub.f32 2.0, %v4102
  %v4111 = vmul.f32 %v4087, %v4103
  %v4112 = vmul.f32 %v4088, %v4104
  %v4113 = vmul.f32 %v4089, %v4105
  %v4114 = vmul.f32 %v4090, %v4106
  %v4115 = vmul.f32 %v4091, %v4107
  %v4116 = vmul.f32 %v4092, %v4108
  %v4117 = vmul.f32 %v4093, %v4109
  %v4118 = vmul.f32 %v4094, %v4110
  %v4119 = vmul.f32 %v4048, %v4111
  %v4120 = vmul.f32 %v4050, %v4112
  %v4121 = vmul.f32 %v4052, %v4113
  %v4122 = vmul.f32 %v4054, %v4114
  %v4123 = vmul.f32 %v4056, %v4115
  %v4124 = vmul.f32 %v4058, %v4116
  %v4125 = vmul.f32 %v4060, %v4117
  %v4126 = vmul.f32 %v4062, %v4118
  %v4127 = vsel %vm120, %v3867, -inf
  %4128 = vmax.xlane.f32.xlu0 %v4127
  %v4129 = vpop.xlane.xlu0 %4128
  %v4130 = vsub.f32 %v3867, %v4129
  %v4131 = vmul.f32 %v4130, 1.442695
  %v4132 = vpow.pop %v4131
  %v4133 = vsel %vm120, %v4132, 0.0
  %4134 = vadd.xlane.f32.xlu0 %v4133
  %v4135 = vpop.xlane.xlu0 %4134
  %v4136 = vrcp.pop %v4135
  %v4137 = vmul.f32 %v4135, %v4136
  %v4138 = vsub.f32 2.0, %v4137
  %v4139 = vmul.f32 %v4136, %v4138
  %v4140 = vmul.f32 %v4132, %v4139
  %v4141 = vld [vmem:[%s1] sm:$0x1]
  %v4143 = vlaneseq
  %v4144 = vshrl.u32 %v4143, 7
  %v4145 = vsub.s32 0, %v4144
  %v4146 = vrot.slane %v4141, %v4145
  %v4148 = vmul.f32 %v3649, %v4146
  %4150 = vrot.lane.b32.xlu0 %v3867, 64
  %v4151 = vpop.permute.xlu0 %4150
  %v4154 = vsel %vm120, %v4148, 0
  %4156 = vmatprep.subr.mxu0 0.0
  %4157 = vmatpush1.msra.mxu0 0.0
  %4158 = vmatprep.subr.mxu0 0.0
  %4159 = vmatpush1.msra.mxu0 0.0
  %4160 = vmatprep.subr.mxu0 0.0
  %4161 = vmatpush1.msra.mxu0 0.0
  %4162 = vmatprep.subr.mxu0 0.0
  %4163 = vmatpush1.msra.mxu0 0.0
  %4164 = vmatprep.subr.mxu0 0.0
  %4165 = vmatpush1.msra.mxu0 0.0
  %4166 = vmatprep.subr.mxu0 0.0
  %4167 = vmatpush1.msra.mxu0 0.0
  %4168 = vmatprep.subr.mxu0 0.0
  %4169 = vmatpush1.msra.mxu0 0.0
  %4170 = vmatprep.subr.mxu0 0.0
  %4171 = vmatpush1.msra.mxu0 0.0
  %4172 = vmatprep.subr.mxu0 0.0
  %4173 = vmatpush1.msra.mxu0 %v4126
  %4174 = vmatprep.subr.mxu0 0.0
  %4175 = vmatpush1.msra.mxu0 %v4125
  %4176 = vmatprep.subr.mxu0 0.0
  %4177 = vmatpush1.msra.mxu0 %v4124
  %4178 = vmatprep.subr.mxu0 0.0
  %4179 = vmatpush1.msra.mxu0 %v4123
  %4180 = vmatprep.subr.mxu0 0.0
  %4181 = vmatpush1.msra.mxu0 %v4122
  %4182 = vmatprep.subr.mxu0 0.0
  %4183 = vmatpush1.msra.mxu0 %v4121
  %4184 = vmatprep.subr.mxu0 0.0
  %4185 = vmatpush1.msra.mxu0 %v4120
  %4186 = vmatprep.subr.mxu0 0.0
  %4187 = vmatpush1.msra.mxu0 %v4119
  %4188 = vmatprep.subr.mxu0 0.0
  %4189 = vmatpush2.msra.mxu0 0.0
  %4190 = vmatprep.subr.mxu0 0.0
  %4191 = vmatpush2.msra.mxu0 0.0
  %4192 = vmatprep.subr.mxu0 0.0
  %4193 = vmatpush2.msra.mxu0 0.0
  %4194 = vmatprep.subr.mxu0 0.0
  %4195 = vmatpush2.msra.mxu0 0.0
  %4196 = vmatprep.subr.mxu0 0.0
  %4197 = vmatpush2.msra.mxu0 0.0
  %4198 = vmatprep.subr.mxu0 0.0
  %4199 = vmatpush2.msra.mxu0 0.0
  %4200 = vmatprep.subr.mxu0 0.0
  %4201 = vmatpush2.msra.mxu0 0.0
  %4202 = vmatprep.subr.mxu0 0.0
  %4203 = vmatpush2.msra.mxu0 0.0
  %4204 = vmatprep.subr.mxu0 0.0
  %4205 = vmatpush2.msra.mxu0 0.0
  %4206 = vmatprep.subr.mxu0 0.0
  %4207 = vmatpush2.msra.mxu0 0.0
  %4208 = vmatprep.subr.mxu0 0.0
  %4209 = vmatpush2.msra.mxu0 0.0
  %4210 = vmatprep.subr.mxu0 0.0
  %4211 = vmatpush2.msra.mxu0 0.0
  %4212 = vmatprep.subr.mxu0 0.0
  %4213 = vmatpush2.msra.mxu0 0.0
  %4214 = vmatprep.subr.mxu0 0.0
  %4215 = vmatpush2.msra.mxu0 0.0
  %4216 = vmatprep.subr.mxu0 0.0
  %4217 = vmatpush2.msra.mxu0 0.0
  %4218 = vmatprep.subr.mxu0 0.0
  %4219 = vmatpush2.msra.mxu0 0.0
  %4220 = vmatprep.mubr.f32.mxu0 0.0
  %4221 = vmatmul.mubr.f32.gmra.mxu0 %v4154
  %v4222 = vpop.f32.mrf.mxu0
  %v4223 = vadd.f32 %v4151, %v4222
  %v4224 = vpop.f32.mrf.mxu0
  %4225 = vdwg.mxu0
  %vm4226 = vcmp.gt.f32.partialorder %v4223, 0.0
  %v4227 = vmin.f32 %v4223, 0.0
  %v4228 = vmul.f32 %v4227, 1.442695
  %v4229 = vpow.pop %v4228
  %v4230 = vsub.f32 %v4229, 1.0
  %v4231 = vsel %vm4226, %v4223, %v4230
  %v4232 = vmul.f32 %v4231, %v4140
  %v4233 = vmul.f32 %v3869, 0.015625
  %v4234 = vadd.f32 %v4232, %v4233
  %v4236 = vsel %vm120, 1.0, 0
  %v4239 = vsel %vm120, %v4234, 0
  %4241 = vmatprep.subr.mxu0 0.0
  %4242 = vmatpush1.xpose.msra.mxu0 0.0
  %4243 = vmatprep.subr.mxu0 0.0
  %4244 = vmatpush1.xpose.msra.mxu0 0.0
  %4245 = vmatprep.subr.mxu0 0.0
  %4246 = vmatpush1.xpose.msra.mxu0 0.0
  %4247 = vmatprep.subr.mxu0 0.0
  %4248 = vmatpush1.xpose.msra.mxu0 0.0
  %4249 = vmatprep.subr.mxu0 0.0
  %4250 = vmatpush1.xpose.msra.mxu0 0.0
  %4251 = vmatprep.subr.mxu0 0.0
  %4252 = vmatpush1.xpose.msra.mxu0 0.0
  %4253 = vmatprep.subr.mxu0 0.0
  %4254 = vmatpush1.xpose.msra.mxu0 0.0
  %4255 = vmatprep.subr.mxu0 0.0
  %4256 = vmatpush1.xpose.msra.mxu0 0.0
  %4257 = vmatprep.subr.mxu0 0.0
  %4258 = vmatpush1.xpose.msra.mxu0 0.0
  %4259 = vmatprep.subr.mxu0 0.0
  %4260 = vmatpush1.xpose.msra.mxu0 0.0
  %4261 = vmatprep.subr.mxu0 0.0
  %4262 = vmatpush1.xpose.msra.mxu0 0.0
  %4263 = vmatprep.subr.mxu0 0.0
  %4264 = vmatpush1.xpose.msra.mxu0 0.0
  %4265 = vmatprep.subr.mxu0 0.0
  %4266 = vmatpush1.xpose.msra.mxu0 0.0
  %4267 = vmatprep.subr.mxu0 0.0
  %4268 = vmatpush1.xpose.msra.mxu0 0.0
  %4269 = vmatprep.subr.mxu0 0.0
  %4270 = vmatpush1.xpose.msra.mxu0 0.0
  %4271 = vmatprep.subr.mxu0 0.0
  %4272 = vmatpush1.xpose.msra.mxu0 %v4239
  %4273 = vmatprep.subr.mxu0 0.0
  %4274 = vmatpush2.xpose.msra.mxu0 0.0
  %4275 = vmatprep.subr.mxu0 0.0
  %4276 = vmatpush2.xpose.msra.mxu0 0.0
  %4277 = vmatprep.subr.mxu0 0.0
  %4278 = vmatpush2.xpose.msra.mxu0 0.0
  %4279 = vmatprep.subr.mxu0 0.0
  %4280 = vmatpush2.xpose.msra.mxu0 0.0
  %4281 = vmatprep.subr.mxu0 0.0
  %4282 = vmatpush2.xpose.msra.mxu0 0.0
  %4283 = vmatprep.subr.mxu0 0.0
  %4284 = vmatpush2.xpose.msra.mxu0 0.0
  %4285 = vmatprep.subr.mxu0 0.0
  %4286 = vmatpush2.xpose.msra.mxu0 0.0
  %4287 = vmatprep.subr.mxu0 0.0
  %4288 = vmatpush2.xpose.msra.mxu0 0.0
  %4289 = vmatprep.subr.mxu0 0.0
  %4290 = vmatpush2.xpose.msra.mxu0 0.0
  %4291 = vmatprep.subr.mxu0 0.0
  %4292 = vmatpush2.xpose.msra.mxu0 0.0
  %4293 = vmatprep.subr.mxu0 0.0
  %4294 = vmatpush2.xpose.msra.mxu0 0.0
  %4295 = vmatprep.subr.mxu0 0.0
  %4296 = vmatpush2.xpose.msra.mxu0 0.0
  %4297 = vmatprep.subr.mxu0 0.0
  %4298 = vmatpush2.xpose.msra.mxu0 0.0
  %4299 = vmatprep.subr.mxu0 0.0
  %4300 = vmatpush2.xpose.msra.mxu0 0.0
  %4301 = vmatprep.subr.mxu0 0.0
  %4302 = vmatpush2.xpose.msra.mxu0 0.0
  %4303 = vmatprep.subr.mxu0 0.0
  %4304 = vmatpush2.xpose.msra.mxu0 0.0
  %4305 = vmatprep.mubr.f32.mxu0 0.0
  %4306 = vmatmul.mubr.f32.gmra.mxu0 %v4236
  %v4307 = vpop.f32.mrf.mxu0
  %v4308 = vadd.f32 0.0, %v4307
  %v4309 = vpop.f32.mrf.mxu0
  %4310 = vdwg.mxu0
  %vm4311 = vcmask 57344
  %4312 = vst.msk [vmem:[%s9] sm:$0x1] %vm4311, %v4308
  // Predicated region
  $region38: #{qmixer_pallas.1} parent=0 // pred_check
    _
  $region39: #{qmixer_pallas.1} parent=0 // pred_check_branch
    %4314 = sbr.rel (0) target = $region41
  $region40: #{qmixer_pallas.1} parent=0 // pred_region
    _
  $region41: #{qmixer_pallas.1} parent=0 // pred_fallthru
    _
  // Predicated region
  $region42: #{qmixer_pallas.1} parent=0 // pred_check
    _
  $region43: #{qmixer_pallas.1} parent=0 // pred_check_branch
    %4316 = sbr.rel (0) target = $region45
  $region44: #{qmixer_pallas.1} parent=0 // pred_region
    _
  $region45: #{qmixer_pallas.1} parent=0 // pred_fallthru
    _

</llo_original>
